<compile_context>
chip_gen: v6e
topology: v6e:2x2x1
jax: 0.10.0
libtpu: 0.0.40
codegen_flags: <defaults>
</compile_context>

<pallas_src>
import numpy as np
import jax
import jax.numpy as jnp
from jax.experimental import pallas as pl
from jax.experimental.pallas import tpu as pltpu


def _relu(v):
    return jnp.maximum(v, 0.0)


def rnn_skip_kernel(
    x2d_ref, mask_ref, y0_ref, y1_ref,
    w1x_ref, b1_ref, w1y_ref, w1yp_ref, w1sum_ref,
    w2_ref, b2_ref, w3_ref, b3_ref,
    wih_ref, whh_ref, bcell_ref,
    v1_ref, c1_ref, v2_ref, c2_ref, v3_ref, c3_ref,
    ys_ref, xskip_ref,
):
    f32 = jnp.float32
    TB, _ = x2d_ref.shape
    B, O = y0_ref.shape
    H = w2_ref.shape[0]
    T = TB // B

    # ---------------- one-time prologue (off the per-step critical path) -----
    # fused input projection for all T steps at once: (T*B, Fx) @ (Fx, H) + b1
    pre = jnp.dot(x2d_ref[...], w1x_ref[...],
                  preferred_element_type=f32) + b1_ref[...]          # (T*B, H)
    # step-0 recurrent term: before the loop y = y_1 and y_ = y_0
    rec0 = (jnp.dot(y1_ref[...], w1y_ref[...], preferred_element_type=f32)
            + jnp.dot(y0_ref[...], w1yp_ref[...], preferred_element_type=f32))
    mask = mask_ref[...]                                             # (T*B, 1)

    # hoisted bias broadcasts (would otherwise be re-emitted every unrolled step)
    b2 = jnp.broadcast_to(b2_ref[...], (B, H))
    b3 = jnp.broadcast_to(b3_ref[...], (B, H))
    bc = jnp.broadcast_to(bcell_ref[...], (B, H))
    c1 = jnp.broadcast_to(c1_ref[...], (B, H))
    c2 = jnp.broadcast_to(c2_ref[...], (B, H))
    c3 = jnp.broadcast_to(c3_ref[...], (B, O))

    h = jnp.zeros((B, H), f32)                                       # h_0 = 0
    y = None                                                         # y == y_ for i >= 1

    # Static, fully unrolled time loop (T is small).  For long sequences switch
    # to lax.fori_loop with pl.ds dynamic slicing of pre / mask / outputs.
    for i in range(T):
        lo = i * B

        # --- extract NeuralNet: first layer = hoisted input term + recurrent term
        if i == 0:
            z = pre[lo:lo + B, :] + rec0
        else:
            z = pre[lo:lo + B, :] + jnp.dot(
                y, w1sum_ref[...], preferred_element_type=f32)
        e = _relu(z)
        e = _relu(jnp.dot(e, w2_ref[...], preferred_element_type=f32) + b2)
        e = jnp.dot(e, w3_ref[...], preferred_element_type=f32) + b3

        # --- tanh RNN cell as two summed dots (no lane concat), biases pre-added
        h = jnp.tanh(jnp.dot(_relu(e), wih_ref[...], preferred_element_type=f32)
                     + jnp.dot(h, whh_ref[...], preferred_element_type=f32)
                     + bc)

        # --- output NeuralNet on ReLU(h)
        o = _relu(jnp.dot(_relu(h), v1_ref[...], preferred_element_type=f32) + c1)
        o = _relu(jnp.dot(o, v2_ref[...], preferred_element_type=f32) + c2)
        o = jnp.dot(o, v3_ref[...], preferred_element_type=f32) + c3

        # in-kernel pack/pad masking with the precomputed, loop-invariant mask
        m = mask[lo:lo + B, :]                                       # (B, 1)
        ys_ref[:, i, :] = o * m
        xskip_ref[:, i, :] = e * m

        # PyTorch: y = x_.clone(); y_ = y.clone() -> both become the new output
        y = o


def my_rnn_skip_forward(x, x_len, y0, y1, params):
    """x: (B, T, F_x) f32 (batch-first); x_len: (B,) int; y0, y1: (B, 1, O).
    Returns (ys, x_skips) shaped (B, T, O) and (B, T, H), zero past x_len."""
    B, T, Fx = x.shape
    H = params["w2"].shape[0]
    O = params["v3"].shape[1]

    # one-time weight/input prep (outside the kernel):
    #   * y == y_ for all steps >= 1  ->  single summed first-layer weight
    #   * RNN-cell input/recurrent biases pre-added
    w1sum = params["w1y"] + params["w1yp"]
    bcell = params["bih"] + params["bhh"]

    # time-major flattening so the whole input projection is one matmul and the
    # per-step slice is a contiguous block of B rows
    x_tm = jnp.transpose(x.astype(jnp.float32), (1, 0, 2)).reshape(T * B, Fx)
    mask = (jnp.arange(T, dtype=jnp.int32)[:, None]
            < x_len.astype(jnp.int32)[None, :]).astype(jnp.float32).reshape(T * B, 1)
    y0s = y0.reshape(B, O).astype(jnp.float32)
    y1s = y1.reshape(B, O).astype(jnp.float32)

    vmem = pl.BlockSpec(memory_space=pltpu.MemorySpace.VMEM)

    ys, skips = pl.pallas_call(
        rnn_skip_kernel,
        out_shape=(
            jax.ShapeDtypeStruct((B, T, O), jnp.float32),
            jax.ShapeDtypeStruct((B, T, H), jnp.float32),
        ),
        in_specs=[vmem] * 22,
        out_specs=(vmem, vmem),
    )(
        x_tm, mask, y0s, y1s,
        params["w1x"], params["b1"], params["w1y"], params["w1yp"], w1sum,
        params["w2"], params["b2"], params["w3"], params["b3"],
        params["wih"], params["whh"], bcell,
        params["v1"], params["c1"], params["v2"], params["c2"],
        params["v3"], params["c3"],
    )
    return ys, skips


my_rnn_skip_forward_jit = jax.jit(my_rnn_skip_forward)


def reference_forward(x, x_len_np, y0, y1, params):
    """Pure-numpy, step-by-step replica of the PyTorch loop (for verification)."""
    x = np.asarray(x); y0 = np.asarray(y0); y1 = np.asarray(y1)
    p = {k: np.asarray(v) for k, v in params.items()}
    B, T, Fx = x.shape
    H = p["w2"].shape[0]
    O = p["v3"].shape[1]
    relu = lambda v: np.maximum(v, 0.0)

    W1 = np.concatenate([p["w1x"], p["w1y"], p["w1yp"]], axis=0)  # (Fx+2O, H)
    h = np.zeros((B, H), np.float32)
    y = y1.reshape(B, O).copy()
    yp = y0.reshape(B, O).copy()
    max_len = int(max(x_len_np))
    ys = np.zeros((B, T, O), np.float32)
    skips = np.zeros((B, T, H), np.float32)
    for i in range(max_len):
        xc = np.concatenate([x[:, i, :], y, yp], axis=1)
        e = relu(xc @ W1 + p["b1"])
        e = relu(e @ p["w2"] + p["b2"])
        e = e @ p["w3"] + p["b3"]
        skips[:, i, :] = e
        h = np.tanh(relu(e) @ p["wih"] + p["bih"] + h @ p["whh"] + p["bhh"])
        o = relu(relu(h) @ p["v1"] + p["c1"])
        o = relu(o @ p["v2"] + p["c2"])
        o = o @ p["v3"] + p["c3"]
        ys[:, i, :] = o
        y = o.copy()
        yp = o.copy()
    mask = (np.arange(T)[None, :] < np.asarray(x_len_np)[:, None]).astype(np.float32)
    return ys * mask[:, :, None], skips * mask[:, :, None]


if __name__ == "__main__":
    # Small shapes: batch=4, hidden_size=32, output_size=8,
    # input_size=24 => raw per-step feature dim F_x = input_size - 2*output_size = 8,
    # seq T=6 (total_len), x_len = [6,5,3,2] (decreasing, as pack_padded requires).
    B, T, H, O = 4, 6, 32, 8
    Fx = 8

    key = jax.random.PRNGKey(0)
    ks = jax.random.split(key, 24)

    def w(k, shape, scale=0.1):
        return (scale * jax.random.normal(k, shape)).astype(jnp.float32)

    params = {
        # extract NeuralNet (first Linear split over [x_t | y | y_])
        "w1x": w(ks[0], (Fx, H)), "w1y": w(ks[1], (O, H)), "w1yp": w(ks[2], (O, H)),
        "b1": w(ks[3], (1, H)),
        "w2": w(ks[4], (H, H)), "b2": w(ks[5], (1, H)),
        "w3": w(ks[6], (H, H)), "b3": w(ks[7], (1, H)),
        # tanh RNN cell
        "wih": w(ks[8], (H, H)), "bih": w(ks[9], (1, H)),
        "whh": w(ks[10], (H, H)), "bhh": w(ks[11], (1, H)),
        # output NeuralNet
        "v1": w(ks[12], (H, H)), "c1": w(ks[13], (1, H)),
        "v2": w(ks[14], (H, H)), "c2": w(ks[15], (1, H)),
        "v3": w(ks[16], (H, O)), "c3": w(ks[17], (1, O)),
    }

    x = w(ks[18], (B, T, Fx), scale=1.0)
    y_0 = w(ks[19], (B, 1, O), scale=1.0)
    y_1 = w(ks[20], (B, 1, O), scale=1.0)
    x_len_np = np.array([6, 5, 3, 2], dtype=np.int32)
    x_len = jnp.asarray(x_len_np)

    ys, x_skips = my_rnn_skip_forward_jit(x, x_len, y_0, y_1, params)
    ys = jax.block_until_ready(ys)
    x_skips = jax.block_until_ready(x_skips)

    ys_ref, skips_ref = reference_forward(x, x_len_np, y_0, y_1, params)
    np.testing.assert_allclose(np.asarray(ys), ys_ref, rtol=1e-4, atol=1e-4)
    np.testing.assert_allclose(np.asarray(x_skips), skips_ref, rtol=1e-4, atol=1e-4)

    print("KERNEL_OK")
</pallas_src>

<mosaic_0001>
module attributes {stable_mosaic.version = 11 : i64} {
  func.func @rnn_skip_kernel(%arg0: memref<24x8xf32, #tpu.memory_space<vmem>>, %arg1: memref<24x1xf32, #tpu.memory_space<vmem>>, %arg2: memref<4x8xf32, #tpu.memory_space<vmem>>, %arg3: memref<4x8xf32, #tpu.memory_space<vmem>>, %arg4: memref<8x32xf32, #tpu.memory_space<vmem>>, %arg5: memref<1x32xf32, #tpu.memory_space<vmem>>, %arg6: memref<8x32xf32, #tpu.memory_space<vmem>>, %arg7: memref<8x32xf32, #tpu.memory_space<vmem>>, %arg8: memref<8x32xf32, #tpu.memory_space<vmem>>, %arg9: memref<32x32xf32, #tpu.memory_space<vmem>>, %arg10: memref<1x32xf32, #tpu.memory_space<vmem>>, %arg11: memref<32x32xf32, #tpu.memory_space<vmem>>, %arg12: memref<1x32xf32, #tpu.memory_space<vmem>>, %arg13: memref<32x32xf32, #tpu.memory_space<vmem>>, %arg14: memref<32x32xf32, #tpu.memory_space<vmem>>, %arg15: memref<1x32xf32, #tpu.memory_space<vmem>>, %arg16: memref<32x32xf32, #tpu.memory_space<vmem>>, %arg17: memref<1x32xf32, #tpu.memory_space<vmem>>, %arg18: memref<32x32xf32, #tpu.memory_space<vmem>>, %arg19: memref<1x32xf32, #tpu.memory_space<vmem>>, %arg20: memref<32x8xf32, #tpu.memory_space<vmem>>, %arg21: memref<1x8xf32, #tpu.memory_space<vmem>>, %arg22: memref<4x6x8xf32, #tpu.memory_space<vmem>>, %arg23: memref<4x6x32xf32, #tpu.memory_space<vmem>>) attributes {dimension_semantics = [], scalar_prefetch = 0 : i64, scratch_operands = 0 : i64, tpu.core_type = #tpu.core_type<tc>} {
    %c0 = arith.constant 0 : index
    %c0_0 = arith.constant 0 : index
    %0 = vector.load %arg0[%c0, %c0_0] : memref<24x8xf32, #tpu.memory_space<vmem>>, vector<24x8xf32>
    %c0_1 = arith.constant 0 : index
    %c0_2 = arith.constant 0 : index
    %1 = vector.load %arg4[%c0_1, %c0_2] : memref<8x32xf32, #tpu.memory_space<vmem>>, vector<8x32xf32>
    %cst = arith.constant dense<0.000000e+00> : vector<24x32xf32>
    %2 = tpu.matmul %0, %1, %cst {dimension_numbers = #tpu.dot_dimension_numbers<[1], [0], [0], [1], [0, 0, 1, 1], [], []>} : vector<24x8xf32>, vector<8x32xf32>, vector<24x32xf32> -> vector<24x32xf32>
    %c0_3 = arith.constant 0 : index
    %c0_4 = arith.constant 0 : index
    %3 = vector.load %arg5[%c0_3, %c0_4] : memref<1x32xf32, #tpu.memory_space<vmem>>, vector<1x32xf32>
    %4 = vector.broadcast %3 : vector<1x32xf32> to vector<24x32xf32>
    %5 = arith.addf %2, %4 : vector<24x32xf32>
    %c0_5 = arith.constant 0 : index
    %c0_6 = arith.constant 0 : index
    %6 = vector.load %arg3[%c0_5, %c0_6] : memref<4x8xf32, #tpu.memory_space<vmem>>, vector<4x8xf32>
    %c0_7 = arith.constant 0 : index
    %c0_8 = arith.constant 0 : index
    %7 = vector.load %arg6[%c0_7, %c0_8] : memref<8x32xf32, #tpu.memory_space<vmem>>, vector<8x32xf32>
    %cst_9 = arith.constant dense<0.000000e+00> : vector<4x32xf32>
    %8 = tpu.matmul %6, %7, %cst_9 {dimension_numbers = #tpu.dot_dimension_numbers<[1], [0], [0], [1], [0, 0, 1, 1], [], []>} : vector<4x8xf32>, vector<8x32xf32>, vector<4x32xf32> -> vector<4x32xf32>
    %c0_10 = arith.constant 0 : index
    %c0_11 = arith.constant 0 : index
    %9 = vector.load %arg2[%c0_10, %c0_11] : memref<4x8xf32, #tpu.memory_space<vmem>>, vector<4x8xf32>
    %c0_12 = arith.constant 0 : index
    %c0_13 = arith.constant 0 : index
    %10 = vector.load %arg7[%c0_12, %c0_13] : memref<8x32xf32, #tpu.memory_space<vmem>>, vector<8x32xf32>
    %cst_14 = arith.constant dense<0.000000e+00> : vector<4x32xf32>
    %11 = tpu.matmul %9, %10, %cst_14 {dimension_numbers = #tpu.dot_dimension_numbers<[1], [0], [0], [1], [0, 0, 1, 1], [], []>} : vector<4x8xf32>, vector<8x32xf32>, vector<4x32xf32> -> vector<4x32xf32>
    %12 = arith.addf %8, %11 : vector<4x32xf32>
    %c0_15 = arith.constant 0 : index
    %c0_16 = arith.constant 0 : index
    %13 = vector.load %arg1[%c0_15, %c0_16] : memref<24x1xf32, #tpu.memory_space<vmem>>, vector<24x1xf32>
    %c0_17 = arith.constant 0 : index
    %c0_18 = arith.constant 0 : index
    %14 = vector.load %arg10[%c0_17, %c0_18] : memref<1x32xf32, #tpu.memory_space<vmem>>, vector<1x32xf32>
    %15 = vector.shape_cast %14 : vector<1x32xf32> to vector<1x32xf32>
    %16 = vector.broadcast %15 : vector<1x32xf32> to vector<4x32xf32>
    %c0_19 = arith.constant 0 : index
    %c0_20 = arith.constant 0 : index
    %17 = vector.load %arg12[%c0_19, %c0_20] : memref<1x32xf32, #tpu.memory_space<vmem>>, vector<1x32xf32>
    %18 = vector.shape_cast %17 : vector<1x32xf32> to vector<1x32xf32>
    %19 = vector.broadcast %18 : vector<1x32xf32> to vector<4x32xf32>
    %c0_21 = arith.constant 0 : index
    %c0_22 = arith.constant 0 : index
    %20 = vector.load %arg15[%c0_21, %c0_22] : memref<1x32xf32, #tpu.memory_space<vmem>>, vector<1x32xf32>
    %21 = vector.shape_cast %20 : vector<1x32xf32> to vector<1x32xf32>
    %22 = vector.broadcast %21 : vector<1x32xf32> to vector<4x32xf32>
    %c0_23 = arith.constant 0 : index
    %c0_24 = arith.constant 0 : index
    %23 = vector.load %arg17[%c0_23, %c0_24] : memref<1x32xf32, #tpu.memory_space<vmem>>, vector<1x32xf32>
    %24 = vector.shape_cast %23 : vector<1x32xf32> to vector<1x32xf32>
    %25 = vector.broadcast %24 : vector<1x32xf32> to vector<4x32xf32>
    %c0_25 = arith.constant 0 : index
    %c0_26 = arith.constant 0 : index
    %26 = vector.load %arg19[%c0_25, %c0_26] : memref<1x32xf32, #tpu.memory_space<vmem>>, vector<1x32xf32>
    %27 = vector.shape_cast %26 : vector<1x32xf32> to vector<1x32xf32>
    %28 = vector.broadcast %27 : vector<1x32xf32> to vector<4x32xf32>
    %c0_27 = arith.constant 0 : index
    %c0_28 = arith.constant 0 : index
    %29 = vector.load %arg21[%c0_27, %c0_28] : memref<1x8xf32, #tpu.memory_space<vmem>>, vector<1x8xf32>
    %30 = vector.shape_cast %29 : vector<1x8xf32> to vector<1x8xf32>
    %31 = vector.broadcast %30 : vector<1x8xf32> to vector<4x8xf32>
    %cst_29 = arith.constant 0.000000e+00 : f32
    %32 = vector.broadcast %cst_29 : f32 to vector<4x32xf32>
    %33 = vector.extract_strided_slice %5 {offsets = [0, 0], sizes = [4, 32], strides = [1, 1]} : vector<24x32xf32> to vector<4x32xf32>
    %34 = arith.addf %33, %12 : vector<4x32xf32>
    %cst_30 = arith.constant 0.000000e+00 : f32
    %35 = vector.broadcast %cst_30 : f32 to vector<4x32xf32>
    %36 = arith.maximumf %34, %35 : vector<4x32xf32>
    %c0_31 = arith.constant 0 : index
    %c0_32 = arith.constant 0 : index
    %37 = vector.load %arg9[%c0_31, %c0_32] : memref<32x32xf32, #tpu.memory_space<vmem>>, vector<32x32xf32>
    %cst_33 = arith.constant dense<0.000000e+00> : vector<4x32xf32>
    %38 = tpu.matmul %36, %37, %cst_33 {dimension_numbers = #tpu.dot_dimension_numbers<[1], [0], [0], [1], [0, 0, 1, 1], [], []>} : vector<4x32xf32>, vector<32x32xf32>, vector<4x32xf32> -> vector<4x32xf32>
    %39 = arith.addf %38, %16 : vector<4x32xf32>
    %cst_34 = arith.constant 0.000000e+00 : f32
    %40 = vector.broadcast %cst_34 : f32 to vector<4x32xf32>
    %41 = arith.maximumf %39, %40 : vector<4x32xf32>
    %c0_35 = arith.constant 0 : index
    %c0_36 = arith.constant 0 : index
    %42 = vector.load %arg11[%c0_35, %c0_36] : memref<32x32xf32, #tpu.memory_space<vmem>>, vector<32x32xf32>
    %cst_37 = arith.constant dense<0.000000e+00> : vector<4x32xf32>
    %43 = tpu.matmul %41, %42, %cst_37 {dimension_numbers = #tpu.dot_dimension_numbers<[1], [0], [0], [1], [0, 0, 1, 1], [], []>} : vector<4x32xf32>, vector<32x32xf32>, vector<4x32xf32> -> vector<4x32xf32>
    %44 = arith.addf %43, %19 : vector<4x32xf32>
    %cst_38 = arith.constant 0.000000e+00 : f32
    %45 = vector.broadcast %cst_38 : f32 to vector<4x32xf32>
    %46 = arith.maximumf %44, %45 : vector<4x32xf32>
    %c0_39 = arith.constant 0 : index
    %c0_40 = arith.constant 0 : index
    %47 = vector.load %arg13[%c0_39, %c0_40] : memref<32x32xf32, #tpu.memory_space<vmem>>, vector<32x32xf32>
    %cst_41 = arith.constant dense<0.000000e+00> : vector<4x32xf32>
    %48 = tpu.matmul %46, %47, %cst_41 {dimension_numbers = #tpu.dot_dimension_numbers<[1], [0], [0], [1], [0, 0, 1, 1], [], []>} : vector<4x32xf32>, vector<32x32xf32>, vector<4x32xf32> -> vector<4x32xf32>
    %c0_42 = arith.constant 0 : index
    %c0_43 = arith.constant 0 : index
    %49 = vector.load %arg14[%c0_42, %c0_43] : memref<32x32xf32, #tpu.memory_space<vmem>>, vector<32x32xf32>
    %cst_44 = arith.constant dense<0.000000e+00> : vector<4x32xf32>
    %50 = tpu.matmul %32, %49, %cst_44 {dimension_numbers = #tpu.dot_dimension_numbers<[1], [0], [0], [1], [0, 0, 1, 1], [], []>} : vector<4x32xf32>, vector<32x32xf32>, vector<4x32xf32> -> vector<4x32xf32>
    %51 = arith.addf %48, %50 : vector<4x32xf32>
    %52 = arith.addf %51, %22 : vector<4x32xf32>
    %53 = math.tanh %52 : vector<4x32xf32>
    %cst_45 = arith.constant 0.000000e+00 : f32
    %54 = vector.broadcast %cst_45 : f32 to vector<4x32xf32>
    %55 = arith.maximumf %53, %54 : vector<4x32xf32>
    %c0_46 = arith.constant 0 : index
    %c0_47 = arith.constant 0 : index
    %56 = vector.load %arg16[%c0_46, %c0_47] : memref<32x32xf32, #tpu.memory_space<vmem>>, vector<32x32xf32>
    %cst_48 = arith.constant dense<0.000000e+00> : vector<4x32xf32>
    %57 = tpu.matmul %55, %56, %cst_48 {dimension_numbers = #tpu.dot_dimension_numbers<[1], [0], [0], [1], [0, 0, 1, 1], [], []>} : vector<4x32xf32>, vector<32x32xf32>, vector<4x32xf32> -> vector<4x32xf32>
    %58 = arith.addf %57, %25 : vector<4x32xf32>
    %cst_49 = arith.constant 0.000000e+00 : f32
    %59 = vector.broadcast %cst_49 : f32 to vector<4x32xf32>
    %60 = arith.maximumf %58, %59 : vector<4x32xf32>
    %c0_50 = arith.constant 0 : index
    %c0_51 = arith.constant 0 : index
    %61 = vector.load %arg18[%c0_50, %c0_51] : memref<32x32xf32, #tpu.memory_space<vmem>>, vector<32x32xf32>
    %cst_52 = arith.constant dense<0.000000e+00> : vector<4x32xf32>
    %62 = tpu.matmul %60, %61, %cst_52 {dimension_numbers = #tpu.dot_dimension_numbers<[1], [0], [0], [1], [0, 0, 1, 1], [], []>} : vector<4x32xf32>, vector<32x32xf32>, vector<4x32xf32> -> vector<4x32xf32>
    %63 = arith.addf %62, %28 : vector<4x32xf32>
    %cst_53 = arith.constant 0.000000e+00 : f32
    %64 = vector.broadcast %cst_53 : f32 to vector<4x32xf32>
    %65 = arith.maximumf %63, %64 : vector<4x32xf32>
    %c0_54 = arith.constant 0 : index
    %c0_55 = arith.constant 0 : index
    %66 = vector.load %arg20[%c0_54, %c0_55] : memref<32x8xf32, #tpu.memory_space<vmem>>, vector<32x8xf32>
    %cst_56 = arith.constant dense<0.000000e+00> : vector<4x8xf32>
    %67 = tpu.matmul %65, %66, %cst_56 {dimension_numbers = #tpu.dot_dimension_numbers<[1], [0], [0], [1], [0, 0, 1, 1], [], []>} : vector<4x32xf32>, vector<32x8xf32>, vector<4x8xf32> -> vector<4x8xf32>
    %68 = arith.addf %67, %31 : vector<4x8xf32>
    %69 = vector.extract_strided_slice %13 {offsets = [0, 0], sizes = [4, 1], strides = [1, 1]} : vector<24x1xf32> to vector<4x1xf32>
    %70 = vector.broadcast %69 : vector<4x1xf32> to vector<4x8xf32>
    %71 = arith.mulf %68, %70 : vector<4x8xf32>
    %c0_57 = arith.constant 0 : index
    %c0_58 = arith.constant 0 : index
    %c0_59 = arith.constant 0 : index
    %72 = vector.load %arg22[%c0_57, %c0_58, %c0_59] : memref<4x6x8xf32, #tpu.memory_space<vmem>>, vector<4x1x8xf32>
    %73 = vector.shape_cast %72 : vector<4x1x8xf32> to vector<4x8xf32>
    %74 = vector.shape_cast %71 : vector<4x8xf32> to vector<4x1x8xf32>
    tpu.vector_store %arg22[%c0_57, %c0_58, %c0_59], %74 {strides = array<i32>} : memref<4x6x8xf32, #tpu.memory_space<vmem>>, vector<4x1x8xf32>,
    %75 = vector.broadcast %69 : vector<4x1xf32> to vector<4x32xf32>
    %76 = arith.mulf %44, %75 : vector<4x32xf32>
    %c0_60 = arith.constant 0 : index
    %c0_61 = arith.constant 0 : index
    %c0_62 = arith.constant 0 : index
    %77 = vector.load %arg23[%c0_60, %c0_61, %c0_62] : memref<4x6x32xf32, #tpu.memory_space<vmem>>, vector<4x1x32xf32>
    %78 = vector.shape_cast %77 : vector<4x1x32xf32> to vector<4x32xf32>
    %79 = vector.shape_cast %76 : vector<4x32xf32> to vector<4x1x32xf32>
    tpu.vector_store %arg23[%c0_60, %c0_61, %c0_62], %79 {strides = array<i32>} : memref<4x6x32xf32, #tpu.memory_space<vmem>>, vector<4x1x32xf32>,
    %80 = vector.extract_strided_slice %5 {offsets = [4, 0], sizes = [4, 32], strides = [1, 1]} : vector<24x32xf32> to vector<4x32xf32>
    %c0_63 = arith.constant 0 : index
    %c0_64 = arith.constant 0 : index
    %81 = vector.load %arg8[%c0_63, %c0_64] : memref<8x32xf32, #tpu.memory_space<vmem>>, vector<8x32xf32>
    %cst_65 = arith.constant dense<0.000000e+00> : vector<4x32xf32>
    %82 = tpu.matmul %68, %81, %cst_65 {dimension_numbers = #tpu.dot_dimension_numbers<[1], [0], [0], [1], [0, 0, 1, 1], [], []>} : vector<4x8xf32>, vector<8x32xf32>, vector<4x32xf32> -> vector<4x32xf32>
    %83 = arith.addf %80, %82 : vector<4x32xf32>
    %cst_66 = arith.constant 0.000000e+00 : f32
    %84 = vector.broadcast %cst_66 : f32 to vector<4x32xf32>
    %85 = arith.maximumf %83, %84 : vector<4x32xf32>
    %c0_67 = arith.constant 0 : index
    %c0_68 = arith.constant 0 : index
    %86 = vector.load %arg9[%c0_67, %c0_68] : memref<32x32xf32, #tpu.memory_space<vmem>>, vector<32x32xf32>
    %cst_69 = arith.constant dense<0.000000e+00> : vector<4x32xf32>
    %87 = tpu.matmul %85, %86, %cst_69 {dimension_numbers = #tpu.dot_dimension_numbers<[1], [0], [0], [1], [0, 0, 1, 1], [], []>} : vector<4x32xf32>, vector<32x32xf32>, vector<4x32xf32> -> vector<4x32xf32>
    %88 = arith.addf %87, %16 : vector<4x32xf32>
    %cst_70 = arith.constant 0.000000e+00 : f32
    %89 = vector.broadcast %cst_70 : f32 to vector<4x32xf32>
    %90 = arith.maximumf %88, %89 : vector<4x32xf32>
    %c0_71 = arith.constant 0 : index
    %c0_72 = arith.constant 0 : index
    %91 = vector.load %arg11[%c0_71, %c0_72] : memref<32x32xf32, #tpu.memory_space<vmem>>, vector<32x32xf32>
    %cst_73 = arith.constant dense<0.000000e+00> : vector<4x32xf32>
    %92 = tpu.matmul %90, %91, %cst_73 {dimension_numbers = #tpu.dot_dimension_numbers<[1], [0], [0], [1], [0, 0, 1, 1], [], []>} : vector<4x32xf32>, vector<32x32xf32>, vector<4x32xf32> -> vector<4x32xf32>
    %93 = arith.addf %92, %19 : vector<4x32xf32>
    %cst_74 = arith.constant 0.000000e+00 : f32
    %94 = vector.broadcast %cst_74 : f32 to vector<4x32xf32>
    %95 = arith.maximumf %93, %94 : vector<4x32xf32>
    %c0_75 = arith.constant 0 : index
    %c0_76 = arith.constant 0 : index
    %96 = vector.load %arg13[%c0_75, %c0_76] : memref<32x32xf32, #tpu.memory_space<vmem>>, vector<32x32xf32>
    %cst_77 = arith.constant dense<0.000000e+00> : vector<4x32xf32>
    %97 = tpu.matmul %95, %96, %cst_77 {dimension_numbers = #tpu.dot_dimension_numbers<[1], [0], [0], [1], [0, 0, 1, 1], [], []>} : vector<4x32xf32>, vector<32x32xf32>, vector<4x32xf32> -> vector<4x32xf32>
    %c0_78 = arith.constant 0 : index
    %c0_79 = arith.constant 0 : index
    %98 = vector.load %arg14[%c0_78, %c0_79] : memref<32x32xf32, #tpu.memory_space<vmem>>, vector<32x32xf32>
    %cst_80 = arith.constant dense<0.000000e+00> : vector<4x32xf32>
    %99 = tpu.matmul %53, %98, %cst_80 {dimension_numbers = #tpu.dot_dimension_numbers<[1], [0], [0], [1], [0, 0, 1, 1], [], []>} : vector<4x32xf32>, vector<32x32xf32>, vector<4x32xf32> -> vector<4x32xf32>
    %100 = arith.addf %97, %99 : vector<4x32xf32>
    %101 = arith.addf %100, %22 : vector<4x32xf32>
    %102 = math.tanh %101 : vector<4x32xf32>
    %cst_81 = arith.constant 0.000000e+00 : f32
    %103 = vector.broadcast %cst_81 : f32 to vector<4x32xf32>
    %104 = arith.maximumf %102, %103 : vector<4x32xf32>
    %c0_82 = arith.constant 0 : index
    %c0_83 = arith.constant 0 : index
    %105 = vector.load %arg16[%c0_82, %c0_83] : memref<32x32xf32, #tpu.memory_space<vmem>>, vector<32x32xf32>
    %cst_84 = arith.constant dense<0.000000e+00> : vector<4x32xf32>
    %106 = tpu.matmul %104, %105, %cst_84 {dimension_numbers = #tpu.dot_dimension_numbers<[1], [0], [0], [1], [0, 0, 1, 1], [], []>} : vector<4x32xf32>, vector<32x32xf32>, vector<4x32xf32> -> vector<4x32xf32>
    %107 = arith.addf %106, %25 : vector<4x32xf32>
    %cst_85 = arith.constant 0.000000e+00 : f32
    %108 = vector.broadcast %cst_85 : f32 to vector<4x32xf32>
    %109 = arith.maximumf %107, %108 : vector<4x32xf32>
    %c0_86 = arith.constant 0 : index
    %c0_87 = arith.constant 0 : index
    %110 = vector.load %arg18[%c0_86, %c0_87] : memref<32x32xf32, #tpu.memory_space<vmem>>, vector<32x32xf32>
    %cst_88 = arith.constant dense<0.000000e+00> : vector<4x32xf32>
    %111 = tpu.matmul %109, %110, %cst_88 {dimension_numbers = #tpu.dot_dimension_numbers<[1], [0], [0], [1], [0, 0, 1, 1], [], []>} : vector<4x32xf32>, vector<32x32xf32>, vector<4x32xf32> -> vector<4x32xf32>
    %112 = arith.addf %111, %28 : vector<4x32xf32>
    %cst_89 = arith.constant 0.000000e+00 : f32
    %113 = vector.broadcast %cst_89 : f32 to vector<4x32xf32>
    %114 = arith.maximumf %112, %113 : vector<4x32xf32>
    %c0_90 = arith.constant 0 : index
    %c0_91 = arith.constant 0 : index
    %115 = vector.load %arg20[%c0_90, %c0_91] : memref<32x8xf32, #tpu.memory_space<vmem>>, vector<32x8xf32>
    %cst_92 = arith.constant dense<0.000000e+00> : vector<4x8xf32>
    %116 = tpu.matmul %114, %115, %cst_92 {dimension_numbers = #tpu.dot_dimension_numbers<[1], [0], [0], [1], [0, 0, 1, 1], [], []>} : vector<4x32xf32>, vector<32x8xf32>, vector<4x8xf32> -> vector<4x8xf32>
    %117 = arith.addf %116, %31 : vector<4x8xf32>
    %118 = vector.extract_strided_slice %13 {offsets = [4, 0], sizes = [4, 1], strides = [1, 1]} : vector<24x1xf32> to vector<4x1xf32>
    %119 = vector.broadcast %118 : vector<4x1xf32> to vector<4x8xf32>
    %120 = arith.mulf %117, %119 : vector<4x8xf32>
    %c0_93 = arith.constant 0 : index
    %c1 = arith.constant 1 : index
    %c0_94 = arith.constant 0 : index
    %121 = vector.load %arg22[%c0_93, %c1, %c0_94] : memref<4x6x8xf32, #tpu.memory_space<vmem>>, vector<4x1x8xf32>
    %122 = vector.shape_cast %121 : vector<4x1x8xf32> to vector<4x8xf32>
    %123 = vector.shape_cast %120 : vector<4x8xf32> to vector<4x1x8xf32>
    tpu.vector_store %arg22[%c0_93, %c1, %c0_94], %123 {strides = array<i32>} : memref<4x6x8xf32, #tpu.memory_space<vmem>>, vector<4x1x8xf32>,
    %124 = vector.broadcast %118 : vector<4x1xf32> to vector<4x32xf32>
    %125 = arith.mulf %93, %124 : vector<4x32xf32>
    %c0_95 = arith.constant 0 : index
    %c1_96 = arith.constant 1 : index
    %c0_97 = arith.constant 0 : index
    %126 = vector.load %arg23[%c0_95, %c1_96, %c0_97] : memref<4x6x32xf32, #tpu.memory_space<vmem>>, vector<4x1x32xf32>
    %127 = vector.shape_cast %126 : vector<4x1x32xf32> to vector<4x32xf32>
    %128 = vector.shape_cast %125 : vector<4x32xf32> to vector<4x1x32xf32>
    tpu.vector_store %arg23[%c0_95, %c1_96, %c0_97], %128 {strides = array<i32>} : memref<4x6x32xf32, #tpu.memory_space<vmem>>, vector<4x1x32xf32>,
    %129 = vector.extract_strided_slice %5 {offsets = [8, 0], sizes = [4, 32], strides = [1, 1]} : vector<24x32xf32> to vector<4x32xf32>
    %c0_98 = arith.constant 0 : index
    %c0_99 = arith.constant 0 : index
    %130 = vector.load %arg8[%c0_98, %c0_99] : memref<8x32xf32, #tpu.memory_space<vmem>>, vector<8x32xf32>
    %cst_100 = arith.constant dense<0.000000e+00> : vector<4x32xf32>
    %131 = tpu.matmul %117, %130, %cst_100 {dimension_numbers = #tpu.dot_dimension_numbers<[1], [0], [0], [1], [0, 0, 1, 1], [], []>} : vector<4x8xf32>, vector<8x32xf32>, vector<4x32xf32> -> vector<4x32xf32>
    %132 = arith.addf %129, %131 : vector<4x32xf32>
    %cst_101 = arith.constant 0.000000e+00 : f32
    %133 = vector.broadcast %cst_101 : f32 to vector<4x32xf32>
    %134 = arith.maximumf %132, %133 : vector<4x32xf32>
    %c0_102 = arith.constant 0 : index
    %c0_103 = arith.constant 0 : index
    %135 = vector.load %arg9[%c0_102, %c0_103] : memref<32x32xf32, #tpu.memory_space<vmem>>, vector<32x32xf32>
    %cst_104 = arith.constant dense<0.000000e+00> : vector<4x32xf32>
    %136 = tpu.matmul %134, %135, %cst_104 {dimension_numbers = #tpu.dot_dimension_numbers<[1], [0], [0], [1], [0, 0, 1, 1], [], []>} : vector<4x32xf32>, vector<32x32xf32>, vector<4x32xf32> -> vector<4x32xf32>
    %137 = arith.addf %136, %16 : vector<4x32xf32>
    %cst_105 = arith.constant 0.000000e+00 : f32
    %138 = vector.broadcast %cst_105 : f32 to vector<4x32xf32>
    %139 = arith.maximumf %137, %138 : vector<4x32xf32>
    %c0_106 = arith.constant 0 : index
    %c0_107 = arith.constant 0 : index
    %140 = vector.load %arg11[%c0_106, %c0_107] : memref<32x32xf32, #tpu.memory_space<vmem>>, vector<32x32xf32>
    %cst_108 = arith.constant dense<0.000000e+00> : vector<4x32xf32>
    %141 = tpu.matmul %139, %140, %cst_108 {dimension_numbers = #tpu.dot_dimension_numbers<[1], [0], [0], [1], [0, 0, 1, 1], [], []>} : vector<4x32xf32>, vector<32x32xf32>, vector<4x32xf32> -> vector<4x32xf32>
    %142 = arith.addf %141, %19 : vector<4x32xf32>
    %cst_109 = arith.constant 0.000000e+00 : f32
    %143 = vector.broadcast %cst_109 : f32 to vector<4x32xf32>
    %144 = arith.maximumf %142, %143 : vector<4x32xf32>
    %c0_110 = arith.constant 0 : index
    %c0_111 = arith.constant 0 : index
    %145 = vector.load %arg13[%c0_110, %c0_111] : memref<32x32xf32, #tpu.memory_space<vmem>>, vector<32x32xf32>
    %cst_112 = arith.constant dense<0.000000e+00> : vector<4x32xf32>
    %146 = tpu.matmul %144, %145, %cst_112 {dimension_numbers = #tpu.dot_dimension_numbers<[1], [0], [0], [1], [0, 0, 1, 1], [], []>} : vector<4x32xf32>, vector<32x32xf32>, vector<4x32xf32> -> vector<4x32xf32>
    %c0_113 = arith.constant 0 : index
    %c0_114 = arith.constant 0 : index
    %147 = vector.load %arg14[%c0_113, %c0_114] : memref<32x32xf32, #tpu.memory_space<vmem>>, vector<32x32xf32>
    %cst_115 = arith.constant dense<0.000000e+00> : vector<4x32xf32>
    %148 = tpu.matmul %102, %147, %cst_115 {dimension_numbers = #tpu.dot_dimension_numbers<[1], [0], [0], [1], [0, 0, 1, 1], [], []>} : vector<4x32xf32>, vector<32x32xf32>, vector<4x32xf32> -> vector<4x32xf32>
    %149 = arith.addf %146, %148 : vector<4x32xf32>
    %150 = arith.addf %149, %22 : vector<4x32xf32>
    %151 = math.tanh %150 : vector<4x32xf32>
    %cst_116 = arith.constant 0.000000e+00 : f32
    %152 = vector.broadcast %cst_116 : f32 to vector<4x32xf32>
    %153 = arith.maximumf %151, %152 : vector<4x32xf32>
    %c0_117 = arith.constant 0 : index
    %c0_118 = arith.constant 0 : index
    %154 = vector.load %arg16[%c0_117, %c0_118] : memref<32x32xf32, #tpu.memory_space<vmem>>, vector<32x32xf32>
    %cst_119 = arith.constant dense<0.000000e+00> : vector<4x32xf32>
    %155 = tpu.matmul %153, %154, %cst_119 {dimension_numbers = #tpu.dot_dimension_numbers<[1], [0], [0], [1], [0, 0, 1, 1], [], []>} : vector<4x32xf32>, vector<32x32xf32>, vector<4x32xf32> -> vector<4x32xf32>
    %156 = arith.addf %155, %25 : vector<4x32xf32>
    %cst_120 = arith.constant 0.000000e+00 : f32
    %157 = vector.broadcast %cst_120 : f32 to vector<4x32xf32>
    %158 = arith.maximumf %156, %157 : vector<4x32xf32>
    %c0_121 = arith.constant 0 : index
    %c0_122 = arith.constant 0 : index
    %159 = vector.load %arg18[%c0_121, %c0_122] : memref<32x32xf32, #tpu.memory_space<vmem>>, vector<32x32xf32>
    %cst_123 = arith.constant dense<0.000000e+00> : vector<4x32xf32>
    %160 = tpu.matmul %158, %159, %cst_123 {dimension_numbers = #tpu.dot_dimension_numbers<[1], [0], [0], [1], [0, 0, 1, 1], [], []>} : vector<4x32xf32>, vector<32x32xf32>, vector<4x32xf32> -> vector<4x32xf32>
    %161 = arith.addf %160, %28 : vector<4x32xf32>
    %cst_124 = arith.constant 0.000000e+00 : f32
    %162 = vector.broadcast %cst_124 : f32 to vector<4x32xf32>
    %163 = arith.maximumf %161, %162 : vector<4x32xf32>
    %c0_125 = arith.constant 0 : index
    %c0_126 = arith.constant 0 : index
    %164 = vector.load %arg20[%c0_125, %c0_126] : memref<32x8xf32, #tpu.memory_space<vmem>>, vector<32x8xf32>
    %cst_127 = arith.constant dense<0.000000e+00> : vector<4x8xf32>
    %165 = tpu.matmul %163, %164, %cst_127 {dimension_numbers = #tpu.dot_dimension_numbers<[1], [0], [0], [1], [0, 0, 1, 1], [], []>} : vector<4x32xf32>, vector<32x8xf32>, vector<4x8xf32> -> vector<4x8xf32>
    %166 = arith.addf %165, %31 : vector<4x8xf32>
    %167 = vector.extract_strided_slice %13 {offsets = [8, 0], sizes = [4, 1], strides = [1, 1]} : vector<24x1xf32> to vector<4x1xf32>
    %168 = vector.broadcast %167 : vector<4x1xf32> to vector<4x8xf32>
    %169 = arith.mulf %166, %168 : vector<4x8xf32>
    %c0_128 = arith.constant 0 : index
    %c2 = arith.constant 2 : index
    %c0_129 = arith.constant 0 : index
    %170 = vector.load %arg22[%c0_128, %c2, %c0_129] : memref<4x6x8xf32, #tpu.memory_space<vmem>>, vector<4x1x8xf32>
    %171 = vector.shape_cast %170 : vector<4x1x8xf32> to vector<4x8xf32>
    %172 = vector.shape_cast %169 : vector<4x8xf32> to vector<4x1x8xf32>
    tpu.vector_store %arg22[%c0_128, %c2, %c0_129], %172 {strides = array<i32>} : memref<4x6x8xf32, #tpu.memory_space<vmem>>, vector<4x1x8xf32>,
    %173 = vector.broadcast %167 : vector<4x1xf32> to vector<4x32xf32>
    %174 = arith.mulf %142, %173 : vector<4x32xf32>
    %c0_130 = arith.constant 0 : index
    %c2_131 = arith.constant 2 : index
    %c0_132 = arith.constant 0 : index
    %175 = vector.load %arg23[%c0_130, %c2_131, %c0_132] : memref<4x6x32xf32, #tpu.memory_space<vmem>>, vector<4x1x32xf32>
    %176 = vector.shape_cast %175 : vector<4x1x32xf32> to vector<4x32xf32>
    %177 = vector.shape_cast %174 : vector<4x32xf32> to vector<4x1x32xf32>
    tpu.vector_store %arg23[%c0_130, %c2_131, %c0_132], %177 {strides = array<i32>} : memref<4x6x32xf32, #tpu.memory_space<vmem>>, vector<4x1x32xf32>,
    %178 = vector.extract_strided_slice %5 {offsets = [12, 0], sizes = [4, 32], strides = [1, 1]} : vector<24x32xf32> to vector<4x32xf32>
    %c0_133 = arith.constant 0 : index
    %c0_134 = arith.constant 0 : index
    %179 = vector.load %arg8[%c0_133, %c0_134] : memref<8x32xf32, #tpu.memory_space<vmem>>, vector<8x32xf32>
    %cst_135 = arith.constant dense<0.000000e+00> : vector<4x32xf32>
    %180 = tpu.matmul %166, %179, %cst_135 {dimension_numbers = #tpu.dot_dimension_numbers<[1], [0], [0], [1], [0, 0, 1, 1], [], []>} : vector<4x8xf32>, vector<8x32xf32>, vector<4x32xf32> -> vector<4x32xf32>
    %181 = arith.addf %178, %180 : vector<4x32xf32>
    %cst_136 = arith.constant 0.000000e+00 : f32
    %182 = vector.broadcast %cst_136 : f32 to vector<4x32xf32>
    %183 = arith.maximumf %181, %182 : vector<4x32xf32>
    %c0_137 = arith.constant 0 : index
    %c0_138 = arith.constant 0 : index
    %184 = vector.load %arg9[%c0_137, %c0_138] : memref<32x32xf32, #tpu.memory_space<vmem>>, vector<32x32xf32>
    %cst_139 = arith.constant dense<0.000000e+00> : vector<4x32xf32>
    %185 = tpu.matmul %183, %184, %cst_139 {dimension_numbers = #tpu.dot_dimension_numbers<[1], [0], [0], [1], [0, 0, 1, 1], [], []>} : vector<4x32xf32>, vector<32x32xf32>, vector<4x32xf32> -> vector<4x32xf32>
    %186 = arith.addf %185, %16 : vector<4x32xf32>
    %cst_140 = arith.constant 0.000000e+00 : f32
    %187 = vector.broadcast %cst_140 : f32 to vector<4x32xf32>
    %188 = arith.maximumf %186, %187 : vector<4x32xf32>
    %c0_141 = arith.constant 0 : index
    %c0_142 = arith.constant 0 : index
    %189 = vector.load %arg11[%c0_141, %c0_142] : memref<32x32xf32, #tpu.memory_space<vmem>>, vector<32x32xf32>
    %cst_143 = arith.constant dense<0.000000e+00> : vector<4x32xf32>
    %190 = tpu.matmul %188, %189, %cst_143 {dimension_numbers = #tpu.dot_dimension_numbers<[1], [0], [0], [1], [0, 0, 1, 1], [], []>} : vector<4x32xf32>, vector<32x32xf32>, vector<4x32xf32> -> vector<4x32xf32>
    %191 = arith.addf %190, %19 : vector<4x32xf32>
    %cst_144 = arith.constant 0.000000e+00 : f32
    %192 = vector.broadcast %cst_144 : f32 to vector<4x32xf32>
    %193 = arith.maximumf %191, %192 : vector<4x32xf32>
    %c0_145 = arith.constant 0 : index
    %c0_146 = arith.constant 0 : index
    %194 = vector.load %arg13[%c0_145, %c0_146] : memref<32x32xf32, #tpu.memory_space<vmem>>, vector<32x32xf32>
    %cst_147 = arith.constant dense<0.000000e+00> : vector<4x32xf32>
    %195 = tpu.matmul %193, %194, %cst_147 {dimension_numbers = #tpu.dot_dimension_numbers<[1], [0], [0], [1], [0, 0, 1, 1], [], []>} : vector<4x32xf32>, vector<32x32xf32>, vector<4x32xf32> -> vector<4x32xf32>
    %c0_148 = arith.constant 0 : index
    %c0_149 = arith.constant 0 : index
    %196 = vector.load %arg14[%c0_148, %c0_149] : memref<32x32xf32, #tpu.memory_space<vmem>>, vector<32x32xf32>
    %cst_150 = arith.constant dense<0.000000e+00> : vector<4x32xf32>
    %197 = tpu.matmul %151, %196, %cst_150 {dimension_numbers = #tpu.dot_dimension_numbers<[1], [0], [0], [1], [0, 0, 1, 1], [], []>} : vector<4x32xf32>, vector<32x32xf32>, vector<4x32xf32> -> vector<4x32xf32>
    %198 = arith.addf %195, %197 : vector<4x32xf32>
    %199 = arith.addf %198, %22 : vector<4x32xf32>
    %200 = math.tanh %199 : vector<4x32xf32>
    %cst_151 = arith.constant 0.000000e+00 : f32
    %201 = vector.broadcast %cst_151 : f32 to vector<4x32xf32>
    %202 = arith.maximumf %200, %201 : vector<4x32xf32>
    %c0_152 = arith.constant 0 : index
    %c0_153 = arith.constant 0 : index
    %203 = vector.load %arg16[%c0_152, %c0_153] : memref<32x32xf32, #tpu.memory_space<vmem>>, vector<32x32xf32>
    %cst_154 = arith.constant dense<0.000000e+00> : vector<4x32xf32>
    %204 = tpu.matmul %202, %203, %cst_154 {dimension_numbers = #tpu.dot_dimension_numbers<[1], [0], [0], [1], [0, 0, 1, 1], [], []>} : vector<4x32xf32>, vector<32x32xf32>, vector<4x32xf32> -> vector<4x32xf32>
    %205 = arith.addf %204, %25 : vector<4x32xf32>
    %cst_155 = arith.constant 0.000000e+00 : f32
    %206 = vector.broadcast %cst_155 : f32 to vector<4x32xf32>
    %207 = arith.maximumf %205, %206 : vector<4x32xf32>
    %c0_156 = arith.constant 0 : index
    %c0_157 = arith.constant 0 : index
    %208 = vector.load %arg18[%c0_156, %c0_157] : memref<32x32xf32, #tpu.memory_space<vmem>>, vector<32x32xf32>
    %cst_158 = arith.constant dense<0.000000e+00> : vector<4x32xf32>
    %209 = tpu.matmul %207, %208, %cst_158 {dimension_numbers = #tpu.dot_dimension_numbers<[1], [0], [0], [1], [0, 0, 1, 1], [], []>} : vector<4x32xf32>, vector<32x32xf32>, vector<4x32xf32> -> vector<4x32xf32>
    %210 = arith.addf %209, %28 : vector<4x32xf32>
    %cst_159 = arith.constant 0.000000e+00 : f32
    %211 = vector.broadcast %cst_159 : f32 to vector<4x32xf32>
    %212 = arith.maximumf %210, %211 : vector<4x32xf32>
    %c0_160 = arith.constant 0 : index
    %c0_161 = arith.constant 0 : index
    %213 = vector.load %arg20[%c0_160, %c0_161] : memref<32x8xf32, #tpu.memory_space<vmem>>, vector<32x8xf32>
    %cst_162 = arith.constant dense<0.000000e+00> : vector<4x8xf32>
    %214 = tpu.matmul %212, %213, %cst_162 {dimension_numbers = #tpu.dot_dimension_numbers<[1], [0], [0], [1], [0, 0, 1, 1], [], []>} : vector<4x32xf32>, vector<32x8xf32>, vector<4x8xf32> -> vector<4x8xf32>
    %215 = arith.addf %214, %31 : vector<4x8xf32>
    %216 = vector.extract_strided_slice %13 {offsets = [12, 0], sizes = [4, 1], strides = [1, 1]} : vector<24x1xf32> to vector<4x1xf32>
    %217 = vector.broadcast %216 : vector<4x1xf32> to vector<4x8xf32>
    %218 = arith.mulf %215, %217 : vector<4x8xf32>
    %c0_163 = arith.constant 0 : index
    %c3 = arith.constant 3 : index
    %c0_164 = arith.constant 0 : index
    %219 = vector.load %arg22[%c0_163, %c3, %c0_164] : memref<4x6x8xf32, #tpu.memory_space<vmem>>, vector<4x1x8xf32>
    %220 = vector.shape_cast %219 : vector<4x1x8xf32> to vector<4x8xf32>
    %221 = vector.shape_cast %218 : vector<4x8xf32> to vector<4x1x8xf32>
    tpu.vector_store %arg22[%c0_163, %c3, %c0_164], %221 {strides = array<i32>} : memref<4x6x8xf32, #tpu.memory_space<vmem>>, vector<4x1x8xf32>,
    %222 = vector.broadcast %216 : vector<4x1xf32> to vector<4x32xf32>
    %223 = arith.mulf %191, %222 : vector<4x32xf32>
    %c0_165 = arith.constant 0 : index
    %c3_166 = arith.constant 3 : index
    %c0_167 = arith.constant 0 : index
    %224 = vector.load %arg23[%c0_165, %c3_166, %c0_167] : memref<4x6x32xf32, #tpu.memory_space<vmem>>, vector<4x1x32xf32>
    %225 = vector.shape_cast %224 : vector<4x1x32xf32> to vector<4x32xf32>
    %226 = vector.shape_cast %223 : vector<4x32xf32> to vector<4x1x32xf32>
    tpu.vector_store %arg23[%c0_165, %c3_166, %c0_167], %226 {strides = array<i32>} : memref<4x6x32xf32, #tpu.memory_space<vmem>>, vector<4x1x32xf32>,
    %227 = vector.extract_strided_slice %5 {offsets = [16, 0], sizes = [4, 32], strides = [1, 1]} : vector<24x32xf32> to vector<4x32xf32>
    %c0_168 = arith.constant 0 : index
    %c0_169 = arith.constant 0 : index
    %228 = vector.load %arg8[%c0_168, %c0_169] : memref<8x32xf32, #tpu.memory_space<vmem>>, vector<8x32xf32>
    %cst_170 = arith.constant dense<0.000000e+00> : vector<4x32xf32>
    %229 = tpu.matmul %215, %228, %cst_170 {dimension_numbers = #tpu.dot_dimension_numbers<[1], [0], [0], [1], [0, 0, 1, 1], [], []>} : vector<4x8xf32>, vector<8x32xf32>, vector<4x32xf32> -> vector<4x32xf32>
    %230 = arith.addf %227, %229 : vector<4x32xf32>
    %cst_171 = arith.constant 0.000000e+00 : f32
    %231 = vector.broadcast %cst_171 : f32 to vector<4x32xf32>
    %232 = arith.maximumf %230, %231 : vector<4x32xf32>
    %c0_172 = arith.constant 0 : index
    %c0_173 = arith.constant 0 : index
    %233 = vector.load %arg9[%c0_172, %c0_173] : memref<32x32xf32, #tpu.memory_space<vmem>>, vector<32x32xf32>
    %cst_174 = arith.constant dense<0.000000e+00> : vector<4x32xf32>
    %234 = tpu.matmul %232, %233, %cst_174 {dimension_numbers = #tpu.dot_dimension_numbers<[1], [0], [0], [1], [0, 0, 1, 1], [], []>} : vector<4x32xf32>, vector<32x32xf32>, vector<4x32xf32> -> vector<4x32xf32>
    %235 = arith.addf %234, %16 : vector<4x32xf32>
    %cst_175 = arith.constant 0.000000e+00 : f32
    %236 = vector.broadcast %cst_175 : f32 to vector<4x32xf32>
    %237 = arith.maximumf %235, %236 : vector<4x32xf32>
    %c0_176 = arith.constant 0 : index
    %c0_177 = arith.constant 0 : index
    %238 = vector.load %arg11[%c0_176, %c0_177] : memref<32x32xf32, #tpu.memory_space<vmem>>, vector<32x32xf32>
    %cst_178 = arith.constant dense<0.000000e+00> : vector<4x32xf32>
    %239 = tpu.matmul %237, %238, %cst_178 {dimension_numbers = #tpu.dot_dimension_numbers<[1], [0], [0], [1], [0, 0, 1, 1], [], []>} : vector<4x32xf32>, vector<32x32xf32>, vector<4x32xf32> -> vector<4x32xf32>
    %240 = arith.addf %239, %19 : vector<4x32xf32>
    %cst_179 = arith.constant 0.000000e+00 : f32
    %241 = vector.broadcast %cst_179 : f32 to vector<4x32xf32>
    %242 = arith.maximumf %240, %241 : vector<4x32xf32>
    %c0_180 = arith.constant 0 : index
    %c0_181 = arith.constant 0 : index
    %243 = vector.load %arg13[%c0_180, %c0_181] : memref<32x32xf32, #tpu.memory_space<vmem>>, vector<32x32xf32>
    %cst_182 = arith.constant dense<0.000000e+00> : vector<4x32xf32>
    %244 = tpu.matmul %242, %243, %cst_182 {dimension_numbers = #tpu.dot_dimension_numbers<[1], [0], [0], [1], [0, 0, 1, 1], [], []>} : vector<4x32xf32>, vector<32x32xf32>, vector<4x32xf32> -> vector<4x32xf32>
    %c0_183 = arith.constant 0 : index
    %c0_184 = arith.constant 0 : index
    %245 = vector.load %arg14[%c0_183, %c0_184] : memref<32x32xf32, #tpu.memory_space<vmem>>, vector<32x32xf32>
    %cst_185 = arith.constant dense<0.000000e+00> : vector<4x32xf32>
    %246 = tpu.matmul %200, %245, %cst_185 {dimension_numbers = #tpu.dot_dimension_numbers<[1], [0], [0], [1], [0, 0, 1, 1], [], []>} : vector<4x32xf32>, vector<32x32xf32>, vector<4x32xf32> -> vector<4x32xf32>
    %247 = arith.addf %244, %246 : vector<4x32xf32>
    %248 = arith.addf %247, %22 : vector<4x32xf32>
    %249 = math.tanh %248 : vector<4x32xf32>
    %cst_186 = arith.constant 0.000000e+00 : f32
    %250 = vector.broadcast %cst_186 : f32 to vector<4x32xf32>
    %251 = arith.maximumf %249, %250 : vector<4x32xf32>
    %c0_187 = arith.constant 0 : index
    %c0_188 = arith.constant 0 : index
    %252 = vector.load %arg16[%c0_187, %c0_188] : memref<32x32xf32, #tpu.memory_space<vmem>>, vector<32x32xf32>
    %cst_189 = arith.constant dense<0.000000e+00> : vector<4x32xf32>
    %253 = tpu.matmul %251, %252, %cst_189 {dimension_numbers = #tpu.dot_dimension_numbers<[1], [0], [0], [1], [0, 0, 1, 1], [], []>} : vector<4x32xf32>, vector<32x32xf32>, vector<4x32xf32> -> vector<4x32xf32>
    %254 = arith.addf %253, %25 : vector<4x32xf32>
    %cst_190 = arith.constant 0.000000e+00 : f32
    %255 = vector.broadcast %cst_190 : f32 to vector<4x32xf32>
    %256 = arith.maximumf %254, %255 : vector<4x32xf32>
    %c0_191 = arith.constant 0 : index
    %c0_192 = arith.constant 0 : index
    %257 = vector.load %arg18[%c0_191, %c0_192] : memref<32x32xf32, #tpu.memory_space<vmem>>, vector<32x32xf32>
    %cst_193 = arith.constant dense<0.000000e+00> : vector<4x32xf32>
    %258 = tpu.matmul %256, %257, %cst_193 {dimension_numbers = #tpu.dot_dimension_numbers<[1], [0], [0], [1], [0, 0, 1, 1], [], []>} : vector<4x32xf32>, vector<32x32xf32>, vector<4x32xf32> -> vector<4x32xf32>
    %259 = arith.addf %258, %28 : vector<4x32xf32>
    %cst_194 = arith.constant 0.000000e+00 : f32
    %260 = vector.broadcast %cst_194 : f32 to vector<4x32xf32>
    %261 = arith.maximumf %259, %260 : vector<4x32xf32>
    %c0_195 = arith.constant 0 : index
    %c0_196 = arith.constant 0 : index
    %262 = vector.load %arg20[%c0_195, %c0_196] : memref<32x8xf32, #tpu.memory_space<vmem>>, vector<32x8xf32>
    %cst_197 = arith.constant dense<0.000000e+00> : vector<4x8xf32>
    %263 = tpu.matmul %261, %262, %cst_197 {dimension_numbers = #tpu.dot_dimension_numbers<[1], [0], [0], [1], [0, 0, 1, 1], [], []>} : vector<4x32xf32>, vector<32x8xf32>, vector<4x8xf32> -> vector<4x8xf32>
    %264 = arith.addf %263, %31 : vector<4x8xf32>
    %265 = vector.extract_strided_slice %13 {offsets = [16, 0], sizes = [4, 1], strides = [1, 1]} : vector<24x1xf32> to vector<4x1xf32>
    %266 = vector.broadcast %265 : vector<4x1xf32> to vector<4x8xf32>
    %267 = arith.mulf %264, %266 : vector<4x8xf32>
    %c0_198 = arith.constant 0 : index
    %c4 = arith.constant 4 : index
    %c0_199 = arith.constant 0 : index
    %268 = vector.load %arg22[%c0_198, %c4, %c0_199] : memref<4x6x8xf32, #tpu.memory_space<vmem>>, vector<4x1x8xf32>
    %269 = vector.shape_cast %268 : vector<4x1x8xf32> to vector<4x8xf32>
    %270 = vector.shape_cast %267 : vector<4x8xf32> to vector<4x1x8xf32>
    tpu.vector_store %arg22[%c0_198, %c4, %c0_199], %270 {strides = array<i32>} : memref<4x6x8xf32, #tpu.memory_space<vmem>>, vector<4x1x8xf32>,
    %271 = vector.broadcast %265 : vector<4x1xf32> to vector<4x32xf32>
    %272 = arith.mulf %240, %271 : vector<4x32xf32>
    %c0_200 = arith.constant 0 : index
    %c4_201 = arith.constant 4 : index
    %c0_202 = arith.constant 0 : index
    %273 = vector.load %arg23[%c0_200, %c4_201, %c0_202] : memref<4x6x32xf32, #tpu.memory_space<vmem>>, vector<4x1x32xf32>
    %274 = vector.shape_cast %273 : vector<4x1x32xf32> to vector<4x32xf32>
    %275 = vector.shape_cast %272 : vector<4x32xf32> to vector<4x1x32xf32>
    tpu.vector_store %arg23[%c0_200, %c4_201, %c0_202], %275 {strides = array<i32>} : memref<4x6x32xf32, #tpu.memory_space<vmem>>, vector<4x1x32xf32>,
    %276 = vector.extract_strided_slice %5 {offsets = [20, 0], sizes = [4, 32], strides = [1, 1]} : vector<24x32xf32> to vector<4x32xf32>
    %c0_203 = arith.constant 0 : index
    %c0_204 = arith.constant 0 : index
    %277 = vector.load %arg8[%c0_203, %c0_204] : memref<8x32xf32, #tpu.memory_space<vmem>>, vector<8x32xf32>
    %cst_205 = arith.constant dense<0.000000e+00> : vector<4x32xf32>
    %278 = tpu.matmul %264, %277, %cst_205 {dimension_numbers = #tpu.dot_dimension_numbers<[1], [0], [0], [1], [0, 0, 1, 1], [], []>} : vector<4x8xf32>, vector<8x32xf32>, vector<4x32xf32> -> vector<4x32xf32>
    %279 = arith.addf %276, %278 : vector<4x32xf32>
    %cst_206 = arith.constant 0.000000e+00 : f32
    %280 = vector.broadcast %cst_206 : f32 to vector<4x32xf32>
    %281 = arith.maximumf %279, %280 : vector<4x32xf32>
    %c0_207 = arith.constant 0 : index
    %c0_208 = arith.constant 0 : index
    %282 = vector.load %arg9[%c0_207, %c0_208] : memref<32x32xf32, #tpu.memory_space<vmem>>, vector<32x32xf32>
    %cst_209 = arith.constant dense<0.000000e+00> : vector<4x32xf32>
    %283 = tpu.matmul %281, %282, %cst_209 {dimension_numbers = #tpu.dot_dimension_numbers<[1], [0], [0], [1], [0, 0, 1, 1], [], []>} : vector<4x32xf32>, vector<32x32xf32>, vector<4x32xf32> -> vector<4x32xf32>
    %284 = arith.addf %283, %16 : vector<4x32xf32>
    %cst_210 = arith.constant 0.000000e+00 : f32
    %285 = vector.broadcast %cst_210 : f32 to vector<4x32xf32>
    %286 = arith.maximumf %284, %285 : vector<4x32xf32>
    %c0_211 = arith.constant 0 : index
    %c0_212 = arith.constant 0 : index
    %287 = vector.load %arg11[%c0_211, %c0_212] : memref<32x32xf32, #tpu.memory_space<vmem>>, vector<32x32xf32>
    %cst_213 = arith.constant dense<0.000000e+00> : vector<4x32xf32>
    %288 = tpu.matmul %286, %287, %cst_213 {dimension_numbers = #tpu.dot_dimension_numbers<[1], [0], [0], [1], [0, 0, 1, 1], [], []>} : vector<4x32xf32>, vector<32x32xf32>, vector<4x32xf32> -> vector<4x32xf32>
    %289 = arith.addf %288, %19 : vector<4x32xf32>
    %cst_214 = arith.constant 0.000000e+00 : f32
    %290 = vector.broadcast %cst_214 : f32 to vector<4x32xf32>
    %291 = arith.maximumf %289, %290 : vector<4x32xf32>
    %c0_215 = arith.constant 0 : index
    %c0_216 = arith.constant 0 : index
    %292 = vector.load %arg13[%c0_215, %c0_216] : memref<32x32xf32, #tpu.memory_space<vmem>>, vector<32x32xf32>
    %cst_217 = arith.constant dense<0.000000e+00> : vector<4x32xf32>
    %293 = tpu.matmul %291, %292, %cst_217 {dimension_numbers = #tpu.dot_dimension_numbers<[1], [0], [0], [1], [0, 0, 1, 1], [], []>} : vector<4x32xf32>, vector<32x32xf32>, vector<4x32xf32> -> vector<4x32xf32>
    %c0_218 = arith.constant 0 : index
    %c0_219 = arith.constant 0 : index
    %294 = vector.load %arg14[%c0_218, %c0_219] : memref<32x32xf32, #tpu.memory_space<vmem>>, vector<32x32xf32>
    %cst_220 = arith.constant dense<0.000000e+00> : vector<4x32xf32>
    %295 = tpu.matmul %249, %294, %cst_220 {dimension_numbers = #tpu.dot_dimension_numbers<[1], [0], [0], [1], [0, 0, 1, 1], [], []>} : vector<4x32xf32>, vector<32x32xf32>, vector<4x32xf32> -> vector<4x32xf32>
    %296 = arith.addf %293, %295 : vector<4x32xf32>
    %297 = arith.addf %296, %22 : vector<4x32xf32>
    %298 = math.tanh %297 : vector<4x32xf32>
    %cst_221 = arith.constant 0.000000e+00 : f32
    %299 = vector.broadcast %cst_221 : f32 to vector<4x32xf32>
    %300 = arith.maximumf %298, %299 : vector<4x32xf32>
    %c0_222 = arith.constant 0 : index
    %c0_223 = arith.constant 0 : index
    %301 = vector.load %arg16[%c0_222, %c0_223] : memref<32x32xf32, #tpu.memory_space<vmem>>, vector<32x32xf32>
    %cst_224 = arith.constant dense<0.000000e+00> : vector<4x32xf32>
    %302 = tpu.matmul %300, %301, %cst_224 {dimension_numbers = #tpu.dot_dimension_numbers<[1], [0], [0], [1], [0, 0, 1, 1], [], []>} : vector<4x32xf32>, vector<32x32xf32>, vector<4x32xf32> -> vector<4x32xf32>
    %303 = arith.addf %302, %25 : vector<4x32xf32>
    %cst_225 = arith.constant 0.000000e+00 : f32
    %304 = vector.broadcast %cst_225 : f32 to vector<4x32xf32>
    %305 = arith.maximumf %303, %304 : vector<4x32xf32>
    %c0_226 = arith.constant 0 : index
    %c0_227 = arith.constant 0 : index
    %306 = vector.load %arg18[%c0_226, %c0_227] : memref<32x32xf32, #tpu.memory_space<vmem>>, vector<32x32xf32>
    %cst_228 = arith.constant dense<0.000000e+00> : vector<4x32xf32>
    %307 = tpu.matmul %305, %306, %cst_228 {dimension_numbers = #tpu.dot_dimension_numbers<[1], [0], [0], [1], [0, 0, 1, 1], [], []>} : vector<4x32xf32>, vector<32x32xf32>, vector<4x32xf32> -> vector<4x32xf32>
    %308 = arith.addf %307, %28 : vector<4x32xf32>
    %cst_229 = arith.constant 0.000000e+00 : f32
    %309 = vector.broadcast %cst_229 : f32 to vector<4x32xf32>
    %310 = arith.maximumf %308, %309 : vector<4x32xf32>
    %c0_230 = arith.constant 0 : index
    %c0_231 = arith.constant 0 : index
    %311 = vector.load %arg20[%c0_230, %c0_231] : memref<32x8xf32, #tpu.memory_space<vmem>>, vector<32x8xf32>
    %cst_232 = arith.constant dense<0.000000e+00> : vector<4x8xf32>
    %312 = tpu.matmul %310, %311, %cst_232 {dimension_numbers = #tpu.dot_dimension_numbers<[1], [0], [0], [1], [0, 0, 1, 1], [], []>} : vector<4x32xf32>, vector<32x8xf32>, vector<4x8xf32> -> vector<4x8xf32>
    %313 = arith.addf %312, %31 : vector<4x8xf32>
    %314 = vector.extract_strided_slice %13 {offsets = [20, 0], sizes = [4, 1], strides = [1, 1]} : vector<24x1xf32> to vector<4x1xf32>
    %315 = vector.broadcast %314 : vector<4x1xf32> to vector<4x8xf32>
    %316 = arith.mulf %313, %315 : vector<4x8xf32>
    %c0_233 = arith.constant 0 : index
    %c5 = arith.constant 5 : index
    %c0_234 = arith.constant 0 : index
    %317 = vector.load %arg22[%c0_233, %c5, %c0_234] : memref<4x6x8xf32, #tpu.memory_space<vmem>>, vector<4x1x8xf32>
    %318 = vector.shape_cast %317 : vector<4x1x8xf32> to vector<4x8xf32>
    %319 = vector.shape_cast %316 : vector<4x8xf32> to vector<4x1x8xf32>
    tpu.vector_store %arg22[%c0_233, %c5, %c0_234], %319 {strides = array<i32>} : memref<4x6x8xf32, #tpu.memory_space<vmem>>, vector<4x1x8xf32>,
    %320 = vector.broadcast %314 : vector<4x1xf32> to vector<4x32xf32>
    %321 = arith.mulf %289, %320 : vector<4x32xf32>
    %c0_235 = arith.constant 0 : index
    %c5_236 = arith.constant 5 : index
    %c0_237 = arith.constant 0 : index
    %322 = vector.load %arg23[%c0_235, %c5_236, %c0_237] : memref<4x6x32xf32, #tpu.memory_space<vmem>>, vector<4x1x32xf32>
    %323 = vector.shape_cast %322 : vector<4x1x32xf32> to vector<4x32xf32>
    %324 = vector.shape_cast %321 : vector<4x32xf32> to vector<4x1x32xf32>
    tpu.vector_store %arg23[%c0_235, %c5_236, %c0_237], %324 {strides = array<i32>} : memref<4x6x32xf32, #tpu.memory_space<vmem>>, vector<4x1x32xf32>,
    return
  }
}

</mosaic_0001>

<llo_original>
// kernel: my_rnn_skip_forward.1
$region0: #{my_rnn_skip_forward.1}
  #allocation0 [shape = 'u32[]', space=smem, size = 0x4, offset = 0x4, fixed_abs, tag = 'smem constant byte address 0x4 - core index']
  #allocation1 [shape = 'u32[144,128]{1,0:T(1,128)}', space=vmem, size = 0x12000, scoped, tag = 'internal scratch']
  %s0 = inlined_call_operand.hbm [shape: f32[24,8], index: 0, kind: input, shape index: {}]
  %s1 = inlined_call_operand.vmem [shape: f32[24,1], index: 1, kind: input, shape index: {}]
  %s2 = inlined_call_operand.hbm [shape: f32[4,8], index: 2, kind: input, shape index: {}]
  %s3 = inlined_call_operand.hbm [shape: f32[4,8], index: 3, kind: input, shape index: {}]
  %s4 = inlined_call_operand.hbm [shape: f32[8,32], index: 4, kind: input, shape index: {}]
  %s5 = inlined_call_operand.hbm [shape: f32[1,32], index: 5, kind: input, shape index: {}]
  %s6 = inlined_call_operand.vmem [shape: f32[8,32], index: 6, kind: input, shape index: {}]
  %s7 = inlined_call_operand.vmem [shape: f32[8,32], index: 7, kind: input, shape index: {}]
  %s8 = inlined_call_operand.vmem [shape: f32[8,32], index: 8, kind: input, shape index: {}]
  %s9 = inlined_call_operand.vmem [shape: f32[32,32], index: 9, kind: input, shape index: {}]
  %s10 = inlined_call_operand.hbm [shape: f32[1,32], index: 10, kind: input, shape index: {}]
  %s11 = inlined_call_operand.vmem [shape: f32[32,32], index: 11, kind: input, shape index: {}]
  %s12 = inlined_call_operand.hbm [shape: f32[1,32], index: 12, kind: input, shape index: {}]
  %s13 = inlined_call_operand.vmem [shape: f32[32,32], index: 13, kind: input, shape index: {}]
  %s14 = inlined_call_operand.vmem [shape: f32[32,32], index: 14, kind: input, shape index: {}]
  %s15 = inlined_call_operand.vmem [shape: f32[1,32], index: 15, kind: input, shape index: {}]
  %s16 = inlined_call_operand.hbm [shape: f32[32,32], index: 16, kind: input, shape index: {}]
  %s17 = inlined_call_operand.hbm [shape: f32[1,32], index: 17, kind: input, shape index: {}]
  %s18 = inlined_call_operand.hbm [shape: f32[32,32], index: 18, kind: input, shape index: {}]
  %s19 = inlined_call_operand.hbm [shape: f32[1,32], index: 19, kind: input, shape index: {}]
  %s20 = inlined_call_operand.vmem [shape: f32[32,8], index: 20, kind: input, shape index: {}]
  %s21 = inlined_call_operand.hbm [shape: f32[1,8], index: 21, kind: input, shape index: {}]
  %s22 = inlined_call_operand.vmem [shape: f32[4,6,8], index: 22, kind: output, shape index: {0}]
  %s23 = inlined_call_operand.vmem [shape: f32[4,6,32], index: 23, kind: output, shape index: {1}]
  %24 = xla_tuple %s22, %s23
  %s25 = sld [smem:[#allocation0]]
  $region154: #{my_rnn_skip_forward.1} parent=0
    _
  %s27 = ssub.s32 1, %s25
  %s28 = scalar_select 0, %s27, %s25
  $region1: #{my_rnn_skip_forward.1} parent=0
    #allocation2 [shape = 'u8[12288]{0}', space=vmem, size = 0x3000, scoped, tag = 'input window, operand 0, single buffered']
    #allocation3 [shape = 's32[1]{0}', space=sflag, size = 0x4, scoped, tag = 'scoped memory for my_rnn_skip_forward.1']
    #allocation4 [shape = 'u8[2048]{0}', space=vmem, size = 0x800, scoped, tag = 'input window, operand 2, single buffered']
    #allocation5 [shape = 's32[1]{0}', space=sflag, size = 0x4, scoped, tag = 'scoped memory for my_rnn_skip_forward.1']
    #allocation6 [shape = 'u8[2048]{0}', space=vmem, size = 0x800, scoped, tag = 'input window, operand 3, single buffered']
    #allocation7 [shape = 'u8[4096]{0}', space=vmem, size = 0x1000, scoped, tag = 'input window, operand 4, single buffered']
    #allocation8 [shape = 's32[1]{0}', space=sflag, size = 0x4, scoped, tag = 'scoped memory for my_rnn_skip_forward.1']
    #allocation9 [shape = 'u8[512]{0}', space=vmem, size = 0x400, scoped, tag = 'input window, operand 5, single buffered']
    #allocation10 [shape = 'u8[512]{0}', space=vmem, size = 0x400, scoped, tag = 'input window, operand 10, single buffered']
    #allocation11 [shape = 's32[1]{0}', space=sflag, size = 0x4, scoped, tag = 'scoped memory for my_rnn_skip_forward.1']
    #allocation12 [shape = 'u8[512]{0}', space=vmem, size = 0x400, scoped, tag = 'input window, operand 12, single buffered']
    #allocation13 [shape = 'u8[16384]{0}', space=vmem, size = 0x4000, scoped, tag = 'input window, operand 16, single buffered']
    #allocation14 [shape = 's32[1]{0}', space=sflag, size = 0x4, scoped, tag = 'scoped memory for my_rnn_skip_forward.1']
    #allocation15 [shape = 'u8[512]{0}', space=vmem, size = 0x400, scoped, tag = 'input window, operand 17, single buffered']
    #allocation16 [shape = 'u8[16384]{0}', space=vmem, size = 0x4000, scoped, tag = 'input window, operand 18, single buffered']
    #allocation17 [shape = 's32[1]{0}', space=sflag, size = 0x4, scoped, tag = 'scoped memory for my_rnn_skip_forward.1']
    #allocation18 [shape = 'u8[512]{0}', space=vmem, size = 0x400, scoped, tag = 'input window, operand 19, single buffered']
    #allocation19 [shape = 'u8[512]{0}', space=vmem, size = 0x400, scoped, tag = 'input window, operand 21, single buffered']
    #allocation20 [shape = 's32[1]{0}', space=sflag, size = 0x4, scoped, tag = 'scoped memory for my_rnn_skip_forward.1']
    %29 = vsyncpa [#allocation3], 0
    %30 = vsyncpa [#allocation5], 0
    %31 = vsyncpa [#allocation8], 0
    %32 = vsyncpa [#allocation11], 0
    %33 = vsyncpa [#allocation14], 0
    %34 = vsyncpa [#allocation17], 0
    %35 = vsyncpa [#allocation20], 0
    // Predicated region
    $region2: #{my_rnn_skip_forward.1} parent=1 // pred_check
      _
    $region3: #{my_rnn_skip_forward.1} parent=1 // pred_check_branch
      %37 = sbr.rel (0) target = $region5
    $region4: #{my_rnn_skip_forward.1} parent=1 // pred_region
      %s39 = ssub.s32 384, 384
      %40 = vsyncadd [#allocation3], %s39
      %s41 = sshll.u32 [#allocation2], 4
      %s42 = int_to_ptr.vmem [resolvable:$true] %s41
      %47 = dma.hbm_to_vmem [thread:$0]  %s0, 384, %s42, [#allocation3], 128, 128, 8
    $region5: #{my_rnn_skip_forward.1} parent=1 // pred_fallthru
      _
    // Predicated region
    $region6: #{my_rnn_skip_forward.1} parent=1 // pred_check
      _
    $region7: #{my_rnn_skip_forward.1} parent=1 // pred_check_branch
      %49 = sbr.rel (0) target = $region9
    $region8: #{my_rnn_skip_forward.1} parent=1 // pred_region
      _
    $region9: #{my_rnn_skip_forward.1} parent=1 // pred_fallthru
      _
    // Predicated region
    $region10: #{my_rnn_skip_forward.1} parent=1 // pred_check
      _
    $region11: #{my_rnn_skip_forward.1} parent=1 // pred_check_branch
      %51 = sbr.rel (0) target = $region13
    $region12: #{my_rnn_skip_forward.1} parent=1 // pred_region
      %s53 = ssub.s32 64, 64
      %54 = vsyncadd [#allocation5], %s53
      %s56 = sshll.u32 [#allocation4], 4
      %s57 = int_to_ptr.vmem [resolvable:$true] %s56
      %59 = dma.hbm_to_vmem [thread:$0]  %s2, 64, %s57, [#allocation5]
    $region13: #{my_rnn_skip_forward.1} parent=1 // pred_fallthru
      _
    // Predicated region
    $region14: #{my_rnn_skip_forward.1} parent=1 // pred_check
      _
    $region15: #{my_rnn_skip_forward.1} parent=1 // pred_check_branch
      %61 = sbr.rel (0) target = $region17
    $region16: #{my_rnn_skip_forward.1} parent=1 // pred_region
      %s63 = ssub.s32 64, 64
      %64 = vsyncadd [#allocation5], %s63
      %s66 = sshll.u32 [#allocation6], 4
      %s67 = int_to_ptr.vmem [resolvable:$true] %s66
      %69 = dma.hbm_to_vmem [thread:$0]  %s3, 64, %s67, [#allocation5]
    $region17: #{my_rnn_skip_forward.1} parent=1 // pred_fallthru
      _
    // Predicated region
    $region18: #{my_rnn_skip_forward.1} parent=1 // pred_check
      _
    $region19: #{my_rnn_skip_forward.1} parent=1 // pred_check_branch
      %71 = sbr.rel (0) target = $region21
    $region20: #{my_rnn_skip_forward.1} parent=1 // pred_region
      %s73 = ssub.s32 128, 128
      %74 = vsyncadd [#allocation8], %s73
      %s76 = sshll.u32 [#allocation7], 4
      %s77 = int_to_ptr.vmem [resolvable:$true] %s76
      %79 = dma.hbm_to_vmem [thread:$0]  %s4, 128, %s77, [#allocation8]
    $region21: #{my_rnn_skip_forward.1} parent=1 // pred_fallthru
      _
    // Predicated region
    $region22: #{my_rnn_skip_forward.1} parent=1 // pred_check
      _
    $region23: #{my_rnn_skip_forward.1} parent=1 // pred_check_branch
      %81 = sbr.rel (0) target = $region25
    $region24: #{my_rnn_skip_forward.1} parent=1 // pred_region
      %s83 = ssub.s32 16, 16
      %84 = vsyncadd [#allocation8], %s83
      %s86 = sshll.u32 [#allocation9], 4
      %s87 = int_to_ptr.vmem [resolvable:$true] %s86
      %89 = dma.hbm_to_vmem [thread:$0]  %s5, 16, %s87, [#allocation8]
    $region25: #{my_rnn_skip_forward.1} parent=1 // pred_fallthru
      _
    // Predicated region
    $region26: #{my_rnn_skip_forward.1} parent=1 // pred_check
      _
    $region27: #{my_rnn_skip_forward.1} parent=1 // pred_check_branch
      %91 = sbr.rel (0) target = $region29
    $region28: #{my_rnn_skip_forward.1} parent=1 // pred_region
      _
    $region29: #{my_rnn_skip_forward.1} parent=1 // pred_fallthru
      _
    // Predicated region
    $region30: #{my_rnn_skip_forward.1} parent=1 // pred_check
      _
    $region31: #{my_rnn_skip_forward.1} parent=1 // pred_check_branch
      %93 = sbr.rel (0) target = $region33
    $region32: #{my_rnn_skip_forward.1} parent=1 // pred_region
      _
    $region33: #{my_rnn_skip_forward.1} parent=1 // pred_fallthru
      _
    // Predicated region
    $region34: #{my_rnn_skip_forward.1} parent=1 // pred_check
      _
    $region35: #{my_rnn_skip_forward.1} parent=1 // pred_check_branch
      %95 = sbr.rel (0) target = $region37
    $region36: #{my_rnn_skip_forward.1} parent=1 // pred_region
      _
    $region37: #{my_rnn_skip_forward.1} parent=1 // pred_fallthru
      _
    // Predicated region
    $region38: #{my_rnn_skip_forward.1} parent=1 // pred_check
      _
    $region39: #{my_rnn_skip_forward.1} parent=1 // pred_check_branch
      %97 = sbr.rel (0) target = $region41
    $region40: #{my_rnn_skip_forward.1} parent=1 // pred_region
      _
    $region41: #{my_rnn_skip_forward.1} parent=1 // pred_fallthru
      _
    // Predicated region
    $region42: #{my_rnn_skip_forward.1} parent=1 // pred_check
      _
    $region43: #{my_rnn_skip_forward.1} parent=1 // pred_check_branch
      %99 = sbr.rel (0) target = $region45
    $region44: #{my_rnn_skip_forward.1} parent=1 // pred_region
      %s101 = ssub.s32 16, 16
      %102 = vsyncadd [#allocation11], %s101
      %s104 = sshll.u32 [#allocation10], 4
      %s105 = int_to_ptr.vmem [resolvable:$true] %s104
      %107 = dma.hbm_to_vmem [thread:$0]  %s10, 16, %s105, [#allocation11]
    $region45: #{my_rnn_skip_forward.1} parent=1 // pred_fallthru
      _
    // Predicated region
    $region46: #{my_rnn_skip_forward.1} parent=1 // pred_check
      _
    $region47: #{my_rnn_skip_forward.1} parent=1 // pred_check_branch
      %109 = sbr.rel (0) target = $region49
    $region48: #{my_rnn_skip_forward.1} parent=1 // pred_region
      _
    $region49: #{my_rnn_skip_forward.1} parent=1 // pred_fallthru
      _
    // Predicated region
    $region50: #{my_rnn_skip_forward.1} parent=1 // pred_check
      _
    $region51: #{my_rnn_skip_forward.1} parent=1 // pred_check_branch
      %111 = sbr.rel (0) target = $region53
    $region52: #{my_rnn_skip_forward.1} parent=1 // pred_region
      %s113 = ssub.s32 16, 16
      %114 = vsyncadd [#allocation11], %s113
      %s116 = sshll.u32 [#allocation12], 4
      %s117 = int_to_ptr.vmem [resolvable:$true] %s116
      %119 = dma.hbm_to_vmem [thread:$0]  %s12, 16, %s117, [#allocation11]
    $region53: #{my_rnn_skip_forward.1} parent=1 // pred_fallthru
      _
    // Predicated region
    $region54: #{my_rnn_skip_forward.1} parent=1 // pred_check
      _
    $region55: #{my_rnn_skip_forward.1} parent=1 // pred_check_branch
      %121 = sbr.rel (0) target = $region57
    $region56: #{my_rnn_skip_forward.1} parent=1 // pred_region
      _
    $region57: #{my_rnn_skip_forward.1} parent=1 // pred_fallthru
      _
    // Predicated region
    $region58: #{my_rnn_skip_forward.1} parent=1 // pred_check
      _
    $region59: #{my_rnn_skip_forward.1} parent=1 // pred_check_branch
      %123 = sbr.rel (0) target = $region61
    $region60: #{my_rnn_skip_forward.1} parent=1 // pred_region
      _
    $region61: #{my_rnn_skip_forward.1} parent=1 // pred_fallthru
      _
    // Predicated region
    $region62: #{my_rnn_skip_forward.1} parent=1 // pred_check
      _
    $region63: #{my_rnn_skip_forward.1} parent=1 // pred_check_branch
      %125 = sbr.rel (0) target = $region65
    $region64: #{my_rnn_skip_forward.1} parent=1 // pred_region
      _
    $region65: #{my_rnn_skip_forward.1} parent=1 // pred_fallthru
      _
    // Predicated region
    $region66: #{my_rnn_skip_forward.1} parent=1 // pred_check
      _
    $region67: #{my_rnn_skip_forward.1} parent=1 // pred_check_branch
      %127 = sbr.rel (0) target = $region69
    $region68: #{my_rnn_skip_forward.1} parent=1 // pred_region
      %s129 = ssub.s32 512, 512
      %130 = vsyncadd [#allocation14], %s129
      %s131 = sshll.u32 [#allocation13], 4
      %s132 = int_to_ptr.vmem [resolvable:$true] %s131
      %137 = dma.hbm_to_vmem [thread:$0]  %s16, 512, %s132, [#allocation14], 128, 128, 8
    $region69: #{my_rnn_skip_forward.1} parent=1 // pred_fallthru
      _
    // Predicated region
    $region70: #{my_rnn_skip_forward.1} parent=1 // pred_check
      _
    $region71: #{my_rnn_skip_forward.1} parent=1 // pred_check_branch
      %139 = sbr.rel (0) target = $region73
    $region72: #{my_rnn_skip_forward.1} parent=1 // pred_region
      %s141 = ssub.s32 16, 16
      %142 = vsyncadd [#allocation14], %s141
      %s144 = sshll.u32 [#allocation15], 4
      %s145 = int_to_ptr.vmem [resolvable:$true] %s144
      %147 = dma.hbm_to_vmem [thread:$0]  %s17, 16, %s145, [#allocation14]
    $region73: #{my_rnn_skip_forward.1} parent=1 // pred_fallthru
      _
    // Predicated region
    $region74: #{my_rnn_skip_forward.1} parent=1 // pred_check
      _
    $region75: #{my_rnn_skip_forward.1} parent=1 // pred_check_branch
      %149 = sbr.rel (0) target = $region77
    $region76: #{my_rnn_skip_forward.1} parent=1 // pred_region
      %s151 = ssub.s32 512, 512
      %152 = vsyncadd [#allocation17], %s151
      %s153 = sshll.u32 [#allocation16], 4
      %s154 = int_to_ptr.vmem [resolvable:$true] %s153
      %159 = dma.hbm_to_vmem [thread:$0]  %s18, 512, %s154, [#allocation17], 128, 128, 8
    $region77: #{my_rnn_skip_forward.1} parent=1 // pred_fallthru
      _
    // Predicated region
    $region78: #{my_rnn_skip_forward.1} parent=1 // pred_check
      _
    $region79: #{my_rnn_skip_forward.1} parent=1 // pred_check_branch
      %161 = sbr.rel (0) target = $region81
    $region80: #{my_rnn_skip_forward.1} parent=1 // pred_region
      %s163 = ssub.s32 16, 16
      %164 = vsyncadd [#allocation17], %s163
      %s166 = sshll.u32 [#allocation18], 4
      %s167 = int_to_ptr.vmem [resolvable:$true] %s166
      %169 = dma.hbm_to_vmem [thread:$0]  %s19, 16, %s167, [#allocation17]
    $region81: #{my_rnn_skip_forward.1} parent=1 // pred_fallthru
      _
    // Predicated region
    $region82: #{my_rnn_skip_forward.1} parent=1 // pred_check
      _
    $region83: #{my_rnn_skip_forward.1} parent=1 // pred_check_branch
      %171 = sbr.rel (0) target = $region85
    $region84: #{my_rnn_skip_forward.1} parent=1 // pred_region
      _
    $region85: #{my_rnn_skip_forward.1} parent=1 // pred_fallthru
      _
    // Predicated region
    $region86: #{my_rnn_skip_forward.1} parent=1 // pred_check
      _
    $region87: #{my_rnn_skip_forward.1} parent=1 // pred_check_branch
      %173 = sbr.rel (0) target = $region89
    $region88: #{my_rnn_skip_forward.1} parent=1 // pred_region
      %s175 = ssub.s32 16, 16
      %176 = vsyncadd [#allocation20], %s175
      %s178 = sshll.u32 [#allocation19], 4
      %s179 = int_to_ptr.vmem [resolvable:$true] %s178
      %181 = dma.hbm_to_vmem [thread:$0]  %s21, 16, %s179, [#allocation20]
    $region89: #{my_rnn_skip_forward.1} parent=1 // pred_fallthru
      _
    // Predicated region
    $region90: #{my_rnn_skip_forward.1} parent=1 // pred_check
      _
    $region91: #{my_rnn_skip_forward.1} parent=1 // pred_check_branch
      %183 = sbr.rel (0) target = $region93
    $region92: #{my_rnn_skip_forward.1} parent=1 // pred_region
      %184 = dma.done [#allocation3], 384
    $region93: #{my_rnn_skip_forward.1} parent=1 // pred_fallthru
      _
    // Predicated region
    $region94: #{my_rnn_skip_forward.1} parent=1 // pred_check
      _
    $region95: #{my_rnn_skip_forward.1} parent=1 // pred_check_branch
      %186 = sbr.rel (0) target = $region97
    $region96: #{my_rnn_skip_forward.1} parent=1 // pred_region
      %187 = dma.done [#allocation5], 64
    $region97: #{my_rnn_skip_forward.1} parent=1 // pred_fallthru
      _
    // Predicated region
    $region98: #{my_rnn_skip_forward.1} parent=1 // pred_check
      _
    $region99: #{my_rnn_skip_forward.1} parent=1 // pred_check_branch
      %189 = sbr.rel (0) target = $region101
    $region100: #{my_rnn_skip_forward.1} parent=1 // pred_region
      %190 = dma.done [#allocation5], 64
    $region101: #{my_rnn_skip_forward.1} parent=1 // pred_fallthru
      _
    // Predicated region
    $region102: #{my_rnn_skip_forward.1} parent=1 // pred_check
      _
    $region103: #{my_rnn_skip_forward.1} parent=1 // pred_check_branch
      %192 = sbr.rel (0) target = $region105
    $region104: #{my_rnn_skip_forward.1} parent=1 // pred_region
      %193 = dma.done [#allocation8], 128
    $region105: #{my_rnn_skip_forward.1} parent=1 // pred_fallthru
      _
    // Predicated region
    $region106: #{my_rnn_skip_forward.1} parent=1 // pred_check
      _
    $region107: #{my_rnn_skip_forward.1} parent=1 // pred_check_branch
      %195 = sbr.rel (0) target = $region109
    $region108: #{my_rnn_skip_forward.1} parent=1 // pred_region
      %196 = dma.done [#allocation8], 16
    $region109: #{my_rnn_skip_forward.1} parent=1 // pred_fallthru
      _
    // Predicated region
    $region110: #{my_rnn_skip_forward.1} parent=1 // pred_check
      _
    $region111: #{my_rnn_skip_forward.1} parent=1 // pred_check_branch
      %198 = sbr.rel (0) target = $region113
    $region112: #{my_rnn_skip_forward.1} parent=1 // pred_region
      %199 = dma.done [#allocation11], 16
    $region113: #{my_rnn_skip_forward.1} parent=1 // pred_fallthru
      _
    // Predicated region
    $region114: #{my_rnn_skip_forward.1} parent=1 // pred_check
      _
    $region115: #{my_rnn_skip_forward.1} parent=1 // pred_check_branch
      %201 = sbr.rel (0) target = $region117
    $region116: #{my_rnn_skip_forward.1} parent=1 // pred_region
      %202 = dma.done [#allocation11], 16
    $region117: #{my_rnn_skip_forward.1} parent=1 // pred_fallthru
      _
    // Predicated region
    $region118: #{my_rnn_skip_forward.1} parent=1 // pred_check
      _
    $region119: #{my_rnn_skip_forward.1} parent=1 // pred_check_branch
      %204 = sbr.rel (0) target = $region121
    $region120: #{my_rnn_skip_forward.1} parent=1 // pred_region
      %205 = dma.done [#allocation14], 512
    $region121: #{my_rnn_skip_forward.1} parent=1 // pred_fallthru
      _
    // Predicated region
    $region122: #{my_rnn_skip_forward.1} parent=1 // pred_check
      _
    $region123: #{my_rnn_skip_forward.1} parent=1 // pred_check_branch
      %207 = sbr.rel (0) target = $region125
    $region124: #{my_rnn_skip_forward.1} parent=1 // pred_region
      %208 = dma.done [#allocation14], 16
    $region125: #{my_rnn_skip_forward.1} parent=1 // pred_fallthru
      _
    // Predicated region
    $region126: #{my_rnn_skip_forward.1} parent=1 // pred_check
      _
    $region127: #{my_rnn_skip_forward.1} parent=1 // pred_check_branch
      %210 = sbr.rel (0) target = $region129
    $region128: #{my_rnn_skip_forward.1} parent=1 // pred_region
      %211 = dma.done [#allocation17], 512
    $region129: #{my_rnn_skip_forward.1} parent=1 // pred_fallthru
      _
    // Predicated region
    $region130: #{my_rnn_skip_forward.1} parent=1 // pred_check
      _
    $region131: #{my_rnn_skip_forward.1} parent=1 // pred_check_branch
      %213 = sbr.rel (0) target = $region133
    $region132: #{my_rnn_skip_forward.1} parent=1 // pred_region
      %214 = dma.done [#allocation17], 16
    $region133: #{my_rnn_skip_forward.1} parent=1 // pred_fallthru
      _
    // Predicated region
    $region134: #{my_rnn_skip_forward.1} parent=1 // pred_check
      _
    $region135: #{my_rnn_skip_forward.1} parent=1 // pred_check_branch
      %216 = sbr.rel (0) target = $region137
    $region136: #{my_rnn_skip_forward.1} parent=1 // pred_region
      %217 = dma.done [#allocation20], 16
    $region137: #{my_rnn_skip_forward.1} parent=1 // pred_fallthru
      _
    %v218 = vld [vmem:[#allocation2] sm:$0xff]
    %v219 = vld [vmem:[#allocation2 + $0x8] sm:$0xff]
    %v220 = vld [vmem:[#allocation2 + $0x10] sm:$0xff]
    %v221 = vld [vmem:[#allocation7] sm:$0xff]
    %v222 = vld [vmem:[#allocation9] sm:$0x1]
    %v224 = vlaneseq
    %v225 = vshrl.u32 %v224, 7
    %v226 = vsub.s32 0, %v225
    %v227 = vrot.slane %v222, %v226
    %vm229 = vcmask 64512
    %v231 = vsel %vm229, %v218, 0
    %v234 = vsel %vm229, %v219, 0
    %v237 = vsel %vm229, %v220, 0
    %239 = vmatprep.subr.mxu0 0.0
    %240 = vmatpush1.msra.mxu0 0.0
    %241 = vmatprep.subr.mxu0 0.0
    %242 = vmatpush1.msra.mxu0 0.0
    %243 = vmatprep.subr.mxu0 0.0
    %244 = vmatpush1.msra.mxu0 0.0
    %245 = vmatprep.subr.mxu0 0.0
    %246 = vmatpush1.msra.mxu0 0.0
    %247 = vmatprep.subr.mxu0 0.0
    %248 = vmatpush1.msra.mxu0 0.0
    %249 = vmatprep.subr.mxu0 0.0
    %250 = vmatpush1.msra.mxu0 0.0
    %251 = vmatprep.subr.mxu0 0.0
    %252 = vmatpush1.msra.mxu0 0.0
    %253 = vmatprep.subr.mxu0 0.0
    %254 = vmatpush1.msra.mxu0 0.0
    %255 = vmatprep.subr.mxu0 0.0
    %256 = vmatpush1.msra.mxu0 0.0
    %257 = vmatprep.subr.mxu0 0.0
    %258 = vmatpush1.msra.mxu0 0.0
    %259 = vmatprep.subr.mxu0 0.0
    %260 = vmatpush1.msra.mxu0 0.0
    %261 = vmatprep.subr.mxu0 0.0
    %262 = vmatpush1.msra.mxu0 0.0
    %263 = vmatprep.subr.mxu0 0.0
    %264 = vmatpush1.msra.mxu0 0.0
    %265 = vmatprep.subr.mxu0 0.0
    %266 = vmatpush1.msra.mxu0 0.0
    %267 = vmatprep.subr.mxu0 0.0
    %268 = vmatpush1.msra.mxu0 0.0
    %269 = vmatprep.subr.mxu0 0.0
    %270 = vmatpush1.msra.mxu0 %v221
    %271 = vmatprep.subr.mxu0 0.0
    %272 = vmatpush2.msra.mxu0 0.0
    %273 = vmatprep.subr.mxu0 0.0
    %274 = vmatpush2.msra.mxu0 0.0
    %275 = vmatprep.subr.mxu0 0.0
    %276 = vmatpush2.msra.mxu0 0.0
    %277 = vmatprep.subr.mxu0 0.0
    %278 = vmatpush2.msra.mxu0 0.0
    %279 = vmatprep.subr.mxu0 0.0
    %280 = vmatpush2.msra.mxu0 0.0
    %281 = vmatprep.subr.mxu0 0.0
    %282 = vmatpush2.msra.mxu0 0.0
    %283 = vmatprep.subr.mxu0 0.0
    %284 = vmatpush2.msra.mxu0 0.0
    %285 = vmatprep.subr.mxu0 0.0
    %286 = vmatpush2.msra.mxu0 0.0
    %287 = vmatprep.subr.mxu0 0.0
    %288 = vmatpush2.msra.mxu0 0.0
    %289 = vmatprep.subr.mxu0 0.0
    %290 = vmatpush2.msra.mxu0 0.0
    %291 = vmatprep.subr.mxu0 0.0
    %292 = vmatpush2.msra.mxu0 0.0
    %293 = vmatprep.subr.mxu0 0.0
    %294 = vmatpush2.msra.mxu0 0.0
    %295 = vmatprep.subr.mxu0 0.0
    %296 = vmatpush2.msra.mxu0 0.0
    %297 = vmatprep.subr.mxu0 0.0
    %298 = vmatpush2.msra.mxu0 0.0
    %299 = vmatprep.subr.mxu0 0.0
    %300 = vmatpush2.msra.mxu0 0.0
    %301 = vmatprep.subr.mxu0 0.0
    %302 = vmatpush2.msra.mxu0 0.0
    %303 = vmatprep.mubr.f32.mxu0 0.0
    %304 = vmatmul.mubr.f32.gmra.mxu0 %v231
    %v305 = vpop.f32.mrf.mxu0
    %v306 = vadd.f32 %v227, %v305
    %v307 = vpop.f32.mrf.mxu0
    %308 = vmatprep.mubr.f32.mxu0 0.0
    %309 = vmatmul.mubr.f32.gmra.mxu0 %v234
    %v310 = vpop.f32.mrf.mxu0
    %v311 = vadd.f32 %v227, %v310
    %v312 = vpop.f32.mrf.mxu0
    %313 = vmatprep.mubr.f32.mxu0 0.0
    %314 = vmatmul.mubr.f32.gmra.mxu0 %v237
    %v315 = vpop.f32.mrf.mxu0
    %v316 = vadd.f32 %v227, %v315
    %v317 = vpop.f32.mrf.mxu0
    %318 = vdwg.mxu0
    %v319 = vld [vmem:[#allocation6] sm:$0xf]
    %v320 = vld [vmem:[%s6] sm:$0xff]
    %v321 = vld [vmem:[#allocation4] sm:$0xf]
    %v322 = vld [vmem:[%s7] sm:$0xff]
    %v324 = vsel %vm229, %v321, 0
    %326 = vmatprep.subr.mxu0 0.0
    %327 = vmatpush1.msra.mxu0 0.0
    %328 = vmatprep.subr.mxu0 0.0
    %329 = vmatpush1.msra.mxu0 0.0
    %330 = vmatprep.subr.mxu0 0.0
    %331 = vmatpush1.msra.mxu0 0.0
    %332 = vmatprep.subr.mxu0 0.0
    %333 = vmatpush1.msra.mxu0 0.0
    %334 = vmatprep.subr.mxu0 0.0
    %335 = vmatpush1.msra.mxu0 0.0
    %336 = vmatprep.subr.mxu0 0.0
    %337 = vmatpush1.msra.mxu0 0.0
    %338 = vmatprep.subr.mxu0 0.0
    %339 = vmatpush1.msra.mxu0 0.0
    %340 = vmatprep.subr.mxu0 0.0
    %341 = vmatpush1.msra.mxu0 0.0
    %342 = vmatprep.subr.mxu0 0.0
    %343 = vmatpush1.msra.mxu0 0.0
    %344 = vmatprep.subr.mxu0 0.0
    %345 = vmatpush1.msra.mxu0 0.0
    %346 = vmatprep.subr.mxu0 0.0
    %347 = vmatpush1.msra.mxu0 0.0
    %348 = vmatprep.subr.mxu0 0.0
    %349 = vmatpush1.msra.mxu0 0.0
    %350 = vmatprep.subr.mxu0 0.0
    %351 = vmatpush1.msra.mxu0 0.0
    %352 = vmatprep.subr.mxu0 0.0
    %353 = vmatpush1.msra.mxu0 0.0
    %354 = vmatprep.subr.mxu0 0.0
    %355 = vmatpush1.msra.mxu0 0.0
    %356 = vmatprep.subr.mxu0 0.0
    %357 = vmatpush1.msra.mxu0 %v322
    %358 = vmatprep.subr.mxu0 0.0
    %359 = vmatpush2.msra.mxu0 0.0
    %360 = vmatprep.subr.mxu0 0.0
    %361 = vmatpush2.msra.mxu0 0.0
    %362 = vmatprep.subr.mxu0 0.0
    %363 = vmatpush2.msra.mxu0 0.0
    %364 = vmatprep.subr.mxu0 0.0
    %365 = vmatpush2.msra.mxu0 0.0
    %366 = vmatprep.subr.mxu0 0.0
    %367 = vmatpush2.msra.mxu0 0.0
    %368 = vmatprep.subr.mxu0 0.0
    %369 = vmatpush2.msra.mxu0 0.0
    %370 = vmatprep.subr.mxu0 0.0
    %371 = vmatpush2.msra.mxu0 0.0
    %372 = vmatprep.subr.mxu0 0.0
    %373 = vmatpush2.msra.mxu0 0.0
    %374 = vmatprep.subr.mxu0 0.0
    %375 = vmatpush2.msra.mxu0 0.0
    %376 = vmatprep.subr.mxu0 0.0
    %377 = vmatpush2.msra.mxu0 0.0
    %378 = vmatprep.subr.mxu0 0.0
    %379 = vmatpush2.msra.mxu0 0.0
    %380 = vmatprep.subr.mxu0 0.0
    %381 = vmatpush2.msra.mxu0 0.0
    %382 = vmatprep.subr.mxu0 0.0
    %383 = vmatpush2.msra.mxu0 0.0
    %384 = vmatprep.subr.mxu0 0.0
    %385 = vmatpush2.msra.mxu0 0.0
    %386 = vmatprep.subr.mxu0 0.0
    %387 = vmatpush2.msra.mxu0 0.0
    %388 = vmatprep.subr.mxu0 0.0
    %389 = vmatpush2.msra.mxu0 0.0
    %390 = vmatprep.mubr.f32.mxu0 0.0
    %391 = vmatmul.mubr.f32.gmra.mxu0 %v324
    %v392 = vpop.f32.mrf.mxu0
    %v393 = vadd.f32 0.0, %v392
    %v394 = vpop.f32.mrf.mxu0
    %395 = vdwg.mxu0
    %v397 = vsel %vm229, %v319, 0
    %399 = vmatprep.subr.mxu0 0.0
    %400 = vmatpush1.msra.mxu0 0.0
    %401 = vmatprep.subr.mxu0 0.0
    %402 = vmatpush1.msra.mxu0 0.0
    %403 = vmatprep.subr.mxu0 0.0
    %404 = vmatpush1.msra.mxu0 0.0
    %405 = vmatprep.subr.mxu0 0.0
    %406 = vmatpush1.msra.mxu0 0.0
    %407 = vmatprep.subr.mxu0 0.0
    %408 = vmatpush1.msra.mxu0 0.0
    %409 = vmatprep.subr.mxu0 0.0
    %410 = vmatpush1.msra.mxu0 0.0
    %411 = vmatprep.subr.mxu0 0.0
    %412 = vmatpush1.msra.mxu0 0.0
    %413 = vmatprep.subr.mxu0 0.0
    %414 = vmatpush1.msra.mxu0 0.0
    %415 = vmatprep.subr.mxu0 0.0
    %416 = vmatpush1.msra.mxu0 0.0
    %417 = vmatprep.subr.mxu0 0.0
    %418 = vmatpush1.msra.mxu0 0.0
    %419 = vmatprep.subr.mxu0 0.0
    %420 = vmatpush1.msra.mxu0 0.0
    %421 = vmatprep.subr.mxu0 0.0
    %422 = vmatpush1.msra.mxu0 0.0
    %423 = vmatprep.subr.mxu0 0.0
    %424 = vmatpush1.msra.mxu0 0.0
    %425 = vmatprep.subr.mxu0 0.0
    %426 = vmatpush1.msra.mxu0 0.0
    %427 = vmatprep.subr.mxu0 0.0
    %428 = vmatpush1.msra.mxu0 0.0
    %429 = vmatprep.subr.mxu0 0.0
    %430 = vmatpush1.msra.mxu0 %v320
    %431 = vmatprep.subr.mxu0 0.0
    %432 = vmatpush2.msra.mxu0 0.0
    %433 = vmatprep.subr.mxu0 0.0
    %434 = vmatpush2.msra.mxu0 0.0
    %435 = vmatprep.subr.mxu0 0.0
    %436 = vmatpush2.msra.mxu0 0.0
    %437 = vmatprep.subr.mxu0 0.0
    %438 = vmatpush2.msra.mxu0 0.0
    %439 = vmatprep.subr.mxu0 0.0
    %440 = vmatpush2.msra.mxu0 0.0
    %441 = vmatprep.subr.mxu0 0.0
    %442 = vmatpush2.msra.mxu0 0.0
    %443 = vmatprep.subr.mxu0 0.0
    %444 = vmatpush2.msra.mxu0 0.0
    %445 = vmatprep.subr.mxu0 0.0
    %446 = vmatpush2.msra.mxu0 0.0
    %447 = vmatprep.subr.mxu0 0.0
    %448 = vmatpush2.msra.mxu0 0.0
    %449 = vmatprep.subr.mxu0 0.0
    %450 = vmatpush2.msra.mxu0 0.0
    %451 = vmatprep.subr.mxu0 0.0
    %452 = vmatpush2.msra.mxu0 0.0
    %453 = vmatprep.subr.mxu0 0.0
    %454 = vmatpush2.msra.mxu0 0.0
    %455 = vmatprep.subr.mxu0 0.0
    %456 = vmatpush2.msra.mxu0 0.0
    %457 = vmatprep.subr.mxu0 0.0
    %458 = vmatpush2.msra.mxu0 0.0
    %459 = vmatprep.subr.mxu0 0.0
    %460 = vmatpush2.msra.mxu0 0.0
    %461 = vmatprep.subr.mxu0 0.0
    %462 = vmatpush2.msra.mxu0 0.0
    %463 = vmatprep.mubr.f32.mxu0 0.0
    %464 = vmatmul.mubr.f32.gmra.mxu0 %v397
    %v465 = vpop.f32.mrf.mxu0
    %v466 = vadd.f32 %v393, %v465
    %v467 = vpop.f32.mrf.mxu0
    %468 = vdwg.mxu0
    %v469 = vld [vmem:[%s1] sm:$0xff]
    %v470 = vld [vmem:[%s1 + $0x8] sm:$0xff]
    %v471 = vld [vmem:[%s1 + $0x10] sm:$0xff]
    %v472 = vld [vmem:[#allocation10] sm:$0x1]
    %v474 = vlaneseq
    %v475 = vshrl.u32 %v474, 7
    %v476 = vsub.s32 0, %v475
    %v477 = vrot.slane %v472, %v476
    %v479 = vld [vmem:[#allocation12] sm:$0x1]
    %v481 = vlaneseq
    %v482 = vshrl.u32 %v481, 7
    %v483 = vsub.s32 0, %v482
    %v484 = vrot.slane %v479, %v483
    %v486 = vld [vmem:[%s15] sm:$0x1]
    %v488 = vlaneseq
    %v489 = vshrl.u32 %v488, 7
    %v490 = vsub.s32 0, %v489
    %v491 = vrot.slane %v486, %v490
    %v493 = vld [vmem:[#allocation15] sm:$0x1]
    %v495 = vlaneseq
    %v496 = vshrl.u32 %v495, 7
    %v497 = vsub.s32 0, %v496
    %v498 = vrot.slane %v493, %v497
    %v500 = vld [vmem:[#allocation18] sm:$0x1]
    %v502 = vlaneseq
    %v503 = vshrl.u32 %v502, 7
    %v504 = vsub.s32 0, %v503
    %v505 = vrot.slane %v500, %v504
    %v507 = vld [vmem:[#allocation19] sm:$0x1]
    %v509 = vlaneseq
    %v510 = vshrl.u32 %v509, 7
    %v511 = vsub.s32 0, %v510
    %v512 = vrot.slane %v507, %v511
    %v514 = vadd.f32 %v306, %v466
    %v515 = vmax.f32 %v514, 0.0
    %v516 = vld [vmem:[%s9] sm:$0xff]
    %v517 = vld [vmem:[%s9 + $0x8] sm:$0xff]
    %v518 = vld [vmem:[%s9 + $0x10] sm:$0xff]
    %v519 = vld [vmem:[%s9 + $0x18] sm:$0xff]
    %vm520 = vcmask 261120
    %v522 = vsel %vm520, %v515, 0
    %524 = vmatprep.subr.mxu0 0.0
    %525 = vmatpush1.msra.mxu0 0.0
    %526 = vmatprep.subr.mxu0 0.0
    %527 = vmatpush1.msra.mxu0 0.0
    %528 = vmatprep.subr.mxu0 0.0
    %529 = vmatpush1.msra.mxu0 0.0
    %530 = vmatprep.subr.mxu0 0.0
    %531 = vmatpush1.msra.mxu0 0.0
    %532 = vmatprep.subr.mxu0 0.0
    %533 = vmatpush1.msra.mxu0 0.0
    %534 = vmatprep.subr.mxu0 0.0
    %535 = vmatpush1.msra.mxu0 0.0
    %536 = vmatprep.subr.mxu0 0.0
    %537 = vmatpush1.msra.mxu0 0.0
    %538 = vmatprep.subr.mxu0 0.0
    %539 = vmatpush1.msra.mxu0 0.0
    %540 = vmatprep.subr.mxu0 0.0
    %541 = vmatpush1.msra.mxu0 0.0
    %542 = vmatprep.subr.mxu0 0.0
    %543 = vmatpush1.msra.mxu0 0.0
    %544 = vmatprep.subr.mxu0 0.0
    %545 = vmatpush1.msra.mxu0 0.0
    %546 = vmatprep.subr.mxu0 0.0
    %547 = vmatpush1.msra.mxu0 0.0
    %548 = vmatprep.subr.mxu0 0.0
    %549 = vmatpush1.msra.mxu0 %v519
    %550 = vmatprep.subr.mxu0 0.0
    %551 = vmatpush1.msra.mxu0 %v518
    %552 = vmatprep.subr.mxu0 0.0
    %553 = vmatpush1.msra.mxu0 %v517
    %554 = vmatprep.subr.mxu0 0.0
    %555 = vmatpush1.msra.mxu0 %v516
    %556 = vmatprep.subr.mxu0 0.0
    %557 = vmatpush2.msra.mxu0 0.0
    %558 = vmatprep.subr.mxu0 0.0
    %559 = vmatpush2.msra.mxu0 0.0
    %560 = vmatprep.subr.mxu0 0.0
    %561 = vmatpush2.msra.mxu0 0.0
    %562 = vmatprep.subr.mxu0 0.0
    %563 = vmatpush2.msra.mxu0 0.0
    %564 = vmatprep.subr.mxu0 0.0
    %565 = vmatpush2.msra.mxu0 0.0
    %566 = vmatprep.subr.mxu0 0.0
    %567 = vmatpush2.msra.mxu0 0.0
    %568 = vmatprep.subr.mxu0 0.0
    %569 = vmatpush2.msra.mxu0 0.0
    %570 = vmatprep.subr.mxu0 0.0
    %571 = vmatpush2.msra.mxu0 0.0
    %572 = vmatprep.subr.mxu0 0.0
    %573 = vmatpush2.msra.mxu0 0.0
    %574 = vmatprep.subr.mxu0 0.0
    %575 = vmatpush2.msra.mxu0 0.0
    %576 = vmatprep.subr.mxu0 0.0
    %577 = vmatpush2.msra.mxu0 0.0
    %578 = vmatprep.subr.mxu0 0.0
    %579 = vmatpush2.msra.mxu0 0.0
    %580 = vmatprep.subr.mxu0 0.0
    %581 = vmatpush2.msra.mxu0 0.0
    %582 = vmatprep.subr.mxu0 0.0
    %583 = vmatpush2.msra.mxu0 0.0
    %584 = vmatprep.subr.mxu0 0.0
    %585 = vmatpush2.msra.mxu0 0.0
    %586 = vmatprep.subr.mxu0 0.0
    %587 = vmatpush2.msra.mxu0 0.0
    %588 = vmatprep.mubr.f32.mxu0 0.0
    %589 = vmatmul.mubr.f32.gmra.mxu0 %v522
    %v590 = vpop.f32.mrf.mxu0
    %v591 = vadd.f32 %v477, %v590
    %v592 = vpop.f32.mrf.mxu0
    %593 = vdwg.mxu0
    %v594 = vmax.f32 %v591, 0.0
    %v595 = vld [vmem:[%s11] sm:$0xff]
    %v596 = vld [vmem:[%s11 + $0x8] sm:$0xff]
    %v597 = vld [vmem:[%s11 + $0x10] sm:$0xff]
    %v598 = vld [vmem:[%s11 + $0x18] sm:$0xff]
    %v600 = vsel %vm520, %v594, 0
    %602 = vmatprep.subr.mxu0 0.0
    %603 = vmatpush1.msra.mxu0 0.0
    %604 = vmatprep.subr.mxu0 0.0
    %605 = vmatpush1.msra.mxu0 0.0
    %606 = vmatprep.subr.mxu0 0.0
    %607 = vmatpush1.msra.mxu0 0.0
    %608 = vmatprep.subr.mxu0 0.0
    %609 = vmatpush1.msra.mxu0 0.0
    %610 = vmatprep.subr.mxu0 0.0
    %611 = vmatpush1.msra.mxu0 0.0
    %612 = vmatprep.subr.mxu0 0.0
    %613 = vmatpush1.msra.mxu0 0.0
    %614 = vmatprep.subr.mxu0 0.0
    %615 = vmatpush1.msra.mxu0 0.0
    %616 = vmatprep.subr.mxu0 0.0
    %617 = vmatpush1.msra.mxu0 0.0
    %618 = vmatprep.subr.mxu0 0.0
    %619 = vmatpush1.msra.mxu0 0.0
    %620 = vmatprep.subr.mxu0 0.0
    %621 = vmatpush1.msra.mxu0 0.0
    %622 = vmatprep.subr.mxu0 0.0
    %623 = vmatpush1.msra.mxu0 0.0
    %624 = vmatprep.subr.mxu0 0.0
    %625 = vmatpush1.msra.mxu0 0.0
    %626 = vmatprep.subr.mxu0 0.0
    %627 = vmatpush1.msra.mxu0 %v598
    %628 = vmatprep.subr.mxu0 0.0
    %629 = vmatpush1.msra.mxu0 %v597
    %630 = vmatprep.subr.mxu0 0.0
    %631 = vmatpush1.msra.mxu0 %v596
    %632 = vmatprep.subr.mxu0 0.0
    %633 = vmatpush1.msra.mxu0 %v595
    %634 = vmatprep.subr.mxu0 0.0
    %635 = vmatpush2.msra.mxu0 0.0
    %636 = vmatprep.subr.mxu0 0.0
    %637 = vmatpush2.msra.mxu0 0.0
    %638 = vmatprep.subr.mxu0 0.0
    %639 = vmatpush2.msra.mxu0 0.0
    %640 = vmatprep.subr.mxu0 0.0
    %641 = vmatpush2.msra.mxu0 0.0
    %642 = vmatprep.subr.mxu0 0.0
    %643 = vmatpush2.msra.mxu0 0.0
    %644 = vmatprep.subr.mxu0 0.0
    %645 = vmatpush2.msra.mxu0 0.0
    %646 = vmatprep.subr.mxu0 0.0
    %647 = vmatpush2.msra.mxu0 0.0
    %648 = vmatprep.subr.mxu0 0.0
    %649 = vmatpush2.msra.mxu0 0.0
    %650 = vmatprep.subr.mxu0 0.0
    %651 = vmatpush2.msra.mxu0 0.0
    %652 = vmatprep.subr.mxu0 0.0
    %653 = vmatpush2.msra.mxu0 0.0
    %654 = vmatprep.subr.mxu0 0.0
    %655 = vmatpush2.msra.mxu0 0.0
    %656 = vmatprep.subr.mxu0 0.0
    %657 = vmatpush2.msra.mxu0 0.0
    %658 = vmatprep.subr.mxu0 0.0
    %659 = vmatpush2.msra.mxu0 0.0
    %660 = vmatprep.subr.mxu0 0.0
    %661 = vmatpush2.msra.mxu0 0.0
    %662 = vmatprep.subr.mxu0 0.0
    %663 = vmatpush2.msra.mxu0 0.0
    %664 = vmatprep.subr.mxu0 0.0
    %665 = vmatpush2.msra.mxu0 0.0
    %666 = vmatprep.mubr.f32.mxu0 0.0
    %667 = vmatmul.mubr.f32.gmra.mxu0 %v600
    %v668 = vpop.f32.mrf.mxu0
    %v669 = vadd.f32 %v484, %v668
    %v670 = vpop.f32.mrf.mxu0
    %671 = vdwg.mxu0
    %v672 = vmax.f32 %v669, 0.0
    %v673 = vld [vmem:[%s13] sm:$0xff]
    %v674 = vld [vmem:[%s13 + $0x8] sm:$0xff]
    %v675 = vld [vmem:[%s13 + $0x10] sm:$0xff]
    %v676 = vld [vmem:[%s13 + $0x18] sm:$0xff]
    %v677 = vld [vmem:[%s14] sm:$0xff]
    %v678 = vld [vmem:[%s14 + $0x8] sm:$0xff]
    %v679 = vld [vmem:[%s14 + $0x10] sm:$0xff]
    %v680 = vld [vmem:[%s14 + $0x18] sm:$0xff]
    %v682 = vsel %vm520, 0.0, 0
    %684 = vmatprep.subr.mxu0 0.0
    %685 = vmatpush1.msra.mxu0 0.0
    %686 = vmatprep.subr.mxu0 0.0
    %687 = vmatpush1.msra.mxu0 0.0
    %688 = vmatprep.subr.mxu0 0.0
    %689 = vmatpush1.msra.mxu0 0.0
    %690 = vmatprep.subr.mxu0 0.0
    %691 = vmatpush1.msra.mxu0 0.0
    %692 = vmatprep.subr.mxu0 0.0
    %693 = vmatpush1.msra.mxu0 0.0
    %694 = vmatprep.subr.mxu0 0.0
    %695 = vmatpush1.msra.mxu0 0.0
    %696 = vmatprep.subr.mxu0 0.0
    %697 = vmatpush1.msra.mxu0 0.0
    %698 = vmatprep.subr.mxu0 0.0
    %699 = vmatpush1.msra.mxu0 0.0
    %700 = vmatprep.subr.mxu0 0.0
    %701 = vmatpush1.msra.mxu0 0.0
    %702 = vmatprep.subr.mxu0 0.0
    %703 = vmatpush1.msra.mxu0 0.0
    %704 = vmatprep.subr.mxu0 0.0
    %705 = vmatpush1.msra.mxu0 0.0
    %706 = vmatprep.subr.mxu0 0.0
    %707 = vmatpush1.msra.mxu0 0.0
    %708 = vmatprep.subr.mxu0 0.0
    %709 = vmatpush1.msra.mxu0 %v680
    %710 = vmatprep.subr.mxu0 0.0
    %711 = vmatpush1.msra.mxu0 %v679
    %712 = vmatprep.subr.mxu0 0.0
    %713 = vmatpush1.msra.mxu0 %v678
    %714 = vmatprep.subr.mxu0 0.0
    %715 = vmatpush1.msra.mxu0 %v677
    %716 = vmatprep.subr.mxu0 0.0
    %717 = vmatpush2.msra.mxu0 0.0
    %718 = vmatprep.subr.mxu0 0.0
    %719 = vmatpush2.msra.mxu0 0.0
    %720 = vmatprep.subr.mxu0 0.0
    %721 = vmatpush2.msra.mxu0 0.0
    %722 = vmatprep.subr.mxu0 0.0
    %723 = vmatpush2.msra.mxu0 0.0
    %724 = vmatprep.subr.mxu0 0.0
    %725 = vmatpush2.msra.mxu0 0.0
    %726 = vmatprep.subr.mxu0 0.0
    %727 = vmatpush2.msra.mxu0 0.0
    %728 = vmatprep.subr.mxu0 0.0
    %729 = vmatpush2.msra.mxu0 0.0
    %730 = vmatprep.subr.mxu0 0.0
    %731 = vmatpush2.msra.mxu0 0.0
    %732 = vmatprep.subr.mxu0 0.0
    %733 = vmatpush2.msra.mxu0 0.0
    %734 = vmatprep.subr.mxu0 0.0
    %735 = vmatpush2.msra.mxu0 0.0
    %736 = vmatprep.subr.mxu0 0.0
    %737 = vmatpush2.msra.mxu0 0.0
    %738 = vmatprep.subr.mxu0 0.0
    %739 = vmatpush2.msra.mxu0 0.0
    %740 = vmatprep.subr.mxu0 0.0
    %741 = vmatpush2.msra.mxu0 0.0
    %742 = vmatprep.subr.mxu0 0.0
    %743 = vmatpush2.msra.mxu0 0.0
    %744 = vmatprep.subr.mxu0 0.0
    %745 = vmatpush2.msra.mxu0 0.0
    %746 = vmatprep.subr.mxu0 0.0
    %747 = vmatpush2.msra.mxu0 0.0
    %748 = vmatprep.mubr.f32.mxu0 0.0
    %749 = vmatmul.mubr.f32.gmra.mxu0 %v682
    %v750 = vpop.f32.mrf.mxu0
    %v751 = vadd.f32 0.0, %v750
    %v752 = vpop.f32.mrf.mxu0
    %753 = vdwg.mxu0
    %v755 = vsel %vm520, %v672, 0
    %757 = vmatprep.subr.mxu0 0.0
    %758 = vmatpush1.msra.mxu0 0.0
    %759 = vmatprep.subr.mxu0 0.0
    %760 = vmatpush1.msra.mxu0 0.0
    %761 = vmatprep.subr.mxu0 0.0
    %762 = vmatpush1.msra.mxu0 0.0
    %763 = vmatprep.subr.mxu0 0.0
    %764 = vmatpush1.msra.mxu0 0.0
    %765 = vmatprep.subr.mxu0 0.0
    %766 = vmatpush1.msra.mxu0 0.0
    %767 = vmatprep.subr.mxu0 0.0
    %768 = vmatpush1.msra.mxu0 0.0
    %769 = vmatprep.subr.mxu0 0.0
    %770 = vmatpush1.msra.mxu0 0.0
    %771 = vmatprep.subr.mxu0 0.0
    %772 = vmatpush1.msra.mxu0 0.0
    %773 = vmatprep.subr.mxu0 0.0
    %774 = vmatpush1.msra.mxu0 0.0
    %775 = vmatprep.subr.mxu0 0.0
    %776 = vmatpush1.msra.mxu0 0.0
    %777 = vmatprep.subr.mxu0 0.0
    %778 = vmatpush1.msra.mxu0 0.0
    %779 = vmatprep.subr.mxu0 0.0
    %780 = vmatpush1.msra.mxu0 0.0
    %781 = vmatprep.subr.mxu0 0.0
    %782 = vmatpush1.msra.mxu0 %v676
    %783 = vmatprep.subr.mxu0 0.0
    %784 = vmatpush1.msra.mxu0 %v675
    %785 = vmatprep.subr.mxu0 0.0
    %786 = vmatpush1.msra.mxu0 %v674
    %787 = vmatprep.subr.mxu0 0.0
    %788 = vmatpush1.msra.mxu0 %v673
    %789 = vmatprep.subr.mxu0 0.0
    %790 = vmatpush2.msra.mxu0 0.0
    %791 = vmatprep.subr.mxu0 0.0
    %792 = vmatpush2.msra.mxu0 0.0
    %793 = vmatprep.subr.mxu0 0.0
    %794 = vmatpush2.msra.mxu0 0.0
    %795 = vmatprep.subr.mxu0 0.0
    %796 = vmatpush2.msra.mxu0 0.0
    %797 = vmatprep.subr.mxu0 0.0
    %798 = vmatpush2.msra.mxu0 0.0
    %799 = vmatprep.subr.mxu0 0.0
    %800 = vmatpush2.msra.mxu0 0.0
    %801 = vmatprep.subr.mxu0 0.0
    %802 = vmatpush2.msra.mxu0 0.0
    %803 = vmatprep.subr.mxu0 0.0
    %804 = vmatpush2.msra.mxu0 0.0
    %805 = vmatprep.subr.mxu0 0.0
    %806 = vmatpush2.msra.mxu0 0.0
    %807 = vmatprep.subr.mxu0 0.0
    %808 = vmatpush2.msra.mxu0 0.0
    %809 = vmatprep.subr.mxu0 0.0
    %810 = vmatpush2.msra.mxu0 0.0
    %811 = vmatprep.subr.mxu0 0.0
    %812 = vmatpush2.msra.mxu0 0.0
    %813 = vmatprep.subr.mxu0 0.0
    %814 = vmatpush2.msra.mxu0 0.0
    %815 = vmatprep.subr.mxu0 0.0
    %816 = vmatpush2.msra.mxu0 0.0
    %817 = vmatprep.subr.mxu0 0.0
    %818 = vmatpush2.msra.mxu0 0.0
    %819 = vmatprep.subr.mxu0 0.0
    %820 = vmatpush2.msra.mxu0 0.0
    %821 = vmatprep.mubr.f32.mxu0 0.0
    %822 = vmatmul.mubr.f32.gmra.mxu0 %v755
    %v823 = vpop.f32.mrf.mxu0
    %v824 = vadd.f32 %v751, %v823
    %v825 = vpop.f32.mrf.mxu0
    %826 = vdwg.mxu0
    %v827 = vadd.f32 %v824, %v491
    %v828 = vtanh.pop %v827
    %v829 = vmax.f32 %v828, 0.0
    %v830 = vld [vmem:[#allocation13] sm:$0xff]
    %v831 = vld [vmem:[#allocation13 + $0x8] sm:$0xff]
    %v832 = vld [vmem:[#allocation13 + $0x10] sm:$0xff]
    %v833 = vld [vmem:[#allocation13 + $0x18] sm:$0xff]
    %v835 = vsel %vm520, %v829, 0
    %837 = vmatprep.subr.mxu0 0.0
    %838 = vmatpush1.msra.mxu0 0.0
    %839 = vmatprep.subr.mxu0 0.0
    %840 = vmatpush1.msra.mxu0 0.0
    %841 = vmatprep.subr.mxu0 0.0
    %842 = vmatpush1.msra.mxu0 0.0
    %843 = vmatprep.subr.mxu0 0.0
    %844 = vmatpush1.msra.mxu0 0.0
    %845 = vmatprep.subr.mxu0 0.0
    %846 = vmatpush1.msra.mxu0 0.0
    %847 = vmatprep.subr.mxu0 0.0
    %848 = vmatpush1.msra.mxu0 0.0
    %849 = vmatprep.subr.mxu0 0.0
    %850 = vmatpush1.msra.mxu0 0.0
    %851 = vmatprep.subr.mxu0 0.0
    %852 = vmatpush1.msra.mxu0 0.0
    %853 = vmatprep.subr.mxu0 0.0
    %854 = vmatpush1.msra.mxu0 0.0
    %855 = vmatprep.subr.mxu0 0.0
    %856 = vmatpush1.msra.mxu0 0.0
    %857 = vmatprep.subr.mxu0 0.0
    %858 = vmatpush1.msra.mxu0 0.0
    %859 = vmatprep.subr.mxu0 0.0
    %860 = vmatpush1.msra.mxu0 0.0
    %861 = vmatprep.subr.mxu0 0.0
    %862 = vmatpush1.msra.mxu0 %v833
    %863 = vmatprep.subr.mxu0 0.0
    %864 = vmatpush1.msra.mxu0 %v832
    %865 = vmatprep.subr.mxu0 0.0
    %866 = vmatpush1.msra.mxu0 %v831
    %867 = vmatprep.subr.mxu0 0.0
    %868 = vmatpush1.msra.mxu0 %v830
    %869 = vmatprep.subr.mxu0 0.0
    %870 = vmatpush2.msra.mxu0 0.0
    %871 = vmatprep.subr.mxu0 0.0
    %872 = vmatpush2.msra.mxu0 0.0
    %873 = vmatprep.subr.mxu0 0.0
    %874 = vmatpush2.msra.mxu0 0.0
    %875 = vmatprep.subr.mxu0 0.0
    %876 = vmatpush2.msra.mxu0 0.0
    %877 = vmatprep.subr.mxu0 0.0
    %878 = vmatpush2.msra.mxu0 0.0
    %879 = vmatprep.subr.mxu0 0.0
    %880 = vmatpush2.msra.mxu0 0.0
    %881 = vmatprep.subr.mxu0 0.0
    %882 = vmatpush2.msra.mxu0 0.0
    %883 = vmatprep.subr.mxu0 0.0
    %884 = vmatpush2.msra.mxu0 0.0
    %885 = vmatprep.subr.mxu0 0.0
    %886 = vmatpush2.msra.mxu0 0.0
    %887 = vmatprep.subr.mxu0 0.0
    %888 = vmatpush2.msra.mxu0 0.0
    %889 = vmatprep.subr.mxu0 0.0
    %890 = vmatpush2.msra.mxu0 0.0
    %891 = vmatprep.subr.mxu0 0.0
    %892 = vmatpush2.msra.mxu0 0.0
    %893 = vmatprep.subr.mxu0 0.0
    %894 = vmatpush2.msra.mxu0 0.0
    %895 = vmatprep.subr.mxu0 0.0
    %896 = vmatpush2.msra.mxu0 0.0
    %897 = vmatprep.subr.mxu0 0.0
    %898 = vmatpush2.msra.mxu0 0.0
    %899 = vmatprep.subr.mxu0 0.0
    %900 = vmatpush2.msra.mxu0 0.0
    %901 = vmatprep.mubr.f32.mxu0 0.0
    %902 = vmatmul.mubr.f32.gmra.mxu0 %v835
    %v903 = vpop.f32.mrf.mxu0
    %v904 = vadd.f32 %v498, %v903
    %v905 = vpop.f32.mrf.mxu0
    %906 = vdwg.mxu0
    %v907 = vmax.f32 %v904, 0.0
    %v908 = vld [vmem:[#allocation16] sm:$0xff]
    %v909 = vld [vmem:[#allocation16 + $0x8] sm:$0xff]
    %v910 = vld [vmem:[#allocation16 + $0x10] sm:$0xff]
    %v911 = vld [vmem:[#allocation16 + $0x18] sm:$0xff]
    %v913 = vsel %vm520, %v907, 0
    %915 = vmatprep.subr.mxu0 0.0
    %916 = vmatpush1.msra.mxu0 0.0
    %917 = vmatprep.subr.mxu0 0.0
    %918 = vmatpush1.msra.mxu0 0.0
    %919 = vmatprep.subr.mxu0 0.0
    %920 = vmatpush1.msra.mxu0 0.0
    %921 = vmatprep.subr.mxu0 0.0
    %922 = vmatpush1.msra.mxu0 0.0
    %923 = vmatprep.subr.mxu0 0.0
    %924 = vmatpush1.msra.mxu0 0.0
    %925 = vmatprep.subr.mxu0 0.0
    %926 = vmatpush1.msra.mxu0 0.0
    %927 = vmatprep.subr.mxu0 0.0
    %928 = vmatpush1.msra.mxu0 0.0
    %929 = vmatprep.subr.mxu0 0.0
    %930 = vmatpush1.msra.mxu0 0.0
    %931 = vmatprep.subr.mxu0 0.0
    %932 = vmatpush1.msra.mxu0 0.0
    %933 = vmatprep.subr.mxu0 0.0
    %934 = vmatpush1.msra.mxu0 0.0
    %935 = vmatprep.subr.mxu0 0.0
    %936 = vmatpush1.msra.mxu0 0.0
    %937 = vmatprep.subr.mxu0 0.0
    %938 = vmatpush1.msra.mxu0 0.0
    %939 = vmatprep.subr.mxu0 0.0
    %940 = vmatpush1.msra.mxu0 %v911
    %941 = vmatprep.subr.mxu0 0.0
    %942 = vmatpush1.msra.mxu0 %v910
    %943 = vmatprep.subr.mxu0 0.0
    %944 = vmatpush1.msra.mxu0 %v909
    %945 = vmatprep.subr.mxu0 0.0
    %946 = vmatpush1.msra.mxu0 %v908
    %947 = vmatprep.subr.mxu0 0.0
    %948 = vmatpush2.msra.mxu0 0.0
    %949 = vmatprep.subr.mxu0 0.0
    %950 = vmatpush2.msra.mxu0 0.0
    %951 = vmatprep.subr.mxu0 0.0
    %952 = vmatpush2.msra.mxu0 0.0
    %953 = vmatprep.subr.mxu0 0.0
    %954 = vmatpush2.msra.mxu0 0.0
    %955 = vmatprep.subr.mxu0 0.0
    %956 = vmatpush2.msra.mxu0 0.0
    %957 = vmatprep.subr.mxu0 0.0
    %958 = vmatpush2.msra.mxu0 0.0
    %959 = vmatprep.subr.mxu0 0.0
    %960 = vmatpush2.msra.mxu0 0.0
    %961 = vmatprep.subr.mxu0 0.0
    %962 = vmatpush2.msra.mxu0 0.0
    %963 = vmatprep.subr.mxu0 0.0
    %964 = vmatpush2.msra.mxu0 0.0
    %965 = vmatprep.subr.mxu0 0.0
    %966 = vmatpush2.msra.mxu0 0.0
    %967 = vmatprep.subr.mxu0 0.0
    %968 = vmatpush2.msra.mxu0 0.0
    %969 = vmatprep.subr.mxu0 0.0
    %970 = vmatpush2.msra.mxu0 0.0
    %971 = vmatprep.subr.mxu0 0.0
    %972 = vmatpush2.msra.mxu0 0.0
    %973 = vmatprep.subr.mxu0 0.0
    %974 = vmatpush2.msra.mxu0 0.0
    %975 = vmatprep.subr.mxu0 0.0
    %976 = vmatpush2.msra.mxu0 0.0
    %977 = vmatprep.subr.mxu0 0.0
    %978 = vmatpush2.msra.mxu0 0.0
    %979 = vmatprep.mubr.f32.mxu0 0.0
    %980 = vmatmul.mubr.f32.gmra.mxu0 %v913
    %v981 = vpop.f32.mrf.mxu0
    %v982 = vadd.f32 %v505, %v981
    %v983 = vpop.f32.mrf.mxu0
    %984 = vdwg.mxu0
    %v985 = vmax.f32 %v982, 0.0
    %v986 = vld [vmem:[%s20] sm:$0xff]
    %v987 = vld [vmem:[%s20 + $0x8] sm:$0xff]
    %v988 = vld [vmem:[%s20 + $0x10] sm:$0xff]
    %v989 = vld [vmem:[%s20 + $0x18] sm:$0xff]
    %v991 = vsel %vm520, %v985, 0
    %993 = vmatprep.subr.mxu0 0.0
    %994 = vmatpush1.msra.mxu0 0.0
    %995 = vmatprep.subr.mxu0 0.0
    %996 = vmatpush1.msra.mxu0 0.0
    %997 = vmatprep.subr.mxu0 0.0
    %998 = vmatpush1.msra.mxu0 0.0
    %999 = vmatprep.subr.mxu0 0.0
    %1000 = vmatpush1.msra.mxu0 0.0
    %1001 = vmatprep.subr.mxu0 0.0
    %1002 = vmatpush1.msra.mxu0 0.0
    %1003 = vmatprep.subr.mxu0 0.0
    %1004 = vmatpush1.msra.mxu0 0.0
    %1005 = vmatprep.subr.mxu0 0.0
    %1006 = vmatpush1.msra.mxu0 0.0
    %1007 = vmatprep.subr.mxu0 0.0
    %1008 = vmatpush1.msra.mxu0 0.0
    %1009 = vmatprep.subr.mxu0 0.0
    %1010 = vmatpush1.msra.mxu0 0.0
    %1011 = vmatprep.subr.mxu0 0.0
    %1012 = vmatpush1.msra.mxu0 0.0
    %1013 = vmatprep.subr.mxu0 0.0
    %1014 = vmatpush1.msra.mxu0 0.0
    %1015 = vmatprep.subr.mxu0 0.0
    %1016 = vmatpush1.msra.mxu0 0.0
    %1017 = vmatprep.subr.mxu0 0.0
    %1018 = vmatpush1.msra.mxu0 %v989
    %1019 = vmatprep.subr.mxu0 0.0
    %1020 = vmatpush1.msra.mxu0 %v988
    %1021 = vmatprep.subr.mxu0 0.0
    %1022 = vmatpush1.msra.mxu0 %v987
    %1023 = vmatprep.subr.mxu0 0.0
    %1024 = vmatpush1.msra.mxu0 %v986
    %1025 = vmatprep.subr.mxu0 0.0
    %1026 = vmatpush2.msra.mxu0 0.0
    %1027 = vmatprep.subr.mxu0 0.0
    %1028 = vmatpush2.msra.mxu0 0.0
    %1029 = vmatprep.subr.mxu0 0.0
    %1030 = vmatpush2.msra.mxu0 0.0
    %1031 = vmatprep.subr.mxu0 0.0
    %1032 = vmatpush2.msra.mxu0 0.0
    %1033 = vmatprep.subr.mxu0 0.0
    %1034 = vmatpush2.msra.mxu0 0.0
    %1035 = vmatprep.subr.mxu0 0.0
    %1036 = vmatpush2.msra.mxu0 0.0
    %1037 = vmatprep.subr.mxu0 0.0
    %1038 = vmatpush2.msra.mxu0 0.0
    %1039 = vmatprep.subr.mxu0 0.0
    %1040 = vmatpush2.msra.mxu0 0.0
    %1041 = vmatprep.subr.mxu0 0.0
    %1042 = vmatpush2.msra.mxu0 0.0
    %1043 = vmatprep.subr.mxu0 0.0
    %1044 = vmatpush2.msra.mxu0 0.0
    %1045 = vmatprep.subr.mxu0 0.0
    %1046 = vmatpush2.msra.mxu0 0.0
    %1047 = vmatprep.subr.mxu0 0.0
    %1048 = vmatpush2.msra.mxu0 0.0
    %1049 = vmatprep.subr.mxu0 0.0
    %1050 = vmatpush2.msra.mxu0 0.0
    %1051 = vmatprep.subr.mxu0 0.0
    %1052 = vmatpush2.msra.mxu0 0.0
    %1053 = vmatprep.subr.mxu0 0.0
    %1054 = vmatpush2.msra.mxu0 0.0
    %1055 = vmatprep.subr.mxu0 0.0
    %1056 = vmatpush2.msra.mxu0 0.0
    %1057 = vmatprep.mubr.f32.mxu0 0.0
    %1058 = vmatmul.mubr.f32.gmra.mxu0 %v991
    %v1059 = vpop.f32.mrf.mxu0
    %v1060 = vadd.f32 %v512, %v1059
    %v1061 = vpop.f32.mrf.mxu0
    %1062 = vdwg.mxu0
    %1064 = vset.pattern.permute.xlu0 0
    %1065 = vperm.xlu0 %1064, %v469
    %v1066 = vpop.permute.xlu0 %1065
    %v1068 = vmul.f32 %v1060, %v1066
    %v1071 = vunpack.c.l.s4 1966171168
    %v1072 = vunpack.c.0.s8 %v1071
    %v1073 = vlaneseq
    %v1074 = vshrl.u32 %v1073, 7
    %v1075 = vsub.s32 %v1072, %v1074
    %v1076 = vrot.slane %v1068, %v1075
    %v1077 = vcombine.high %v1076, %v1076
    %v1079 = vunpack.c.l.s4 1966171168
    %v1080 = vunpack.c.0.s8 %v1079
    %v1081 = vlaneseq
    %v1082 = vshrl.u32 %v1081, 7
    %v1083 = vsub.s32 %v1080, %v1082
    %v1084 = vrot.slane %v1076, %v1083
    %v1086 = vunpack.c.l.s4 1966171168
    %v1087 = vunpack.c.0.s8 %v1086
    %v1088 = vlaneseq
    %v1089 = vshrl.u32 %v1088, 7
    %v1090 = vsub.s32 %v1087, %v1089
    %v1091 = vrot.slane %v1077, %v1090
    %v1092 = vcombine.high %v1084, %v1084
    %v1093 = vcombine.high %v1091, %v1091
    %vm1098 = vcmask 57344
    %1099 = vst.msk [vmem:[%s22] sm:$0x1] %vm1098, %v1084
    %1100 = vst.msk [vmem:[%s22 + $0x8] sm:$0x1] %vm1098, %v1091
    %1101 = vst.msk [vmem:[%s22 + $0x10] sm:$0x1] %vm1098, %v1092
    %1102 = vst.msk [vmem:[%s22 + $0x18] sm:$0x1] %vm1098, %v1093
    %v1103 = vmul.f32 %v669, %v1066
    %v1106 = vunpack.c.l.s4 1966171168
    %v1107 = vunpack.c.0.s8 %v1106
    %v1108 = vlaneseq
    %v1109 = vshrl.u32 %v1108, 7
    %v1110 = vsub.s32 %v1107, %v1109
    %v1111 = vrot.slane %v1103, %v1110
    %v1112 = vcombine.high %v1111, %v1111
    %v1114 = vunpack.c.l.s4 1966171168
    %v1115 = vunpack.c.0.s8 %v1114
    %v1116 = vlaneseq
    %v1117 = vshrl.u32 %v1116, 7
    %v1118 = vsub.s32 %v1115, %v1117
    %v1119 = vrot.slane %v1111, %v1118
    %v1121 = vunpack.c.l.s4 1966171168
    %v1122 = vunpack.c.0.s8 %v1121
    %v1123 = vlaneseq
    %v1124 = vshrl.u32 %v1123, 7
    %v1125 = vsub.s32 %v1122, %v1124
    %v1126 = vrot.slane %v1112, %v1125
    %v1127 = vcombine.high %v1119, %v1119
    %v1128 = vcombine.high %v1126, %v1126
    %vm1133 = vcmask 253952
    %1134 = vst.msk [vmem:[%s23] sm:$0x1] %vm1133, %v1119
    %1135 = vst.msk [vmem:[%s23 + $0x8] sm:$0x1] %vm1133, %v1126
    %1136 = vst.msk [vmem:[%s23 + $0x10] sm:$0x1] %vm1133, %v1127
    %1137 = vst.msk [vmem:[%s23 + $0x18] sm:$0x1] %vm1133, %v1128
    %v1138 = vld [vmem:[%s8] sm:$0xff]
    %v1140 = vsel %vm229, %v1060, 0
    %1142 = vmatprep.subr.mxu0 0.0
    %1143 = vmatpush1.msra.mxu0 0.0
    %1144 = vmatprep.subr.mxu0 0.0
    %1145 = vmatpush1.msra.mxu0 0.0
    %1146 = vmatprep.subr.mxu0 0.0
    %1147 = vmatpush1.msra.mxu0 0.0
    %1148 = vmatprep.subr.mxu0 0.0
    %1149 = vmatpush1.msra.mxu0 0.0
    %1150 = vmatprep.subr.mxu0 0.0
    %1151 = vmatpush1.msra.mxu0 0.0
    %1152 = vmatprep.subr.mxu0 0.0
    %1153 = vmatpush1.msra.mxu0 0.0
    %1154 = vmatprep.subr.mxu0 0.0
    %1155 = vmatpush1.msra.mxu0 0.0
    %1156 = vmatprep.subr.mxu0 0.0
    %1157 = vmatpush1.msra.mxu0 0.0
    %1158 = vmatprep.subr.mxu0 0.0
    %1159 = vmatpush1.msra.mxu0 0.0
    %1160 = vmatprep.subr.mxu0 0.0
    %1161 = vmatpush1.msra.mxu0 0.0
    %1162 = vmatprep.subr.mxu0 0.0
    %1163 = vmatpush1.msra.mxu0 0.0
    %1164 = vmatprep.subr.mxu0 0.0
    %1165 = vmatpush1.msra.mxu0 0.0
    %1166 = vmatprep.subr.mxu0 0.0
    %1167 = vmatpush1.msra.mxu0 0.0
    %1168 = vmatprep.subr.mxu0 0.0
    %1169 = vmatpush1.msra.mxu0 0.0
    %1170 = vmatprep.subr.mxu0 0.0
    %1171 = vmatpush1.msra.mxu0 0.0
    %1172 = vmatprep.subr.mxu0 0.0
    %1173 = vmatpush1.msra.mxu0 %v1138
    %1174 = vmatprep.subr.mxu0 0.0
    %1175 = vmatpush2.msra.mxu0 0.0
    %1176 = vmatprep.subr.mxu0 0.0
    %1177 = vmatpush2.msra.mxu0 0.0
    %1178 = vmatprep.subr.mxu0 0.0
    %1179 = vmatpush2.msra.mxu0 0.0
    %1180 = vmatprep.subr.mxu0 0.0
    %1181 = vmatpush2.msra.mxu0 0.0
    %1182 = vmatprep.subr.mxu0 0.0
    %1183 = vmatpush2.msra.mxu0 0.0
    %1184 = vmatprep.subr.mxu0 0.0
    %1185 = vmatpush2.msra.mxu0 0.0
    %1186 = vmatprep.subr.mxu0 0.0
    %1187 = vmatpush2.msra.mxu0 0.0
    %1188 = vmatprep.subr.mxu0 0.0
    %1189 = vmatpush2.msra.mxu0 0.0
    %1190 = vmatprep.subr.mxu0 0.0
    %1191 = vmatpush2.msra.mxu0 0.0
    %1192 = vmatprep.subr.mxu0 0.0
    %1193 = vmatpush2.msra.mxu0 0.0
    %1194 = vmatprep.subr.mxu0 0.0
    %1195 = vmatpush2.msra.mxu0 0.0
    %1196 = vmatprep.subr.mxu0 0.0
    %1197 = vmatpush2.msra.mxu0 0.0
    %1198 = vmatprep.subr.mxu0 0.0
    %1199 = vmatpush2.msra.mxu0 0.0
    %1200 = vmatprep.subr.mxu0 0.0
    %1201 = vmatpush2.msra.mxu0 0.0
    %1202 = vmatprep.subr.mxu0 0.0
    %1203 = vmatpush2.msra.mxu0 0.0
    %1204 = vmatprep.subr.mxu0 0.0
    %1205 = vmatpush2.msra.mxu0 0.0
    %1206 = vmatprep.mubr.f32.mxu0 0.0
    %1207 = vmatmul.mubr.f32.gmra.mxu0 %v1140
    %v1208 = vpop.f32.mrf.mxu0
    %v1209 = vadd.f32 0.0, %v1208
    %v1210 = vpop.f32.mrf.mxu0
    %1211 = vdwg.mxu0
    %v1213 = vrot.slane %v1209, 4
    %v1215 = vadd.f32 %v306, %v1213
    %v1216 = vmax.f32 %v1215, 0.0
    %v1217 = vld [vmem:[%s9] sm:$0xff]
    %v1218 = vld [vmem:[%s9 + $0x8] sm:$0xff]
    %v1219 = vld [vmem:[%s9 + $0x10] sm:$0xff]
    %v1220 = vld [vmem:[%s9 + $0x18] sm:$0xff]
    %v1222 = vrot.slane %v1216, 4
    %v1223 = vsel %vm520, %v1222, 0
    %1225 = vmatprep.subr.mxu0 0.0
    %1226 = vmatpush1.msra.mxu0 0.0
    %1227 = vmatprep.subr.mxu0 0.0
    %1228 = vmatpush1.msra.mxu0 0.0
    %1229 = vmatprep.subr.mxu0 0.0
    %1230 = vmatpush1.msra.mxu0 0.0
    %1231 = vmatprep.subr.mxu0 0.0
    %1232 = vmatpush1.msra.mxu0 0.0
    %1233 = vmatprep.subr.mxu0 0.0
    %1234 = vmatpush1.msra.mxu0 0.0
    %1235 = vmatprep.subr.mxu0 0.0
    %1236 = vmatpush1.msra.mxu0 0.0
    %1237 = vmatprep.subr.mxu0 0.0
    %1238 = vmatpush1.msra.mxu0 0.0
    %1239 = vmatprep.subr.mxu0 0.0
    %1240 = vmatpush1.msra.mxu0 0.0
    %1241 = vmatprep.subr.mxu0 0.0
    %1242 = vmatpush1.msra.mxu0 0.0
    %1243 = vmatprep.subr.mxu0 0.0
    %1244 = vmatpush1.msra.mxu0 0.0
    %1245 = vmatprep.subr.mxu0 0.0
    %1246 = vmatpush1.msra.mxu0 0.0
    %1247 = vmatprep.subr.mxu0 0.0
    %1248 = vmatpush1.msra.mxu0 0.0
    %1249 = vmatprep.subr.mxu0 0.0
    %1250 = vmatpush1.msra.mxu0 %v1220
    %1251 = vmatprep.subr.mxu0 0.0
    %1252 = vmatpush1.msra.mxu0 %v1219
    %1253 = vmatprep.subr.mxu0 0.0
    %1254 = vmatpush1.msra.mxu0 %v1218
    %1255 = vmatprep.subr.mxu0 0.0
    %1256 = vmatpush1.msra.mxu0 %v1217
    %1257 = vmatprep.subr.mxu0 0.0
    %1258 = vmatpush2.msra.mxu0 0.0
    %1259 = vmatprep.subr.mxu0 0.0
    %1260 = vmatpush2.msra.mxu0 0.0
    %1261 = vmatprep.subr.mxu0 0.0
    %1262 = vmatpush2.msra.mxu0 0.0
    %1263 = vmatprep.subr.mxu0 0.0
    %1264 = vmatpush2.msra.mxu0 0.0
    %1265 = vmatprep.subr.mxu0 0.0
    %1266 = vmatpush2.msra.mxu0 0.0
    %1267 = vmatprep.subr.mxu0 0.0
    %1268 = vmatpush2.msra.mxu0 0.0
    %1269 = vmatprep.subr.mxu0 0.0
    %1270 = vmatpush2.msra.mxu0 0.0
    %1271 = vmatprep.subr.mxu0 0.0
    %1272 = vmatpush2.msra.mxu0 0.0
    %1273 = vmatprep.subr.mxu0 0.0
    %1274 = vmatpush2.msra.mxu0 0.0
    %1275 = vmatprep.subr.mxu0 0.0
    %1276 = vmatpush2.msra.mxu0 0.0
    %1277 = vmatprep.subr.mxu0 0.0
    %1278 = vmatpush2.msra.mxu0 0.0
    %1279 = vmatprep.subr.mxu0 0.0
    %1280 = vmatpush2.msra.mxu0 0.0
    %1281 = vmatprep.subr.mxu0 0.0
    %1282 = vmatpush2.msra.mxu0 0.0
    %1283 = vmatprep.subr.mxu0 0.0
    %1284 = vmatpush2.msra.mxu0 0.0
    %1285 = vmatprep.subr.mxu0 0.0
    %1286 = vmatpush2.msra.mxu0 0.0
    %1287 = vmatprep.subr.mxu0 0.0
    %1288 = vmatpush2.msra.mxu0 0.0
    %1289 = vmatprep.mubr.f32.mxu0 0.0
    %1290 = vmatmul.mubr.f32.gmra.mxu0 %v1223
    %v1291 = vpop.f32.mrf.mxu0
    %v1292 = vadd.f32 %v477, %v1291
    %v1293 = vpop.f32.mrf.mxu0
    %1294 = vdwg.mxu0
    %v1295 = vmax.f32 %v1292, 0.0
    %v1296 = vld [vmem:[%s11] sm:$0xff]
    %v1297 = vld [vmem:[%s11 + $0x8] sm:$0xff]
    %v1298 = vld [vmem:[%s11 + $0x10] sm:$0xff]
    %v1299 = vld [vmem:[%s11 + $0x18] sm:$0xff]
    %v1301 = vsel %vm520, %v1295, 0
    %1303 = vmatprep.subr.mxu0 0.0
    %1304 = vmatpush1.msra.mxu0 0.0
    %1305 = vmatprep.subr.mxu0 0.0
    %1306 = vmatpush1.msra.mxu0 0.0
    %1307 = vmatprep.subr.mxu0 0.0
    %1308 = vmatpush1.msra.mxu0 0.0
    %1309 = vmatprep.subr.mxu0 0.0
    %1310 = vmatpush1.msra.mxu0 0.0
    %1311 = vmatprep.subr.mxu0 0.0
    %1312 = vmatpush1.msra.mxu0 0.0
    %1313 = vmatprep.subr.mxu0 0.0
    %1314 = vmatpush1.msra.mxu0 0.0
    %1315 = vmatprep.subr.mxu0 0.0
    %1316 = vmatpush1.msra.mxu0 0.0
    %1317 = vmatprep.subr.mxu0 0.0
    %1318 = vmatpush1.msra.mxu0 0.0
    %1319 = vmatprep.subr.mxu0 0.0
    %1320 = vmatpush1.msra.mxu0 0.0
    %1321 = vmatprep.subr.mxu0 0.0
    %1322 = vmatpush1.msra.mxu0 0.0
    %1323 = vmatprep.subr.mxu0 0.0
    %1324 = vmatpush1.msra.mxu0 0.0
    %1325 = vmatprep.subr.mxu0 0.0
    %1326 = vmatpush1.msra.mxu0 0.0
    %1327 = vmatprep.subr.mxu0 0.0
    %1328 = vmatpush1.msra.mxu0 %v1299
    %1329 = vmatprep.subr.mxu0 0.0
    %1330 = vmatpush1.msra.mxu0 %v1298
    %1331 = vmatprep.subr.mxu0 0.0
    %1332 = vmatpush1.msra.mxu0 %v1297
    %1333 = vmatprep.subr.mxu0 0.0
    %1334 = vmatpush1.msra.mxu0 %v1296
    %1335 = vmatprep.subr.mxu0 0.0
    %1336 = vmatpush2.msra.mxu0 0.0
    %1337 = vmatprep.subr.mxu0 0.0
    %1338 = vmatpush2.msra.mxu0 0.0
    %1339 = vmatprep.subr.mxu0 0.0
    %1340 = vmatpush2.msra.mxu0 0.0
    %1341 = vmatprep.subr.mxu0 0.0
    %1342 = vmatpush2.msra.mxu0 0.0
    %1343 = vmatprep.subr.mxu0 0.0
    %1344 = vmatpush2.msra.mxu0 0.0
    %1345 = vmatprep.subr.mxu0 0.0
    %1346 = vmatpush2.msra.mxu0 0.0
    %1347 = vmatprep.subr.mxu0 0.0
    %1348 = vmatpush2.msra.mxu0 0.0
    %1349 = vmatprep.subr.mxu0 0.0
    %1350 = vmatpush2.msra.mxu0 0.0
    %1351 = vmatprep.subr.mxu0 0.0
    %1352 = vmatpush2.msra.mxu0 0.0
    %1353 = vmatprep.subr.mxu0 0.0
    %1354 = vmatpush2.msra.mxu0 0.0
    %1355 = vmatprep.subr.mxu0 0.0
    %1356 = vmatpush2.msra.mxu0 0.0
    %1357 = vmatprep.subr.mxu0 0.0
    %1358 = vmatpush2.msra.mxu0 0.0
    %1359 = vmatprep.subr.mxu0 0.0
    %1360 = vmatpush2.msra.mxu0 0.0
    %1361 = vmatprep.subr.mxu0 0.0
    %1362 = vmatpush2.msra.mxu0 0.0
    %1363 = vmatprep.subr.mxu0 0.0
    %1364 = vmatpush2.msra.mxu0 0.0
    %1365 = vmatprep.subr.mxu0 0.0
    %1366 = vmatpush2.msra.mxu0 0.0
    %1367 = vmatprep.mubr.f32.mxu0 0.0
    %1368 = vmatmul.mubr.f32.gmra.mxu0 %v1301
    %v1369 = vpop.f32.mrf.mxu0
    %v1370 = vadd.f32 %v484, %v1369
    %v1371 = vpop.f32.mrf.mxu0
    %1372 = vdwg.mxu0
    %v1373 = vmax.f32 %v1370, 0.0
    %v1374 = vld [vmem:[%s13] sm:$0xff]
    %v1375 = vld [vmem:[%s13 + $0x8] sm:$0xff]
    %v1376 = vld [vmem:[%s13 + $0x10] sm:$0xff]
    %v1377 = vld [vmem:[%s13 + $0x18] sm:$0xff]
    %v1378 = vld [vmem:[%s14] sm:$0xff]
    %v1379 = vld [vmem:[%s14 + $0x8] sm:$0xff]
    %v1380 = vld [vmem:[%s14 + $0x10] sm:$0xff]
    %v1381 = vld [vmem:[%s14 + $0x18] sm:$0xff]
    %v1383 = vsel %vm520, %v828, 0
    %1385 = vmatprep.subr.mxu0 0.0
    %1386 = vmatpush1.msra.mxu0 0.0
    %1387 = vmatprep.subr.mxu0 0.0
    %1388 = vmatpush1.msra.mxu0 0.0
    %1389 = vmatprep.subr.mxu0 0.0
    %1390 = vmatpush1.msra.mxu0 0.0
    %1391 = vmatprep.subr.mxu0 0.0
    %1392 = vmatpush1.msra.mxu0 0.0
    %1393 = vmatprep.subr.mxu0 0.0
    %1394 = vmatpush1.msra.mxu0 0.0
    %1395 = vmatprep.subr.mxu0 0.0
    %1396 = vmatpush1.msra.mxu0 0.0
    %1397 = vmatprep.subr.mxu0 0.0
    %1398 = vmatpush1.msra.mxu0 0.0
    %1399 = vmatprep.subr.mxu0 0.0
    %1400 = vmatpush1.msra.mxu0 0.0
    %1401 = vmatprep.subr.mxu0 0.0
    %1402 = vmatpush1.msra.mxu0 0.0
    %1403 = vmatprep.subr.mxu0 0.0
    %1404 = vmatpush1.msra.mxu0 0.0
    %1405 = vmatprep.subr.mxu0 0.0
    %1406 = vmatpush1.msra.mxu0 0.0
    %1407 = vmatprep.subr.mxu0 0.0
    %1408 = vmatpush1.msra.mxu0 0.0
    %1409 = vmatprep.subr.mxu0 0.0
    %1410 = vmatpush1.msra.mxu0 %v1381
    %1411 = vmatprep.subr.mxu0 0.0
    %1412 = vmatpush1.msra.mxu0 %v1380
    %1413 = vmatprep.subr.mxu0 0.0
    %1414 = vmatpush1.msra.mxu0 %v1379
    %1415 = vmatprep.subr.mxu0 0.0
    %1416 = vmatpush1.msra.mxu0 %v1378
    %1417 = vmatprep.subr.mxu0 0.0
    %1418 = vmatpush2.msra.mxu0 0.0
    %1419 = vmatprep.subr.mxu0 0.0
    %1420 = vmatpush2.msra.mxu0 0.0
    %1421 = vmatprep.subr.mxu0 0.0
    %1422 = vmatpush2.msra.mxu0 0.0
    %1423 = vmatprep.subr.mxu0 0.0
    %1424 = vmatpush2.msra.mxu0 0.0
    %1425 = vmatprep.subr.mxu0 0.0
    %1426 = vmatpush2.msra.mxu0 0.0
    %1427 = vmatprep.subr.mxu0 0.0
    %1428 = vmatpush2.msra.mxu0 0.0
    %1429 = vmatprep.subr.mxu0 0.0
    %1430 = vmatpush2.msra.mxu0 0.0
    %1431 = vmatprep.subr.mxu0 0.0
    %1432 = vmatpush2.msra.mxu0 0.0
    %1433 = vmatprep.subr.mxu0 0.0
    %1434 = vmatpush2.msra.mxu0 0.0
    %1435 = vmatprep.subr.mxu0 0.0
    %1436 = vmatpush2.msra.mxu0 0.0
    %1437 = vmatprep.subr.mxu0 0.0
    %1438 = vmatpush2.msra.mxu0 0.0
    %1439 = vmatprep.subr.mxu0 0.0
    %1440 = vmatpush2.msra.mxu0 0.0
    %1441 = vmatprep.subr.mxu0 0.0
    %1442 = vmatpush2.msra.mxu0 0.0
    %1443 = vmatprep.subr.mxu0 0.0
    %1444 = vmatpush2.msra.mxu0 0.0
    %1445 = vmatprep.subr.mxu0 0.0
    %1446 = vmatpush2.msra.mxu0 0.0
    %1447 = vmatprep.subr.mxu0 0.0
    %1448 = vmatpush2.msra.mxu0 0.0
    %1449 = vmatprep.mubr.f32.mxu0 0.0
    %1450 = vmatmul.mubr.f32.gmra.mxu0 %v1383
    %v1451 = vpop.f32.mrf.mxu0
    %v1452 = vadd.f32 0.0, %v1451
    %v1453 = vpop.f32.mrf.mxu0
    %1454 = vdwg.mxu0
    %v1456 = vsel %vm520, %v1373, 0
    %1458 = vmatprep.subr.mxu0 0.0
    %1459 = vmatpush1.msra.mxu0 0.0
    %1460 = vmatprep.subr.mxu0 0.0
    %1461 = vmatpush1.msra.mxu0 0.0
    %1462 = vmatprep.subr.mxu0 0.0
    %1463 = vmatpush1.msra.mxu0 0.0
    %1464 = vmatprep.subr.mxu0 0.0
    %1465 = vmatpush1.msra.mxu0 0.0
    %1466 = vmatprep.subr.mxu0 0.0
    %1467 = vmatpush1.msra.mxu0 0.0
    %1468 = vmatprep.subr.mxu0 0.0
    %1469 = vmatpush1.msra.mxu0 0.0
    %1470 = vmatprep.subr.mxu0 0.0
    %1471 = vmatpush1.msra.mxu0 0.0
    %1472 = vmatprep.subr.mxu0 0.0
    %1473 = vmatpush1.msra.mxu0 0.0
    %1474 = vmatprep.subr.mxu0 0.0
    %1475 = vmatpush1.msra.mxu0 0.0
    %1476 = vmatprep.subr.mxu0 0.0
    %1477 = vmatpush1.msra.mxu0 0.0
    %1478 = vmatprep.subr.mxu0 0.0
    %1479 = vmatpush1.msra.mxu0 0.0
    %1480 = vmatprep.subr.mxu0 0.0
    %1481 = vmatpush1.msra.mxu0 0.0
    %1482 = vmatprep.subr.mxu0 0.0
    %1483 = vmatpush1.msra.mxu0 %v1377
    %1484 = vmatprep.subr.mxu0 0.0
    %1485 = vmatpush1.msra.mxu0 %v1376
    %1486 = vmatprep.subr.mxu0 0.0
    %1487 = vmatpush1.msra.mxu0 %v1375
    %1488 = vmatprep.subr.mxu0 0.0
    %1489 = vmatpush1.msra.mxu0 %v1374
    %1490 = vmatprep.subr.mxu0 0.0
    %1491 = vmatpush2.msra.mxu0 0.0
    %1492 = vmatprep.subr.mxu0 0.0
    %1493 = vmatpush2.msra.mxu0 0.0
    %1494 = vmatprep.subr.mxu0 0.0
    %1495 = vmatpush2.msra.mxu0 0.0
    %1496 = vmatprep.subr.mxu0 0.0
    %1497 = vmatpush2.msra.mxu0 0.0
    %1498 = vmatprep.subr.mxu0 0.0
    %1499 = vmatpush2.msra.mxu0 0.0
    %1500 = vmatprep.subr.mxu0 0.0
    %1501 = vmatpush2.msra.mxu0 0.0
    %1502 = vmatprep.subr.mxu0 0.0
    %1503 = vmatpush2.msra.mxu0 0.0
    %1504 = vmatprep.subr.mxu0 0.0
    %1505 = vmatpush2.msra.mxu0 0.0
    %1506 = vmatprep.subr.mxu0 0.0
    %1507 = vmatpush2.msra.mxu0 0.0
    %1508 = vmatprep.subr.mxu0 0.0
    %1509 = vmatpush2.msra.mxu0 0.0
    %1510 = vmatprep.subr.mxu0 0.0
    %1511 = vmatpush2.msra.mxu0 0.0
    %1512 = vmatprep.subr.mxu0 0.0
    %1513 = vmatpush2.msra.mxu0 0.0
    %1514 = vmatprep.subr.mxu0 0.0
    %1515 = vmatpush2.msra.mxu0 0.0
    %1516 = vmatprep.subr.mxu0 0.0
    %1517 = vmatpush2.msra.mxu0 0.0
    %1518 = vmatprep.subr.mxu0 0.0
    %1519 = vmatpush2.msra.mxu0 0.0
    %1520 = vmatprep.subr.mxu0 0.0
    %1521 = vmatpush2.msra.mxu0 0.0
    %1522 = vmatprep.mubr.f32.mxu0 0.0
    %1523 = vmatmul.mubr.f32.gmra.mxu0 %v1456
    %v1524 = vpop.f32.mrf.mxu0
    %v1525 = vadd.f32 %v1452, %v1524
    %v1526 = vpop.f32.mrf.mxu0
    %1527 = vdwg.mxu0
    %v1528 = vadd.f32 %v1525, %v491
    %v1529 = vtanh.pop %v1528
    %v1530 = vmax.f32 %v1529, 0.0
    %v1531 = vld [vmem:[#allocation13] sm:$0xff]
    %v1532 = vld [vmem:[#allocation13 + $0x8] sm:$0xff]
    %v1533 = vld [vmem:[#allocation13 + $0x10] sm:$0xff]
    %v1534 = vld [vmem:[#allocation13 + $0x18] sm:$0xff]
    %v1536 = vsel %vm520, %v1530, 0
    %1538 = vmatprep.subr.mxu0 0.0
    %1539 = vmatpush1.msra.mxu0 0.0
    %1540 = vmatprep.subr.mxu0 0.0
    %1541 = vmatpush1.msra.mxu0 0.0
    %1542 = vmatprep.subr.mxu0 0.0
    %1543 = vmatpush1.msra.mxu0 0.0
    %1544 = vmatprep.subr.mxu0 0.0
    %1545 = vmatpush1.msra.mxu0 0.0
    %1546 = vmatprep.subr.mxu0 0.0
    %1547 = vmatpush1.msra.mxu0 0.0
    %1548 = vmatprep.subr.mxu0 0.0
    %1549 = vmatpush1.msra.mxu0 0.0
    %1550 = vmatprep.subr.mxu0 0.0
    %1551 = vmatpush1.msra.mxu0 0.0
    %1552 = vmatprep.subr.mxu0 0.0
    %1553 = vmatpush1.msra.mxu0 0.0
    %1554 = vmatprep.subr.mxu0 0.0
    %1555 = vmatpush1.msra.mxu0 0.0
    %1556 = vmatprep.subr.mxu0 0.0
    %1557 = vmatpush1.msra.mxu0 0.0
    %1558 = vmatprep.subr.mxu0 0.0
    %1559 = vmatpush1.msra.mxu0 0.0
    %1560 = vmatprep.subr.mxu0 0.0
    %1561 = vmatpush1.msra.mxu0 0.0
    %1562 = vmatprep.subr.mxu0 0.0
    %1563 = vmatpush1.msra.mxu0 %v1534
    %1564 = vmatprep.subr.mxu0 0.0
    %1565 = vmatpush1.msra.mxu0 %v1533
    %1566 = vmatprep.subr.mxu0 0.0
    %1567 = vmatpush1.msra.mxu0 %v1532
    %1568 = vmatprep.subr.mxu0 0.0
    %1569 = vmatpush1.msra.mxu0 %v1531
    %1570 = vmatprep.subr.mxu0 0.0
    %1571 = vmatpush2.msra.mxu0 0.0
    %1572 = vmatprep.subr.mxu0 0.0
    %1573 = vmatpush2.msra.mxu0 0.0
    %1574 = vmatprep.subr.mxu0 0.0
    %1575 = vmatpush2.msra.mxu0 0.0
    %1576 = vmatprep.subr.mxu0 0.0
    %1577 = vmatpush2.msra.mxu0 0.0
    %1578 = vmatprep.subr.mxu0 0.0
    %1579 = vmatpush2.msra.mxu0 0.0
    %1580 = vmatprep.subr.mxu0 0.0
    %1581 = vmatpush2.msra.mxu0 0.0
    %1582 = vmatprep.subr.mxu0 0.0
    %1583 = vmatpush2.msra.mxu0 0.0
    %1584 = vmatprep.subr.mxu0 0.0
    %1585 = vmatpush2.msra.mxu0 0.0
    %1586 = vmatprep.subr.mxu0 0.0
    %1587 = vmatpush2.msra.mxu0 0.0
    %1588 = vmatprep.subr.mxu0 0.0
    %1589 = vmatpush2.msra.mxu0 0.0
    %1590 = vmatprep.subr.mxu0 0.0
    %1591 = vmatpush2.msra.mxu0 0.0
    %1592 = vmatprep.subr.mxu0 0.0
    %1593 = vmatpush2.msra.mxu0 0.0
    %1594 = vmatprep.subr.mxu0 0.0
    %1595 = vmatpush2.msra.mxu0 0.0
    %1596 = vmatprep.subr.mxu0 0.0
    %1597 = vmatpush2.msra.mxu0 0.0
    %1598 = vmatprep.subr.mxu0 0.0
    %1599 = vmatpush2.msra.mxu0 0.0
    %1600 = vmatprep.subr.mxu0 0.0
    %1601 = vmatpush2.msra.mxu0 0.0
    %1602 = vmatprep.mubr.f32.mxu0 0.0
    %1603 = vmatmul.mubr.f32.gmra.mxu0 %v1536
    %v1604 = vpop.f32.mrf.mxu0
    %v1605 = vadd.f32 %v498, %v1604
    %v1606 = vpop.f32.mrf.mxu0
    %1607 = vdwg.mxu0
    %v1608 = vmax.f32 %v1605, 0.0
    %v1609 = vld [vmem:[#allocation16] sm:$0xff]
    %v1610 = vld [vmem:[#allocation16 + $0x8] sm:$0xff]
    %v1611 = vld [vmem:[#allocation16 + $0x10] sm:$0xff]
    %v1612 = vld [vmem:[#allocation16 + $0x18] sm:$0xff]
    %v1614 = vsel %vm520, %v1608, 0
    %1616 = vmatprep.subr.mxu0 0.0
    %1617 = vmatpush1.msra.mxu0 0.0
    %1618 = vmatprep.subr.mxu0 0.0
    %1619 = vmatpush1.msra.mxu0 0.0
    %1620 = vmatprep.subr.mxu0 0.0
    %1621 = vmatpush1.msra.mxu0 0.0
    %1622 = vmatprep.subr.mxu0 0.0
    %1623 = vmatpush1.msra.mxu0 0.0
    %1624 = vmatprep.subr.mxu0 0.0
    %1625 = vmatpush1.msra.mxu0 0.0
    %1626 = vmatprep.subr.mxu0 0.0
    %1627 = vmatpush1.msra.mxu0 0.0
    %1628 = vmatprep.subr.mxu0 0.0
    %1629 = vmatpush1.msra.mxu0 0.0
    %1630 = vmatprep.subr.mxu0 0.0
    %1631 = vmatpush1.msra.mxu0 0.0
    %1632 = vmatprep.subr.mxu0 0.0
    %1633 = vmatpush1.msra.mxu0 0.0
    %1634 = vmatprep.subr.mxu0 0.0
    %1635 = vmatpush1.msra.mxu0 0.0
    %1636 = vmatprep.subr.mxu0 0.0
    %1637 = vmatpush1.msra.mxu0 0.0
    %1638 = vmatprep.subr.mxu0 0.0
    %1639 = vmatpush1.msra.mxu0 0.0
    %1640 = vmatprep.subr.mxu0 0.0
    %1641 = vmatpush1.msra.mxu0 %v1612
    %1642 = vmatprep.subr.mxu0 0.0
    %1643 = vmatpush1.msra.mxu0 %v1611
    %1644 = vmatprep.subr.mxu0 0.0
    %1645 = vmatpush1.msra.mxu0 %v1610
    %1646 = vmatprep.subr.mxu0 0.0
    %1647 = vmatpush1.msra.mxu0 %v1609
    %1648 = vmatprep.subr.mxu0 0.0
    %1649 = vmatpush2.msra.mxu0 0.0
    %1650 = vmatprep.subr.mxu0 0.0
    %1651 = vmatpush2.msra.mxu0 0.0
    %1652 = vmatprep.subr.mxu0 0.0
    %1653 = vmatpush2.msra.mxu0 0.0
    %1654 = vmatprep.subr.mxu0 0.0
    %1655 = vmatpush2.msra.mxu0 0.0
    %1656 = vmatprep.subr.mxu0 0.0
    %1657 = vmatpush2.msra.mxu0 0.0
    %1658 = vmatprep.subr.mxu0 0.0
    %1659 = vmatpush2.msra.mxu0 0.0
    %1660 = vmatprep.subr.mxu0 0.0
    %1661 = vmatpush2.msra.mxu0 0.0
    %1662 = vmatprep.subr.mxu0 0.0
    %1663 = vmatpush2.msra.mxu0 0.0
    %1664 = vmatprep.subr.mxu0 0.0
    %1665 = vmatpush2.msra.mxu0 0.0
    %1666 = vmatprep.subr.mxu0 0.0
    %1667 = vmatpush2.msra.mxu0 0.0
    %1668 = vmatprep.subr.mxu0 0.0
    %1669 = vmatpush2.msra.mxu0 0.0
    %1670 = vmatprep.subr.mxu0 0.0
    %1671 = vmatpush2.msra.mxu0 0.0
    %1672 = vmatprep.subr.mxu0 0.0
    %1673 = vmatpush2.msra.mxu0 0.0
    %1674 = vmatprep.subr.mxu0 0.0
    %1675 = vmatpush2.msra.mxu0 0.0
    %1676 = vmatprep.subr.mxu0 0.0
    %1677 = vmatpush2.msra.mxu0 0.0
    %1678 = vmatprep.subr.mxu0 0.0
    %1679 = vmatpush2.msra.mxu0 0.0
    %1680 = vmatprep.mubr.f32.mxu0 0.0
    %1681 = vmatmul.mubr.f32.gmra.mxu0 %v1614
    %v1682 = vpop.f32.mrf.mxu0
    %v1683 = vadd.f32 %v505, %v1682
    %v1684 = vpop.f32.mrf.mxu0
    %1685 = vdwg.mxu0
    %v1686 = vmax.f32 %v1683, 0.0
    %v1687 = vld [vmem:[%s20] sm:$0xff]
    %v1688 = vld [vmem:[%s20 + $0x8] sm:$0xff]
    %v1689 = vld [vmem:[%s20 + $0x10] sm:$0xff]
    %v1690 = vld [vmem:[%s20 + $0x18] sm:$0xff]
    %v1692 = vsel %vm520, %v1686, 0
    %1694 = vmatprep.subr.mxu0 0.0
    %1695 = vmatpush1.msra.mxu0 0.0
    %1696 = vmatprep.subr.mxu0 0.0
    %1697 = vmatpush1.msra.mxu0 0.0
    %1698 = vmatprep.subr.mxu0 0.0
    %1699 = vmatpush1.msra.mxu0 0.0
    %1700 = vmatprep.subr.mxu0 0.0
    %1701 = vmatpush1.msra.mxu0 0.0
    %1702 = vmatprep.subr.mxu0 0.0
    %1703 = vmatpush1.msra.mxu0 0.0
    %1704 = vmatprep.subr.mxu0 0.0
    %1705 = vmatpush1.msra.mxu0 0.0
    %1706 = vmatprep.subr.mxu0 0.0
    %1707 = vmatpush1.msra.mxu0 0.0
    %1708 = vmatprep.subr.mxu0 0.0
    %1709 = vmatpush1.msra.mxu0 0.0
    %1710 = vmatprep.subr.mxu0 0.0
    %1711 = vmatpush1.msra.mxu0 0.0
    %1712 = vmatprep.subr.mxu0 0.0
    %1713 = vmatpush1.msra.mxu0 0.0
    %1714 = vmatprep.subr.mxu0 0.0
    %1715 = vmatpush1.msra.mxu0 0.0
    %1716 = vmatprep.subr.mxu0 0.0
    %1717 = vmatpush1.msra.mxu0 0.0
    %1718 = vmatprep.subr.mxu0 0.0
    %1719 = vmatpush1.msra.mxu0 %v1690
    %1720 = vmatprep.subr.mxu0 0.0
    %1721 = vmatpush1.msra.mxu0 %v1689
    %1722 = vmatprep.subr.mxu0 0.0
    %1723 = vmatpush1.msra.mxu0 %v1688
    %1724 = vmatprep.subr.mxu0 0.0
    %1725 = vmatpush1.msra.mxu0 %v1687
    %1726 = vmatprep.subr.mxu0 0.0
    %1727 = vmatpush2.msra.mxu0 0.0
    %1728 = vmatprep.subr.mxu0 0.0
    %1729 = vmatpush2.msra.mxu0 0.0
    %1730 = vmatprep.subr.mxu0 0.0
    %1731 = vmatpush2.msra.mxu0 0.0
    %1732 = vmatprep.subr.mxu0 0.0
    %1733 = vmatpush2.msra.mxu0 0.0
    %1734 = vmatprep.subr.mxu0 0.0
    %1735 = vmatpush2.msra.mxu0 0.0
    %1736 = vmatprep.subr.mxu0 0.0
    %1737 = vmatpush2.msra.mxu0 0.0
    %1738 = vmatprep.subr.mxu0 0.0
    %1739 = vmatpush2.msra.mxu0 0.0
    %1740 = vmatprep.subr.mxu0 0.0
    %1741 = vmatpush2.msra.mxu0 0.0
    %1742 = vmatprep.subr.mxu0 0.0
    %1743 = vmatpush2.msra.mxu0 0.0
    %1744 = vmatprep.subr.mxu0 0.0
    %1745 = vmatpush2.msra.mxu0 0.0
    %1746 = vmatprep.subr.mxu0 0.0
    %1747 = vmatpush2.msra.mxu0 0.0
    %1748 = vmatprep.subr.mxu0 0.0
    %1749 = vmatpush2.msra.mxu0 0.0
    %1750 = vmatprep.subr.mxu0 0.0
    %1751 = vmatpush2.msra.mxu0 0.0
    %1752 = vmatprep.subr.mxu0 0.0
    %1753 = vmatpush2.msra.mxu0 0.0
    %1754 = vmatprep.subr.mxu0 0.0
    %1755 = vmatpush2.msra.mxu0 0.0
    %1756 = vmatprep.subr.mxu0 0.0
    %1757 = vmatpush2.msra.mxu0 0.0
    %1758 = vmatprep.mubr.f32.mxu0 0.0
    %1759 = vmatmul.mubr.f32.gmra.mxu0 %v1692
    %v1760 = vpop.f32.mrf.mxu0
    %v1761 = vadd.f32 %v512, %v1760
    %v1762 = vpop.f32.mrf.mxu0
    %1763 = vdwg.mxu0
    %v1764 = vrot.slane %v1066, 4
    %v1766 = vmul.f32 %v1761, %v1764
    %v1769 = vunpack.c.l.s4 1966171168
    %v1770 = vunpack.c.0.s8 %v1769
    %v1771 = vlaneseq
    %v1772 = vshrl.u32 %v1771, 7
    %v1773 = vsub.s32 %v1770, %v1772
    %v1774 = vrot.slane %v1766, %v1773
    %v1775 = vcombine.high %v1774, %v1774
    %v1777 = vunpack.c.l.s4 1966171168
    %v1778 = vunpack.c.0.s8 %v1777
    %v1779 = vlaneseq
    %v1780 = vshrl.u32 %v1779, 7
    %v1781 = vsub.s32 %v1778, %v1780
    %v1782 = vrot.slane %v1774, %v1781
    %v1784 = vunpack.c.l.s4 1966171168
    %v1785 = vunpack.c.0.s8 %v1784
    %v1786 = vlaneseq
    %v1787 = vshrl.u32 %v1786, 7
    %v1788 = vsub.s32 %v1785, %v1787
    %v1789 = vrot.slane %v1775, %v1788
    %v1790 = vcombine.high %v1782, %v1782
    %v1791 = vcombine.high %v1789, %v1789
    %1796 = vst.msk [vmem:[%s22 + $0x1] sm:$0x1] %vm1098, %v1782
    %1797 = vst.msk [vmem:[%s22 + $0x9] sm:$0x1] %vm1098, %v1789
    %1798 = vst.msk [vmem:[%s22 + $0x11] sm:$0x1] %vm1098, %v1790
    %1799 = vst.msk [vmem:[%s22 + $0x19] sm:$0x1] %vm1098, %v1791
    %v1800 = vmul.f32 %v1370, %v1764
    %v1803 = vunpack.c.l.s4 1966171168
    %v1804 = vunpack.c.0.s8 %v1803
    %v1805 = vlaneseq
    %v1806 = vshrl.u32 %v1805, 7
    %v1807 = vsub.s32 %v1804, %v1806
    %v1808 = vrot.slane %v1800, %v1807
    %v1809 = vcombine.high %v1808, %v1808
    %v1811 = vunpack.c.l.s4 1966171168
    %v1812 = vunpack.c.0.s8 %v1811
    %v1813 = vlaneseq
    %v1814 = vshrl.u32 %v1813, 7
    %v1815 = vsub.s32 %v1812, %v1814
    %v1816 = vrot.slane %v1808, %v1815
    %v1818 = vunpack.c.l.s4 1966171168
    %v1819 = vunpack.c.0.s8 %v1818
    %v1820 = vlaneseq
    %v1821 = vshrl.u32 %v1820, 7
    %v1822 = vsub.s32 %v1819, %v1821
    %v1823 = vrot.slane %v1809, %v1822
    %v1824 = vcombine.high %v1816, %v1816
    %v1825 = vcombine.high %v1823, %v1823
    %1830 = vst.msk [vmem:[%s23 + $0x1] sm:$0x1] %vm1133, %v1816
    %1831 = vst.msk [vmem:[%s23 + $0x9] sm:$0x1] %vm1133, %v1823
    %1832 = vst.msk [vmem:[%s23 + $0x11] sm:$0x1] %vm1133, %v1824
    %1833 = vst.msk [vmem:[%s23 + $0x19] sm:$0x1] %vm1133, %v1825
    %v1834 = vld [vmem:[%s8] sm:$0xff]
    %v1836 = vsel %vm229, %v1761, 0
    %1838 = vmatprep.subr.mxu0 0.0
    %1839 = vmatpush1.msra.mxu0 0.0
    %1840 = vmatprep.subr.mxu0 0.0
    %1841 = vmatpush1.msra.mxu0 0.0
    %1842 = vmatprep.subr.mxu0 0.0
    %1843 = vmatpush1.msra.mxu0 0.0
    %1844 = vmatprep.subr.mxu0 0.0
    %1845 = vmatpush1.msra.mxu0 0.0
    %1846 = vmatprep.subr.mxu0 0.0
    %1847 = vmatpush1.msra.mxu0 0.0
    %1848 = vmatprep.subr.mxu0 0.0
    %1849 = vmatpush1.msra.mxu0 0.0
    %1850 = vmatprep.subr.mxu0 0.0
    %1851 = vmatpush1.msra.mxu0 0.0
    %1852 = vmatprep.subr.mxu0 0.0
    %1853 = vmatpush1.msra.mxu0 0.0
    %1854 = vmatprep.subr.mxu0 0.0
    %1855 = vmatpush1.msra.mxu0 0.0
    %1856 = vmatprep.subr.mxu0 0.0
    %1857 = vmatpush1.msra.mxu0 0.0
    %1858 = vmatprep.subr.mxu0 0.0
    %1859 = vmatpush1.msra.mxu0 0.0
    %1860 = vmatprep.subr.mxu0 0.0
    %1861 = vmatpush1.msra.mxu0 0.0
    %1862 = vmatprep.subr.mxu0 0.0
    %1863 = vmatpush1.msra.mxu0 0.0
    %1864 = vmatprep.subr.mxu0 0.0
    %1865 = vmatpush1.msra.mxu0 0.0
    %1866 = vmatprep.subr.mxu0 0.0
    %1867 = vmatpush1.msra.mxu0 0.0
    %1868 = vmatprep.subr.mxu0 0.0
    %1869 = vmatpush1.msra.mxu0 %v1834
    %1870 = vmatprep.subr.mxu0 0.0
    %1871 = vmatpush2.msra.mxu0 0.0
    %1872 = vmatprep.subr.mxu0 0.0
    %1873 = vmatpush2.msra.mxu0 0.0
    %1874 = vmatprep.subr.mxu0 0.0
    %1875 = vmatpush2.msra.mxu0 0.0
    %1876 = vmatprep.subr.mxu0 0.0
    %1877 = vmatpush2.msra.mxu0 0.0
    %1878 = vmatprep.subr.mxu0 0.0
    %1879 = vmatpush2.msra.mxu0 0.0
    %1880 = vmatprep.subr.mxu0 0.0
    %1881 = vmatpush2.msra.mxu0 0.0
    %1882 = vmatprep.subr.mxu0 0.0
    %1883 = vmatpush2.msra.mxu0 0.0
    %1884 = vmatprep.subr.mxu0 0.0
    %1885 = vmatpush2.msra.mxu0 0.0
    %1886 = vmatprep.subr.mxu0 0.0
    %1887 = vmatpush2.msra.mxu0 0.0
    %1888 = vmatprep.subr.mxu0 0.0
    %1889 = vmatpush2.msra.mxu0 0.0
    %1890 = vmatprep.subr.mxu0 0.0
    %1891 = vmatpush2.msra.mxu0 0.0
    %1892 = vmatprep.subr.mxu0 0.0
    %1893 = vmatpush2.msra.mxu0 0.0
    %1894 = vmatprep.subr.mxu0 0.0
    %1895 = vmatpush2.msra.mxu0 0.0
    %1896 = vmatprep.subr.mxu0 0.0
    %1897 = vmatpush2.msra.mxu0 0.0
    %1898 = vmatprep.subr.mxu0 0.0
    %1899 = vmatpush2.msra.mxu0 0.0
    %1900 = vmatprep.subr.mxu0 0.0
    %1901 = vmatpush2.msra.mxu0 0.0
    %1902 = vmatprep.mubr.f32.mxu0 0.0
    %1903 = vmatmul.mubr.f32.gmra.mxu0 %v1836
    %v1904 = vpop.f32.mrf.mxu0
    %v1905 = vadd.f32 0.0, %v1904
    %v1906 = vpop.f32.mrf.mxu0
    %1907 = vdwg.mxu0
    %v1908 = vadd.f32 %v311, %v1905
    %v1909 = vmax.f32 %v1908, 0.0
    %v1910 = vld [vmem:[%s9] sm:$0xff]
    %v1911 = vld [vmem:[%s9 + $0x8] sm:$0xff]
    %v1912 = vld [vmem:[%s9 + $0x10] sm:$0xff]
    %v1913 = vld [vmem:[%s9 + $0x18] sm:$0xff]
    %v1915 = vsel %vm520, %v1909, 0
    %1917 = vmatprep.subr.mxu0 0.0
    %1918 = vmatpush1.msra.mxu0 0.0
    %1919 = vmatprep.subr.mxu0 0.0
    %1920 = vmatpush1.msra.mxu0 0.0
    %1921 = vmatprep.subr.mxu0 0.0
    %1922 = vmatpush1.msra.mxu0 0.0
    %1923 = vmatprep.subr.mxu0 0.0
    %1924 = vmatpush1.msra.mxu0 0.0
    %1925 = vmatprep.subr.mxu0 0.0
    %1926 = vmatpush1.msra.mxu0 0.0
    %1927 = vmatprep.subr.mxu0 0.0
    %1928 = vmatpush1.msra.mxu0 0.0
    %1929 = vmatprep.subr.mxu0 0.0
    %1930 = vmatpush1.msra.mxu0 0.0
    %1931 = vmatprep.subr.mxu0 0.0
    %1932 = vmatpush1.msra.mxu0 0.0
    %1933 = vmatprep.subr.mxu0 0.0
    %1934 = vmatpush1.msra.mxu0 0.0
    %1935 = vmatprep.subr.mxu0 0.0
    %1936 = vmatpush1.msra.mxu0 0.0
    %1937 = vmatprep.subr.mxu0 0.0
    %1938 = vmatpush1.msra.mxu0 0.0
    %1939 = vmatprep.subr.mxu0 0.0
    %1940 = vmatpush1.msra.mxu0 0.0
    %1941 = vmatprep.subr.mxu0 0.0
    %1942 = vmatpush1.msra.mxu0 %v1913
    %1943 = vmatprep.subr.mxu0 0.0
    %1944 = vmatpush1.msra.mxu0 %v1912
    %1945 = vmatprep.subr.mxu0 0.0
    %1946 = vmatpush1.msra.mxu0 %v1911
    %1947 = vmatprep.subr.mxu0 0.0
    %1948 = vmatpush1.msra.mxu0 %v1910
    %1949 = vmatprep.subr.mxu0 0.0
    %1950 = vmatpush2.msra.mxu0 0.0
    %1951 = vmatprep.subr.mxu0 0.0
    %1952 = vmatpush2.msra.mxu0 0.0
    %1953 = vmatprep.subr.mxu0 0.0
    %1954 = vmatpush2.msra.mxu0 0.0
    %1955 = vmatprep.subr.mxu0 0.0
    %1956 = vmatpush2.msra.mxu0 0.0
    %1957 = vmatprep.subr.mxu0 0.0
    %1958 = vmatpush2.msra.mxu0 0.0
    %1959 = vmatprep.subr.mxu0 0.0
    %1960 = vmatpush2.msra.mxu0 0.0
    %1961 = vmatprep.subr.mxu0 0.0
    %1962 = vmatpush2.msra.mxu0 0.0
    %1963 = vmatprep.subr.mxu0 0.0
    %1964 = vmatpush2.msra.mxu0 0.0
    %1965 = vmatprep.subr.mxu0 0.0
    %1966 = vmatpush2.msra.mxu0 0.0
    %1967 = vmatprep.subr.mxu0 0.0
    %1968 = vmatpush2.msra.mxu0 0.0
    %1969 = vmatprep.subr.mxu0 0.0
    %1970 = vmatpush2.msra.mxu0 0.0
    %1971 = vmatprep.subr.mxu0 0.0
    %1972 = vmatpush2.msra.mxu0 0.0
    %1973 = vmatprep.subr.mxu0 0.0
    %1974 = vmatpush2.msra.mxu0 0.0
    %1975 = vmatprep.subr.mxu0 0.0
    %1976 = vmatpush2.msra.mxu0 0.0
    %1977 = vmatprep.subr.mxu0 0.0
    %1978 = vmatpush2.msra.mxu0 0.0
    %1979 = vmatprep.subr.mxu0 0.0
    %1980 = vmatpush2.msra.mxu0 0.0
    %1981 = vmatprep.mubr.f32.mxu0 0.0
    %1982 = vmatmul.mubr.f32.gmra.mxu0 %v1915
    %v1983 = vpop.f32.mrf.mxu0
    %v1984 = vadd.f32 %v477, %v1983
    %v1985 = vpop.f32.mrf.mxu0
    %1986 = vdwg.mxu0
    %v1987 = vmax.f32 %v1984, 0.0
    %v1988 = vld [vmem:[%s11] sm:$0xff]
    %v1989 = vld [vmem:[%s11 + $0x8] sm:$0xff]
    %v1990 = vld [vmem:[%s11 + $0x10] sm:$0xff]
    %v1991 = vld [vmem:[%s11 + $0x18] sm:$0xff]
    %v1993 = vsel %vm520, %v1987, 0
    %1995 = vmatprep.subr.mxu0 0.0
    %1996 = vmatpush1.msra.mxu0 0.0
    %1997 = vmatprep.subr.mxu0 0.0
    %1998 = vmatpush1.msra.mxu0 0.0
    %1999 = vmatprep.subr.mxu0 0.0
    %2000 = vmatpush1.msra.mxu0 0.0
    %2001 = vmatprep.subr.mxu0 0.0
    %2002 = vmatpush1.msra.mxu0 0.0
    %2003 = vmatprep.subr.mxu0 0.0
    %2004 = vmatpush1.msra.mxu0 0.0
    %2005 = vmatprep.subr.mxu0 0.0
    %2006 = vmatpush1.msra.mxu0 0.0
    %2007 = vmatprep.subr.mxu0 0.0
    %2008 = vmatpush1.msra.mxu0 0.0
    %2009 = vmatprep.subr.mxu0 0.0
    %2010 = vmatpush1.msra.mxu0 0.0
    %2011 = vmatprep.subr.mxu0 0.0
    %2012 = vmatpush1.msra.mxu0 0.0
    %2013 = vmatprep.subr.mxu0 0.0
    %2014 = vmatpush1.msra.mxu0 0.0
    %2015 = vmatprep.subr.mxu0 0.0
    %2016 = vmatpush1.msra.mxu0 0.0
    %2017 = vmatprep.subr.mxu0 0.0
    %2018 = vmatpush1.msra.mxu0 0.0
    %2019 = vmatprep.subr.mxu0 0.0
    %2020 = vmatpush1.msra.mxu0 %v1991
    %2021 = vmatprep.subr.mxu0 0.0
    %2022 = vmatpush1.msra.mxu0 %v1990
    %2023 = vmatprep.subr.mxu0 0.0
    %2024 = vmatpush1.msra.mxu0 %v1989
    %2025 = vmatprep.subr.mxu0 0.0
    %2026 = vmatpush1.msra.mxu0 %v1988
    %2027 = vmatprep.subr.mxu0 0.0
    %2028 = vmatpush2.msra.mxu0 0.0
    %2029 = vmatprep.subr.mxu0 0.0
    %2030 = vmatpush2.msra.mxu0 0.0
    %2031 = vmatprep.subr.mxu0 0.0
    %2032 = vmatpush2.msra.mxu0 0.0
    %2033 = vmatprep.subr.mxu0 0.0
    %2034 = vmatpush2.msra.mxu0 0.0
    %2035 = vmatprep.subr.mxu0 0.0
    %2036 = vmatpush2.msra.mxu0 0.0
    %2037 = vmatprep.subr.mxu0 0.0
    %2038 = vmatpush2.msra.mxu0 0.0
    %2039 = vmatprep.subr.mxu0 0.0
    %2040 = vmatpush2.msra.mxu0 0.0
    %2041 = vmatprep.subr.mxu0 0.0
    %2042 = vmatpush2.msra.mxu0 0.0
    %2043 = vmatprep.subr.mxu0 0.0
    %2044 = vmatpush2.msra.mxu0 0.0
    %2045 = vmatprep.subr.mxu0 0.0
    %2046 = vmatpush2.msra.mxu0 0.0
    %2047 = vmatprep.subr.mxu0 0.0
    %2048 = vmatpush2.msra.mxu0 0.0
    %2049 = vmatprep.subr.mxu0 0.0
    %2050 = vmatpush2.msra.mxu0 0.0
    %2051 = vmatprep.subr.mxu0 0.0
    %2052 = vmatpush2.msra.mxu0 0.0
    %2053 = vmatprep.subr.mxu0 0.0
    %2054 = vmatpush2.msra.mxu0 0.0
    %2055 = vmatprep.subr.mxu0 0.0
    %2056 = vmatpush2.msra.mxu0 0.0
    %2057 = vmatprep.subr.mxu0 0.0
    %2058 = vmatpush2.msra.mxu0 0.0
    %2059 = vmatprep.mubr.f32.mxu0 0.0
    %2060 = vmatmul.mubr.f32.gmra.mxu0 %v1993
    %v2061 = vpop.f32.mrf.mxu0
    %v2062 = vadd.f32 %v484, %v2061
    %v2063 = vpop.f32.mrf.mxu0
    %2064 = vdwg.mxu0
    %v2065 = vmax.f32 %v2062, 0.0
    %v2066 = vld [vmem:[%s13] sm:$0xff]
    %v2067 = vld [vmem:[%s13 + $0x8] sm:$0xff]
    %v2068 = vld [vmem:[%s13 + $0x10] sm:$0xff]
    %v2069 = vld [vmem:[%s13 + $0x18] sm:$0xff]
    %v2070 = vld [vmem:[%s14] sm:$0xff]
    %v2071 = vld [vmem:[%s14 + $0x8] sm:$0xff]
    %v2072 = vld [vmem:[%s14 + $0x10] sm:$0xff]
    %v2073 = vld [vmem:[%s14 + $0x18] sm:$0xff]
    %v2075 = vsel %vm520, %v1529, 0
    %2077 = vmatprep.subr.mxu0 0.0
    %2078 = vmatpush1.msra.mxu0 0.0
    %2079 = vmatprep.subr.mxu0 0.0
    %2080 = vmatpush1.msra.mxu0 0.0
    %2081 = vmatprep.subr.mxu0 0.0
    %2082 = vmatpush1.msra.mxu0 0.0
    %2083 = vmatprep.subr.mxu0 0.0
    %2084 = vmatpush1.msra.mxu0 0.0
    %2085 = vmatprep.subr.mxu0 0.0
    %2086 = vmatpush1.msra.mxu0 0.0
    %2087 = vmatprep.subr.mxu0 0.0
    %2088 = vmatpush1.msra.mxu0 0.0
    %2089 = vmatprep.subr.mxu0 0.0
    %2090 = vmatpush1.msra.mxu0 0.0
    %2091 = vmatprep.subr.mxu0 0.0
    %2092 = vmatpush1.msra.mxu0 0.0
    %2093 = vmatprep.subr.mxu0 0.0
    %2094 = vmatpush1.msra.mxu0 0.0
    %2095 = vmatprep.subr.mxu0 0.0
    %2096 = vmatpush1.msra.mxu0 0.0
    %2097 = vmatprep.subr.mxu0 0.0
    %2098 = vmatpush1.msra.mxu0 0.0
    %2099 = vmatprep.subr.mxu0 0.0
    %2100 = vmatpush1.msra.mxu0 0.0
    %2101 = vmatprep.subr.mxu0 0.0
    %2102 = vmatpush1.msra.mxu0 %v2073
    %2103 = vmatprep.subr.mxu0 0.0
    %2104 = vmatpush1.msra.mxu0 %v2072
    %2105 = vmatprep.subr.mxu0 0.0
    %2106 = vmatpush1.msra.mxu0 %v2071
    %2107 = vmatprep.subr.mxu0 0.0
    %2108 = vmatpush1.msra.mxu0 %v2070
    %2109 = vmatprep.subr.mxu0 0.0
    %2110 = vmatpush2.msra.mxu0 0.0
    %2111 = vmatprep.subr.mxu0 0.0
    %2112 = vmatpush2.msra.mxu0 0.0
    %2113 = vmatprep.subr.mxu0 0.0
    %2114 = vmatpush2.msra.mxu0 0.0
    %2115 = vmatprep.subr.mxu0 0.0
    %2116 = vmatpush2.msra.mxu0 0.0
    %2117 = vmatprep.subr.mxu0 0.0
    %2118 = vmatpush2.msra.mxu0 0.0
    %2119 = vmatprep.subr.mxu0 0.0
    %2120 = vmatpush2.msra.mxu0 0.0
    %2121 = vmatprep.subr.mxu0 0.0
    %2122 = vmatpush2.msra.mxu0 0.0
    %2123 = vmatprep.subr.mxu0 0.0
    %2124 = vmatpush2.msra.mxu0 0.0
    %2125 = vmatprep.subr.mxu0 0.0
    %2126 = vmatpush2.msra.mxu0 0.0
    %2127 = vmatprep.subr.mxu0 0.0
    %2128 = vmatpush2.msra.mxu0 0.0
    %2129 = vmatprep.subr.mxu0 0.0
    %2130 = vmatpush2.msra.mxu0 0.0
    %2131 = vmatprep.subr.mxu0 0.0
    %2132 = vmatpush2.msra.mxu0 0.0
    %2133 = vmatprep.subr.mxu0 0.0
    %2134 = vmatpush2.msra.mxu0 0.0
    %2135 = vmatprep.subr.mxu0 0.0
    %2136 = vmatpush2.msra.mxu0 0.0
    %2137 = vmatprep.subr.mxu0 0.0
    %2138 = vmatpush2.msra.mxu0 0.0
    %2139 = vmatprep.subr.mxu0 0.0
    %2140 = vmatpush2.msra.mxu0 0.0
    %2141 = vmatprep.mubr.f32.mxu0 0.0
    %2142 = vmatmul.mubr.f32.gmra.mxu0 %v2075
    %v2143 = vpop.f32.mrf.mxu0
    %v2144 = vadd.f32 0.0, %v2143
    %v2145 = vpop.f32.mrf.mxu0
    %2146 = vdwg.mxu0
    %v2148 = vsel %vm520, %v2065, 0
    %2150 = vmatprep.subr.mxu0 0.0
    %2151 = vmatpush1.msra.mxu0 0.0
    %2152 = vmatprep.subr.mxu0 0.0
    %2153 = vmatpush1.msra.mxu0 0.0
    %2154 = vmatprep.subr.mxu0 0.0
    %2155 = vmatpush1.msra.mxu0 0.0
    %2156 = vmatprep.subr.mxu0 0.0
    %2157 = vmatpush1.msra.mxu0 0.0
    %2158 = vmatprep.subr.mxu0 0.0
    %2159 = vmatpush1.msra.mxu0 0.0
    %2160 = vmatprep.subr.mxu0 0.0
    %2161 = vmatpush1.msra.mxu0 0.0
    %2162 = vmatprep.subr.mxu0 0.0
    %2163 = vmatpush1.msra.mxu0 0.0
    %2164 = vmatprep.subr.mxu0 0.0
    %2165 = vmatpush1.msra.mxu0 0.0
    %2166 = vmatprep.subr.mxu0 0.0
    %2167 = vmatpush1.msra.mxu0 0.0
    %2168 = vmatprep.subr.mxu0 0.0
    %2169 = vmatpush1.msra.mxu0 0.0
    %2170 = vmatprep.subr.mxu0 0.0
    %2171 = vmatpush1.msra.mxu0 0.0
    %2172 = vmatprep.subr.mxu0 0.0
    %2173 = vmatpush1.msra.mxu0 0.0
    %2174 = vmatprep.subr.mxu0 0.0
    %2175 = vmatpush1.msra.mxu0 %v2069
    %2176 = vmatprep.subr.mxu0 0.0
    %2177 = vmatpush1.msra.mxu0 %v2068
    %2178 = vmatprep.subr.mxu0 0.0
    %2179 = vmatpush1.msra.mxu0 %v2067
    %2180 = vmatprep.subr.mxu0 0.0
    %2181 = vmatpush1.msra.mxu0 %v2066
    %2182 = vmatprep.subr.mxu0 0.0
    %2183 = vmatpush2.msra.mxu0 0.0
    %2184 = vmatprep.subr.mxu0 0.0
    %2185 = vmatpush2.msra.mxu0 0.0
    %2186 = vmatprep.subr.mxu0 0.0
    %2187 = vmatpush2.msra.mxu0 0.0
    %2188 = vmatprep.subr.mxu0 0.0
    %2189 = vmatpush2.msra.mxu0 0.0
    %2190 = vmatprep.subr.mxu0 0.0
    %2191 = vmatpush2.msra.mxu0 0.0
    %2192 = vmatprep.subr.mxu0 0.0
    %2193 = vmatpush2.msra.mxu0 0.0
    %2194 = vmatprep.subr.mxu0 0.0
    %2195 = vmatpush2.msra.mxu0 0.0
    %2196 = vmatprep.subr.mxu0 0.0
    %2197 = vmatpush2.msra.mxu0 0.0
    %2198 = vmatprep.subr.mxu0 0.0
    %2199 = vmatpush2.msra.mxu0 0.0
    %2200 = vmatprep.subr.mxu0 0.0
    %2201 = vmatpush2.msra.mxu0 0.0
    %2202 = vmatprep.subr.mxu0 0.0
    %2203 = vmatpush2.msra.mxu0 0.0
    %2204 = vmatprep.subr.mxu0 0.0
    %2205 = vmatpush2.msra.mxu0 0.0
    %2206 = vmatprep.subr.mxu0 0.0
    %2207 = vmatpush2.msra.mxu0 0.0
    %2208 = vmatprep.subr.mxu0 0.0
    %2209 = vmatpush2.msra.mxu0 0.0
    %2210 = vmatprep.subr.mxu0 0.0
    %2211 = vmatpush2.msra.mxu0 0.0
    %2212 = vmatprep.subr.mxu0 0.0
    %2213 = vmatpush2.msra.mxu0 0.0
    %2214 = vmatprep.mubr.f32.mxu0 0.0
    %2215 = vmatmul.mubr.f32.gmra.mxu0 %v2148
    %v2216 = vpop.f32.mrf.mxu0
    %v2217 = vadd.f32 %v2144, %v2216
    %v2218 = vpop.f32.mrf.mxu0
    %2219 = vdwg.mxu0
    %v2220 = vadd.f32 %v2217, %v491
    %v2221 = vtanh.pop %v2220
    %v2222 = vmax.f32 %v2221, 0.0
    %v2223 = vld [vmem:[#allocation13] sm:$0xff]
    %v2224 = vld [vmem:[#allocation13 + $0x8] sm:$0xff]
    %v2225 = vld [vmem:[#allocation13 + $0x10] sm:$0xff]
    %v2226 = vld [vmem:[#allocation13 + $0x18] sm:$0xff]
    %v2228 = vsel %vm520, %v2222, 0
    %2230 = vmatprep.subr.mxu0 0.0
    %2231 = vmatpush1.msra.mxu0 0.0
    %2232 = vmatprep.subr.mxu0 0.0
    %2233 = vmatpush1.msra.mxu0 0.0
    %2234 = vmatprep.subr.mxu0 0.0
    %2235 = vmatpush1.msra.mxu0 0.0
    %2236 = vmatprep.subr.mxu0 0.0
    %2237 = vmatpush1.msra.mxu0 0.0
    %2238 = vmatprep.subr.mxu0 0.0
    %2239 = vmatpush1.msra.mxu0 0.0
    %2240 = vmatprep.subr.mxu0 0.0
    %2241 = vmatpush1.msra.mxu0 0.0
    %2242 = vmatprep.subr.mxu0 0.0
    %2243 = vmatpush1.msra.mxu0 0.0
    %2244 = vmatprep.subr.mxu0 0.0
    %2245 = vmatpush1.msra.mxu0 0.0
    %2246 = vmatprep.subr.mxu0 0.0
    %2247 = vmatpush1.msra.mxu0 0.0
    %2248 = vmatprep.subr.mxu0 0.0
    %2249 = vmatpush1.msra.mxu0 0.0
    %2250 = vmatprep.subr.mxu0 0.0
    %2251 = vmatpush1.msra.mxu0 0.0
    %2252 = vmatprep.subr.mxu0 0.0
    %2253 = vmatpush1.msra.mxu0 0.0
    %2254 = vmatprep.subr.mxu0 0.0
    %2255 = vmatpush1.msra.mxu0 %v2226
    %2256 = vmatprep.subr.mxu0 0.0
    %2257 = vmatpush1.msra.mxu0 %v2225
    %2258 = vmatprep.subr.mxu0 0.0
    %2259 = vmatpush1.msra.mxu0 %v2224
    %2260 = vmatprep.subr.mxu0 0.0
    %2261 = vmatpush1.msra.mxu0 %v2223
    %2262 = vmatprep.subr.mxu0 0.0
    %2263 = vmatpush2.msra.mxu0 0.0
    %2264 = vmatprep.subr.mxu0 0.0
    %2265 = vmatpush2.msra.mxu0 0.0
    %2266 = vmatprep.subr.mxu0 0.0
    %2267 = vmatpush2.msra.mxu0 0.0
    %2268 = vmatprep.subr.mxu0 0.0
    %2269 = vmatpush2.msra.mxu0 0.0
    %2270 = vmatprep.subr.mxu0 0.0
    %2271 = vmatpush2.msra.mxu0 0.0
    %2272 = vmatprep.subr.mxu0 0.0
    %2273 = vmatpush2.msra.mxu0 0.0
    %2274 = vmatprep.subr.mxu0 0.0
    %2275 = vmatpush2.msra.mxu0 0.0
    %2276 = vmatprep.subr.mxu0 0.0
    %2277 = vmatpush2.msra.mxu0 0.0
    %2278 = vmatprep.subr.mxu0 0.0
    %2279 = vmatpush2.msra.mxu0 0.0
    %2280 = vmatprep.subr.mxu0 0.0
    %2281 = vmatpush2.msra.mxu0 0.0
    %2282 = vmatprep.subr.mxu0 0.0
    %2283 = vmatpush2.msra.mxu0 0.0
    %2284 = vmatprep.subr.mxu0 0.0
    %2285 = vmatpush2.msra.mxu0 0.0
    %2286 = vmatprep.subr.mxu0 0.0
    %2287 = vmatpush2.msra.mxu0 0.0
    %2288 = vmatprep.subr.mxu0 0.0
    %2289 = vmatpush2.msra.mxu0 0.0
    %2290 = vmatprep.subr.mxu0 0.0
    %2291 = vmatpush2.msra.mxu0 0.0
    %2292 = vmatprep.subr.mxu0 0.0
    %2293 = vmatpush2.msra.mxu0 0.0
    %2294 = vmatprep.mubr.f32.mxu0 0.0
    %2295 = vmatmul.mubr.f32.gmra.mxu0 %v2228
    %v2296 = vpop.f32.mrf.mxu0
    %v2297 = vadd.f32 %v498, %v2296
    %v2298 = vpop.f32.mrf.mxu0
    %2299 = vdwg.mxu0
    %v2300 = vmax.f32 %v2297, 0.0
    %v2301 = vld [vmem:[#allocation16] sm:$0xff]
    %v2302 = vld [vmem:[#allocation16 + $0x8] sm:$0xff]
    %v2303 = vld [vmem:[#allocation16 + $0x10] sm:$0xff]
    %v2304 = vld [vmem:[#allocation16 + $0x18] sm:$0xff]
    %v2306 = vsel %vm520, %v2300, 0
    %2308 = vmatprep.subr.mxu0 0.0
    %2309 = vmatpush1.msra.mxu0 0.0
    %2310 = vmatprep.subr.mxu0 0.0
    %2311 = vmatpush1.msra.mxu0 0.0
    %2312 = vmatprep.subr.mxu0 0.0
    %2313 = vmatpush1.msra.mxu0 0.0
    %2314 = vmatprep.subr.mxu0 0.0
    %2315 = vmatpush1.msra.mxu0 0.0
    %2316 = vmatprep.subr.mxu0 0.0
    %2317 = vmatpush1.msra.mxu0 0.0
    %2318 = vmatprep.subr.mxu0 0.0
    %2319 = vmatpush1.msra.mxu0 0.0
    %2320 = vmatprep.subr.mxu0 0.0
    %2321 = vmatpush1.msra.mxu0 0.0
    %2322 = vmatprep.subr.mxu0 0.0
    %2323 = vmatpush1.msra.mxu0 0.0
    %2324 = vmatprep.subr.mxu0 0.0
    %2325 = vmatpush1.msra.mxu0 0.0
    %2326 = vmatprep.subr.mxu0 0.0
    %2327 = vmatpush1.msra.mxu0 0.0
    %2328 = vmatprep.subr.mxu0 0.0
    %2329 = vmatpush1.msra.mxu0 0.0
    %2330 = vmatprep.subr.mxu0 0.0
    %2331 = vmatpush1.msra.mxu0 0.0
    %2332 = vmatprep.subr.mxu0 0.0
    %2333 = vmatpush1.msra.mxu0 %v2304
    %2334 = vmatprep.subr.mxu0 0.0
    %2335 = vmatpush1.msra.mxu0 %v2303
    %2336 = vmatprep.subr.mxu0 0.0
    %2337 = vmatpush1.msra.mxu0 %v2302
    %2338 = vmatprep.subr.mxu0 0.0
    %2339 = vmatpush1.msra.mxu0 %v2301
    %2340 = vmatprep.subr.mxu0 0.0
    %2341 = vmatpush2.msra.mxu0 0.0
    %2342 = vmatprep.subr.mxu0 0.0
    %2343 = vmatpush2.msra.mxu0 0.0
    %2344 = vmatprep.subr.mxu0 0.0
    %2345 = vmatpush2.msra.mxu0 0.0
    %2346 = vmatprep.subr.mxu0 0.0
    %2347 = vmatpush2.msra.mxu0 0.0
    %2348 = vmatprep.subr.mxu0 0.0
    %2349 = vmatpush2.msra.mxu0 0.0
    %2350 = vmatprep.subr.mxu0 0.0
    %2351 = vmatpush2.msra.mxu0 0.0
    %2352 = vmatprep.subr.mxu0 0.0
    %2353 = vmatpush2.msra.mxu0 0.0
    %2354 = vmatprep.subr.mxu0 0.0
    %2355 = vmatpush2.msra.mxu0 0.0
    %2356 = vmatprep.subr.mxu0 0.0
    %2357 = vmatpush2.msra.mxu0 0.0
    %2358 = vmatprep.subr.mxu0 0.0
    %2359 = vmatpush2.msra.mxu0 0.0
    %2360 = vmatprep.subr.mxu0 0.0
    %2361 = vmatpush2.msra.mxu0 0.0
    %2362 = vmatprep.subr.mxu0 0.0
    %2363 = vmatpush2.msra.mxu0 0.0
    %2364 = vmatprep.subr.mxu0 0.0
    %2365 = vmatpush2.msra.mxu0 0.0
    %2366 = vmatprep.subr.mxu0 0.0
    %2367 = vmatpush2.msra.mxu0 0.0
    %2368 = vmatprep.subr.mxu0 0.0
    %2369 = vmatpush2.msra.mxu0 0.0
    %2370 = vmatprep.subr.mxu0 0.0
    %2371 = vmatpush2.msra.mxu0 0.0
    %2372 = vmatprep.mubr.f32.mxu0 0.0
    %2373 = vmatmul.mubr.f32.gmra.mxu0 %v2306
    %v2374 = vpop.f32.mrf.mxu0
    %v2375 = vadd.f32 %v505, %v2374
    %v2376 = vpop.f32.mrf.mxu0
    %2377 = vdwg.mxu0
    %v2378 = vmax.f32 %v2375, 0.0
    %v2379 = vld [vmem:[%s20] sm:$0xff]
    %v2380 = vld [vmem:[%s20 + $0x8] sm:$0xff]
    %v2381 = vld [vmem:[%s20 + $0x10] sm:$0xff]
    %v2382 = vld [vmem:[%s20 + $0x18] sm:$0xff]
    %v2384 = vsel %vm520, %v2378, 0
    %2386 = vmatprep.subr.mxu0 0.0
    %2387 = vmatpush1.msra.mxu0 0.0
    %2388 = vmatprep.subr.mxu0 0.0
    %2389 = vmatpush1.msra.mxu0 0.0
    %2390 = vmatprep.subr.mxu0 0.0
    %2391 = vmatpush1.msra.mxu0 0.0
    %2392 = vmatprep.subr.mxu0 0.0
    %2393 = vmatpush1.msra.mxu0 0.0
    %2394 = vmatprep.subr.mxu0 0.0
    %2395 = vmatpush1.msra.mxu0 0.0
    %2396 = vmatprep.subr.mxu0 0.0
    %2397 = vmatpush1.msra.mxu0 0.0
    %2398 = vmatprep.subr.mxu0 0.0
    %2399 = vmatpush1.msra.mxu0 0.0
    %2400 = vmatprep.subr.mxu0 0.0
    %2401 = vmatpush1.msra.mxu0 0.0
    %2402 = vmatprep.subr.mxu0 0.0
    %2403 = vmatpush1.msra.mxu0 0.0
    %2404 = vmatprep.subr.mxu0 0.0
    %2405 = vmatpush1.msra.mxu0 0.0
    %2406 = vmatprep.subr.mxu0 0.0
    %2407 = vmatpush1.msra.mxu0 0.0
    %2408 = vmatprep.subr.mxu0 0.0
    %2409 = vmatpush1.msra.mxu0 0.0
    %2410 = vmatprep.subr.mxu0 0.0
    %2411 = vmatpush1.msra.mxu0 %v2382
    %2412 = vmatprep.subr.mxu0 0.0
    %2413 = vmatpush1.msra.mxu0 %v2381
    %2414 = vmatprep.subr.mxu0 0.0
    %2415 = vmatpush1.msra.mxu0 %v2380
    %2416 = vmatprep.subr.mxu0 0.0
    %2417 = vmatpush1.msra.mxu0 %v2379
    %2418 = vmatprep.subr.mxu0 0.0
    %2419 = vmatpush2.msra.mxu0 0.0
    %2420 = vmatprep.subr.mxu0 0.0
    %2421 = vmatpush2.msra.mxu0 0.0
    %2422 = vmatprep.subr.mxu0 0.0
    %2423 = vmatpush2.msra.mxu0 0.0
    %2424 = vmatprep.subr.mxu0 0.0
    %2425 = vmatpush2.msra.mxu0 0.0
    %2426 = vmatprep.subr.mxu0 0.0
    %2427 = vmatpush2.msra.mxu0 0.0
    %2428 = vmatprep.subr.mxu0 0.0
    %2429 = vmatpush2.msra.mxu0 0.0
    %2430 = vmatprep.subr.mxu0 0.0
    %2431 = vmatpush2.msra.mxu0 0.0
    %2432 = vmatprep.subr.mxu0 0.0
    %2433 = vmatpush2.msra.mxu0 0.0
    %2434 = vmatprep.subr.mxu0 0.0
    %2435 = vmatpush2.msra.mxu0 0.0
    %2436 = vmatprep.subr.mxu0 0.0
    %2437 = vmatpush2.msra.mxu0 0.0
    %2438 = vmatprep.subr.mxu0 0.0
    %2439 = vmatpush2.msra.mxu0 0.0
    %2440 = vmatprep.subr.mxu0 0.0
    %2441 = vmatpush2.msra.mxu0 0.0
    %2442 = vmatprep.subr.mxu0 0.0
    %2443 = vmatpush2.msra.mxu0 0.0
    %2444 = vmatprep.subr.mxu0 0.0
    %2445 = vmatpush2.msra.mxu0 0.0
    %2446 = vmatprep.subr.mxu0 0.0
    %2447 = vmatpush2.msra.mxu0 0.0
    %2448 = vmatprep.subr.mxu0 0.0
    %2449 = vmatpush2.msra.mxu0 0.0
    %2450 = vmatprep.mubr.f32.mxu0 0.0
    %2451 = vmatmul.mubr.f32.gmra.mxu0 %v2384
    %v2452 = vpop.f32.mrf.mxu0
    %v2453 = vadd.f32 %v512, %v2452
    %v2454 = vpop.f32.mrf.mxu0
    %2455 = vdwg.mxu0
    %2457 = vset.pattern.permute.xlu0 0
    %2458 = vperm.xlu0 %2457, %v470
    %v2459 = vpop.permute.xlu0 %2458
    %v2461 = vmul.f32 %v2453, %v2459
    %v2464 = vunpack.c.l.s4 1966171168
    %v2465 = vunpack.c.0.s8 %v2464
    %v2466 = vlaneseq
    %v2467 = vshrl.u32 %v2466, 7
    %v2468 = vsub.s32 %v2465, %v2467
    %v2469 = vrot.slane %v2461, %v2468
    %v2470 = vcombine.high %v2469, %v2469
    %v2472 = vunpack.c.l.s4 1966171168
    %v2473 = vunpack.c.0.s8 %v2472
    %v2474 = vlaneseq
    %v2475 = vshrl.u32 %v2474, 7
    %v2476 = vsub.s32 %v2473, %v2475
    %v2477 = vrot.slane %v2469, %v2476
    %v2479 = vunpack.c.l.s4 1966171168
    %v2480 = vunpack.c.0.s8 %v2479
    %v2481 = vlaneseq
    %v2482 = vshrl.u32 %v2481, 7
    %v2483 = vsub.s32 %v2480, %v2482
    %v2484 = vrot.slane %v2470, %v2483
    %v2485 = vcombine.high %v2477, %v2477
    %v2486 = vcombine.high %v2484, %v2484
    %2491 = vst.msk [vmem:[%s22 + $0x2] sm:$0x1] %vm1098, %v2477
    %2492 = vst.msk [vmem:[%s22 + $0xa] sm:$0x1] %vm1098, %v2484
    %2493 = vst.msk [vmem:[%s22 + $0x12] sm:$0x1] %vm1098, %v2485
    %2494 = vst.msk [vmem:[%s22 + $0x1a] sm:$0x1] %vm1098, %v2486
    %v2495 = vmul.f32 %v2062, %v2459
    %v2498 = vunpack.c.l.s4 1966171168
    %v2499 = vunpack.c.0.s8 %v2498
    %v2500 = vlaneseq
    %v2501 = vshrl.u32 %v2500, 7
    %v2502 = vsub.s32 %v2499, %v2501
    %v2503 = vrot.slane %v2495, %v2502
    %v2504 = vcombine.high %v2503, %v2503
    %v2506 = vunpack.c.l.s4 1966171168
    %v2507 = vunpack.c.0.s8 %v2506
    %v2508 = vlaneseq
    %v2509 = vshrl.u32 %v2508, 7
    %v2510 = vsub.s32 %v2507, %v2509
    %v2511 = vrot.slane %v2503, %v2510
    %v2513 = vunpack.c.l.s4 1966171168
    %v2514 = vunpack.c.0.s8 %v2513
    %v2515 = vlaneseq
    %v2516 = vshrl.u32 %v2515, 7
    %v2517 = vsub.s32 %v2514, %v2516
    %v2518 = vrot.slane %v2504, %v2517
    %v2519 = vcombine.high %v2511, %v2511
    %v2520 = vcombine.high %v2518, %v2518
    %2525 = vst.msk [vmem:[%s23 + $0x2] sm:$0x1] %vm1133, %v2511
    %2526 = vst.msk [vmem:[%s23 + $0xa] sm:$0x1] %vm1133, %v2518
    %2527 = vst.msk [vmem:[%s23 + $0x12] sm:$0x1] %vm1133, %v2519
    %2528 = vst.msk [vmem:[%s23 + $0x1a] sm:$0x1] %vm1133, %v2520
    %v2529 = vld [vmem:[%s8] sm:$0xff]
    %v2531 = vsel %vm229, %v2453, 0
    %2533 = vmatprep.subr.mxu0 0.0
    %2534 = vmatpush1.msra.mxu0 0.0
    %2535 = vmatprep.subr.mxu0 0.0
    %2536 = vmatpush1.msra.mxu0 0.0
    %2537 = vmatprep.subr.mxu0 0.0
    %2538 = vmatpush1.msra.mxu0 0.0
    %2539 = vmatprep.subr.mxu0 0.0
    %2540 = vmatpush1.msra.mxu0 0.0
    %2541 = vmatprep.subr.mxu0 0.0
    %2542 = vmatpush1.msra.mxu0 0.0
    %2543 = vmatprep.subr.mxu0 0.0
    %2544 = vmatpush1.msra.mxu0 0.0
    %2545 = vmatprep.subr.mxu0 0.0
    %2546 = vmatpush1.msra.mxu0 0.0
    %2547 = vmatprep.subr.mxu0 0.0
    %2548 = vmatpush1.msra.mxu0 0.0
    %2549 = vmatprep.subr.mxu0 0.0
    %2550 = vmatpush1.msra.mxu0 0.0
    %2551 = vmatprep.subr.mxu0 0.0
    %2552 = vmatpush1.msra.mxu0 0.0
    %2553 = vmatprep.subr.mxu0 0.0
    %2554 = vmatpush1.msra.mxu0 0.0
    %2555 = vmatprep.subr.mxu0 0.0
    %2556 = vmatpush1.msra.mxu0 0.0
    %2557 = vmatprep.subr.mxu0 0.0
    %2558 = vmatpush1.msra.mxu0 0.0
    %2559 = vmatprep.subr.mxu0 0.0
    %2560 = vmatpush1.msra.mxu0 0.0
    %2561 = vmatprep.subr.mxu0 0.0
    %2562 = vmatpush1.msra.mxu0 0.0
    %2563 = vmatprep.subr.mxu0 0.0
    %2564 = vmatpush1.msra.mxu0 %v2529
    %2565 = vmatprep.subr.mxu0 0.0
    %2566 = vmatpush2.msra.mxu0 0.0
    %2567 = vmatprep.subr.mxu0 0.0
    %2568 = vmatpush2.msra.mxu0 0.0
    %2569 = vmatprep.subr.mxu0 0.0
    %2570 = vmatpush2.msra.mxu0 0.0
    %2571 = vmatprep.subr.mxu0 0.0
    %2572 = vmatpush2.msra.mxu0 0.0
    %2573 = vmatprep.subr.mxu0 0.0
    %2574 = vmatpush2.msra.mxu0 0.0
    %2575 = vmatprep.subr.mxu0 0.0
    %2576 = vmatpush2.msra.mxu0 0.0
    %2577 = vmatprep.subr.mxu0 0.0
    %2578 = vmatpush2.msra.mxu0 0.0
    %2579 = vmatprep.subr.mxu0 0.0
    %2580 = vmatpush2.msra.mxu0 0.0
    %2581 = vmatprep.subr.mxu0 0.0
    %2582 = vmatpush2.msra.mxu0 0.0
    %2583 = vmatprep.subr.mxu0 0.0
    %2584 = vmatpush2.msra.mxu0 0.0
    %2585 = vmatprep.subr.mxu0 0.0
    %2586 = vmatpush2.msra.mxu0 0.0
    %2587 = vmatprep.subr.mxu0 0.0
    %2588 = vmatpush2.msra.mxu0 0.0
    %2589 = vmatprep.subr.mxu0 0.0
    %2590 = vmatpush2.msra.mxu0 0.0
    %2591 = vmatprep.subr.mxu0 0.0
    %2592 = vmatpush2.msra.mxu0 0.0
    %2593 = vmatprep.subr.mxu0 0.0
    %2594 = vmatpush2.msra.mxu0 0.0
    %2595 = vmatprep.subr.mxu0 0.0
    %2596 = vmatpush2.msra.mxu0 0.0
    %2597 = vmatprep.mubr.f32.mxu0 0.0
    %2598 = vmatmul.mubr.f32.gmra.mxu0 %v2531
    %v2599 = vpop.f32.mrf.mxu0
    %v2600 = vadd.f32 0.0, %v2599
    %v2601 = vpop.f32.mrf.mxu0
    %2602 = vdwg.mxu0
    %v2604 = vrot.slane %v2600, 4
    %v2606 = vadd.f32 %v311, %v2604
    %v2607 = vmax.f32 %v2606, 0.0
    %v2608 = vld [vmem:[%s9] sm:$0xff]
    %v2609 = vld [vmem:[%s9 + $0x8] sm:$0xff]
    %v2610 = vld [vmem:[%s9 + $0x10] sm:$0xff]
    %v2611 = vld [vmem:[%s9 + $0x18] sm:$0xff]
    %v2613 = vrot.slane %v2607, 4
    %v2614 = vsel %vm520, %v2613, 0
    %2616 = vmatprep.subr.mxu0 0.0
    %2617 = vmatpush1.msra.mxu0 0.0
    %2618 = vmatprep.subr.mxu0 0.0
    %2619 = vmatpush1.msra.mxu0 0.0
    %2620 = vmatprep.subr.mxu0 0.0
    %2621 = vmatpush1.msra.mxu0 0.0
    %2622 = vmatprep.subr.mxu0 0.0
    %2623 = vmatpush1.msra.mxu0 0.0
    %2624 = vmatprep.subr.mxu0 0.0
    %2625 = vmatpush1.msra.mxu0 0.0
    %2626 = vmatprep.subr.mxu0 0.0
    %2627 = vmatpush1.msra.mxu0 0.0
    %2628 = vmatprep.subr.mxu0 0.0
    %2629 = vmatpush1.msra.mxu0 0.0
    %2630 = vmatprep.subr.mxu0 0.0
    %2631 = vmatpush1.msra.mxu0 0.0
    %2632 = vmatprep.subr.mxu0 0.0
    %2633 = vmatpush1.msra.mxu0 0.0
    %2634 = vmatprep.subr.mxu0 0.0
    %2635 = vmatpush1.msra.mxu0 0.0
    %2636 = vmatprep.subr.mxu0 0.0
    %2637 = vmatpush1.msra.mxu0 0.0
    %2638 = vmatprep.subr.mxu0 0.0
    %2639 = vmatpush1.msra.mxu0 0.0
    %2640 = vmatprep.subr.mxu0 0.0
    %2641 = vmatpush1.msra.mxu0 %v2611
    %2642 = vmatprep.subr.mxu0 0.0
    %2643 = vmatpush1.msra.mxu0 %v2610
    %2644 = vmatprep.subr.mxu0 0.0
    %2645 = vmatpush1.msra.mxu0 %v2609
    %2646 = vmatprep.subr.mxu0 0.0
    %2647 = vmatpush1.msra.mxu0 %v2608
    %2648 = vmatprep.subr.mxu0 0.0
    %2649 = vmatpush2.msra.mxu0 0.0
    %2650 = vmatprep.subr.mxu0 0.0
    %2651 = vmatpush2.msra.mxu0 0.0
    %2652 = vmatprep.subr.mxu0 0.0
    %2653 = vmatpush2.msra.mxu0 0.0
    %2654 = vmatprep.subr.mxu0 0.0
    %2655 = vmatpush2.msra.mxu0 0.0
    %2656 = vmatprep.subr.mxu0 0.0
    %2657 = vmatpush2.msra.mxu0 0.0
    %2658 = vmatprep.subr.mxu0 0.0
    %2659 = vmatpush2.msra.mxu0 0.0
    %2660 = vmatprep.subr.mxu0 0.0
    %2661 = vmatpush2.msra.mxu0 0.0
    %2662 = vmatprep.subr.mxu0 0.0
    %2663 = vmatpush2.msra.mxu0 0.0
    %2664 = vmatprep.subr.mxu0 0.0
    %2665 = vmatpush2.msra.mxu0 0.0
    %2666 = vmatprep.subr.mxu0 0.0
    %2667 = vmatpush2.msra.mxu0 0.0
    %2668 = vmatprep.subr.mxu0 0.0
    %2669 = vmatpush2.msra.mxu0 0.0
    %2670 = vmatprep.subr.mxu0 0.0
    %2671 = vmatpush2.msra.mxu0 0.0
    %2672 = vmatprep.subr.mxu0 0.0
    %2673 = vmatpush2.msra.mxu0 0.0
    %2674 = vmatprep.subr.mxu0 0.0
    %2675 = vmatpush2.msra.mxu0 0.0
    %2676 = vmatprep.subr.mxu0 0.0
    %2677 = vmatpush2.msra.mxu0 0.0
    %2678 = vmatprep.subr.mxu0 0.0
    %2679 = vmatpush2.msra.mxu0 0.0
    %2680 = vmatprep.mubr.f32.mxu0 0.0
    %2681 = vmatmul.mubr.f32.gmra.mxu0 %v2614
    %v2682 = vpop.f32.mrf.mxu0
    %v2683 = vadd.f32 %v477, %v2682
    %v2684 = vpop.f32.mrf.mxu0
    %2685 = vdwg.mxu0
    %v2686 = vmax.f32 %v2683, 0.0
    %v2687 = vld [vmem:[%s11] sm:$0xff]
    %v2688 = vld [vmem:[%s11 + $0x8] sm:$0xff]
    %v2689 = vld [vmem:[%s11 + $0x10] sm:$0xff]
    %v2690 = vld [vmem:[%s11 + $0x18] sm:$0xff]
    %v2692 = vsel %vm520, %v2686, 0
    %2694 = vmatprep.subr.mxu0 0.0
    %2695 = vmatpush1.msra.mxu0 0.0
    %2696 = vmatprep.subr.mxu0 0.0
    %2697 = vmatpush1.msra.mxu0 0.0
    %2698 = vmatprep.subr.mxu0 0.0
    %2699 = vmatpush1.msra.mxu0 0.0
    %2700 = vmatprep.subr.mxu0 0.0
    %2701 = vmatpush1.msra.mxu0 0.0
    %2702 = vmatprep.subr.mxu0 0.0
    %2703 = vmatpush1.msra.mxu0 0.0
    %2704 = vmatprep.subr.mxu0 0.0
    %2705 = vmatpush1.msra.mxu0 0.0
    %2706 = vmatprep.subr.mxu0 0.0
    %2707 = vmatpush1.msra.mxu0 0.0
    %2708 = vmatprep.subr.mxu0 0.0
    %2709 = vmatpush1.msra.mxu0 0.0
    %2710 = vmatprep.subr.mxu0 0.0
    %2711 = vmatpush1.msra.mxu0 0.0
    %2712 = vmatprep.subr.mxu0 0.0
    %2713 = vmatpush1.msra.mxu0 0.0
    %2714 = vmatprep.subr.mxu0 0.0
    %2715 = vmatpush1.msra.mxu0 0.0
    %2716 = vmatprep.subr.mxu0 0.0
    %2717 = vmatpush1.msra.mxu0 0.0
    %2718 = vmatprep.subr.mxu0 0.0
    %2719 = vmatpush1.msra.mxu0 %v2690
    %2720 = vmatprep.subr.mxu0 0.0
    %2721 = vmatpush1.msra.mxu0 %v2689
    %2722 = vmatprep.subr.mxu0 0.0
    %2723 = vmatpush1.msra.mxu0 %v2688
    %2724 = vmatprep.subr.mxu0 0.0
    %2725 = vmatpush1.msra.mxu0 %v2687
    %2726 = vmatprep.subr.mxu0 0.0
    %2727 = vmatpush2.msra.mxu0 0.0
    %2728 = vmatprep.subr.mxu0 0.0
    %2729 = vmatpush2.msra.mxu0 0.0
    %2730 = vmatprep.subr.mxu0 0.0
    %2731 = vmatpush2.msra.mxu0 0.0
    %2732 = vmatprep.subr.mxu0 0.0
    %2733 = vmatpush2.msra.mxu0 0.0
    %2734 = vmatprep.subr.mxu0 0.0
    %2735 = vmatpush2.msra.mxu0 0.0
    %2736 = vmatprep.subr.mxu0 0.0
    %2737 = vmatpush2.msra.mxu0 0.0
    %2738 = vmatprep.subr.mxu0 0.0
    %2739 = vmatpush2.msra.mxu0 0.0
    %2740 = vmatprep.subr.mxu0 0.0
    %2741 = vmatpush2.msra.mxu0 0.0
    %2742 = vmatprep.subr.mxu0 0.0
    %2743 = vmatpush2.msra.mxu0 0.0
    %2744 = vmatprep.subr.mxu0 0.0
    %2745 = vmatpush2.msra.mxu0 0.0
    %2746 = vmatprep.subr.mxu0 0.0
    %2747 = vmatpush2.msra.mxu0 0.0
    %2748 = vmatprep.subr.mxu0 0.0
    %2749 = vmatpush2.msra.mxu0 0.0
    %2750 = vmatprep.subr.mxu0 0.0
    %2751 = vmatpush2.msra.mxu0 0.0
    %2752 = vmatprep.subr.mxu0 0.0
    %2753 = vmatpush2.msra.mxu0 0.0
    %2754 = vmatprep.subr.mxu0 0.0
    %2755 = vmatpush2.msra.mxu0 0.0
    %2756 = vmatprep.subr.mxu0 0.0
    %2757 = vmatpush2.msra.mxu0 0.0
    %2758 = vmatprep.mubr.f32.mxu0 0.0
    %2759 = vmatmul.mubr.f32.gmra.mxu0 %v2692
    %v2760 = vpop.f32.mrf.mxu0
    %v2761 = vadd.f32 %v484, %v2760
    %v2762 = vpop.f32.mrf.mxu0
    %2763 = vdwg.mxu0
    %v2764 = vmax.f32 %v2761, 0.0
    %v2765 = vld [vmem:[%s13] sm:$0xff]
    %v2766 = vld [vmem:[%s13 + $0x8] sm:$0xff]
    %v2767 = vld [vmem:[%s13 + $0x10] sm:$0xff]
    %v2768 = vld [vmem:[%s13 + $0x18] sm:$0xff]
    %v2769 = vld [vmem:[%s14] sm:$0xff]
    %v2770 = vld [vmem:[%s14 + $0x8] sm:$0xff]
    %v2771 = vld [vmem:[%s14 + $0x10] sm:$0xff]
    %v2772 = vld [vmem:[%s14 + $0x18] sm:$0xff]
    %v2774 = vsel %vm520, %v2221, 0
    %2776 = vmatprep.subr.mxu0 0.0
    %2777 = vmatpush1.msra.mxu0 0.0
    %2778 = vmatprep.subr.mxu0 0.0
    %2779 = vmatpush1.msra.mxu0 0.0
    %2780 = vmatprep.subr.mxu0 0.0
    %2781 = vmatpush1.msra.mxu0 0.0
    %2782 = vmatprep.subr.mxu0 0.0
    %2783 = vmatpush1.msra.mxu0 0.0
    %2784 = vmatprep.subr.mxu0 0.0
    %2785 = vmatpush1.msra.mxu0 0.0
    %2786 = vmatprep.subr.mxu0 0.0
    %2787 = vmatpush1.msra.mxu0 0.0
    %2788 = vmatprep.subr.mxu0 0.0
    %2789 = vmatpush1.msra.mxu0 0.0
    %2790 = vmatprep.subr.mxu0 0.0
    %2791 = vmatpush1.msra.mxu0 0.0
    %2792 = vmatprep.subr.mxu0 0.0
    %2793 = vmatpush1.msra.mxu0 0.0
    %2794 = vmatprep.subr.mxu0 0.0
    %2795 = vmatpush1.msra.mxu0 0.0
    %2796 = vmatprep.subr.mxu0 0.0
    %2797 = vmatpush1.msra.mxu0 0.0
    %2798 = vmatprep.subr.mxu0 0.0
    %2799 = vmatpush1.msra.mxu0 0.0
    %2800 = vmatprep.subr.mxu0 0.0
    %2801 = vmatpush1.msra.mxu0 %v2772
    %2802 = vmatprep.subr.mxu0 0.0
    %2803 = vmatpush1.msra.mxu0 %v2771
    %2804 = vmatprep.subr.mxu0 0.0
    %2805 = vmatpush1.msra.mxu0 %v2770
    %2806 = vmatprep.subr.mxu0 0.0
    %2807 = vmatpush1.msra.mxu0 %v2769
    %2808 = vmatprep.subr.mxu0 0.0
    %2809 = vmatpush2.msra.mxu0 0.0
    %2810 = vmatprep.subr.mxu0 0.0
    %2811 = vmatpush2.msra.mxu0 0.0
    %2812 = vmatprep.subr.mxu0 0.0
    %2813 = vmatpush2.msra.mxu0 0.0
    %2814 = vmatprep.subr.mxu0 0.0
    %2815 = vmatpush2.msra.mxu0 0.0
    %2816 = vmatprep.subr.mxu0 0.0
    %2817 = vmatpush2.msra.mxu0 0.0
    %2818 = vmatprep.subr.mxu0 0.0
    %2819 = vmatpush2.msra.mxu0 0.0
    %2820 = vmatprep.subr.mxu0 0.0
    %2821 = vmatpush2.msra.mxu0 0.0
    %2822 = vmatprep.subr.mxu0 0.0
    %2823 = vmatpush2.msra.mxu0 0.0
    %2824 = vmatprep.subr.mxu0 0.0
    %2825 = vmatpush2.msra.mxu0 0.0
    %2826 = vmatprep.subr.mxu0 0.0
    %2827 = vmatpush2.msra.mxu0 0.0
    %2828 = vmatprep.subr.mxu0 0.0
    %2829 = vmatpush2.msra.mxu0 0.0
    %2830 = vmatprep.subr.mxu0 0.0
    %2831 = vmatpush2.msra.mxu0 0.0
    %2832 = vmatprep.subr.mxu0 0.0
    %2833 = vmatpush2.msra.mxu0 0.0
    %2834 = vmatprep.subr.mxu0 0.0
    %2835 = vmatpush2.msra.mxu0 0.0
    %2836 = vmatprep.subr.mxu0 0.0
    %2837 = vmatpush2.msra.mxu0 0.0
    %2838 = vmatprep.subr.mxu0 0.0
    %2839 = vmatpush2.msra.mxu0 0.0
    %2840 = vmatprep.mubr.f32.mxu0 0.0
    %2841 = vmatmul.mubr.f32.gmra.mxu0 %v2774
    %v2842 = vpop.f32.mrf.mxu0
    %v2843 = vadd.f32 0.0, %v2842
    %v2844 = vpop.f32.mrf.mxu0
    %2845 = vdwg.mxu0
    %v2847 = vsel %vm520, %v2764, 0
    %2849 = vmatprep.subr.mxu0 0.0
    %2850 = vmatpush1.msra.mxu0 0.0
    %2851 = vmatprep.subr.mxu0 0.0
    %2852 = vmatpush1.msra.mxu0 0.0
    %2853 = vmatprep.subr.mxu0 0.0
    %2854 = vmatpush1.msra.mxu0 0.0
    %2855 = vmatprep.subr.mxu0 0.0
    %2856 = vmatpush1.msra.mxu0 0.0
    %2857 = vmatprep.subr.mxu0 0.0
    %2858 = vmatpush1.msra.mxu0 0.0
    %2859 = vmatprep.subr.mxu0 0.0
    %2860 = vmatpush1.msra.mxu0 0.0
    %2861 = vmatprep.subr.mxu0 0.0
    %2862 = vmatpush1.msra.mxu0 0.0
    %2863 = vmatprep.subr.mxu0 0.0
    %2864 = vmatpush1.msra.mxu0 0.0
    %2865 = vmatprep.subr.mxu0 0.0
    %2866 = vmatpush1.msra.mxu0 0.0
    %2867 = vmatprep.subr.mxu0 0.0
    %2868 = vmatpush1.msra.mxu0 0.0
    %2869 = vmatprep.subr.mxu0 0.0
    %2870 = vmatpush1.msra.mxu0 0.0
    %2871 = vmatprep.subr.mxu0 0.0
    %2872 = vmatpush1.msra.mxu0 0.0
    %2873 = vmatprep.subr.mxu0 0.0
    %2874 = vmatpush1.msra.mxu0 %v2768
    %2875 = vmatprep.subr.mxu0 0.0
    %2876 = vmatpush1.msra.mxu0 %v2767
    %2877 = vmatprep.subr.mxu0 0.0
    %2878 = vmatpush1.msra.mxu0 %v2766
    %2879 = vmatprep.subr.mxu0 0.0
    %2880 = vmatpush1.msra.mxu0 %v2765
    %2881 = vmatprep.subr.mxu0 0.0
    %2882 = vmatpush2.msra.mxu0 0.0
    %2883 = vmatprep.subr.mxu0 0.0
    %2884 = vmatpush2.msra.mxu0 0.0
    %2885 = vmatprep.subr.mxu0 0.0
    %2886 = vmatpush2.msra.mxu0 0.0
    %2887 = vmatprep.subr.mxu0 0.0
    %2888 = vmatpush2.msra.mxu0 0.0
    %2889 = vmatprep.subr.mxu0 0.0
    %2890 = vmatpush2.msra.mxu0 0.0
    %2891 = vmatprep.subr.mxu0 0.0
    %2892 = vmatpush2.msra.mxu0 0.0
    %2893 = vmatprep.subr.mxu0 0.0
    %2894 = vmatpush2.msra.mxu0 0.0
    %2895 = vmatprep.subr.mxu0 0.0
    %2896 = vmatpush2.msra.mxu0 0.0
    %2897 = vmatprep.subr.mxu0 0.0
    %2898 = vmatpush2.msra.mxu0 0.0
    %2899 = vmatprep.subr.mxu0 0.0
    %2900 = vmatpush2.msra.mxu0 0.0
    %2901 = vmatprep.subr.mxu0 0.0
    %2902 = vmatpush2.msra.mxu0 0.0
    %2903 = vmatprep.subr.mxu0 0.0
    %2904 = vmatpush2.msra.mxu0 0.0
    %2905 = vmatprep.subr.mxu0 0.0
    %2906 = vmatpush2.msra.mxu0 0.0
    %2907 = vmatprep.subr.mxu0 0.0
    %2908 = vmatpush2.msra.mxu0 0.0
    %2909 = vmatprep.subr.mxu0 0.0
    %2910 = vmatpush2.msra.mxu0 0.0
    %2911 = vmatprep.subr.mxu0 0.0
    %2912 = vmatpush2.msra.mxu0 0.0
    %2913 = vmatprep.mubr.f32.mxu0 0.0
    %2914 = vmatmul.mubr.f32.gmra.mxu0 %v2847
    %v2915 = vpop.f32.mrf.mxu0
    %v2916 = vadd.f32 %v2843, %v2915
    %v2917 = vpop.f32.mrf.mxu0
    %2918 = vdwg.mxu0
    %v2919 = vadd.f32 %v2916, %v491
    %v2920 = vtanh.pop %v2919
    %v2921 = vmax.f32 %v2920, 0.0
    %v2922 = vld [vmem:[#allocation13] sm:$0xff]
    %v2923 = vld [vmem:[#allocation13 + $0x8] sm:$0xff]
    %v2924 = vld [vmem:[#allocation13 + $0x10] sm:$0xff]
    %v2925 = vld [vmem:[#allocation13 + $0x18] sm:$0xff]
    %v2927 = vsel %vm520, %v2921, 0
    %2929 = vmatprep.subr.mxu0 0.0
    %2930 = vmatpush1.msra.mxu0 0.0
    %2931 = vmatprep.subr.mxu0 0.0
    %2932 = vmatpush1.msra.mxu0 0.0
    %2933 = vmatprep.subr.mxu0 0.0
    %2934 = vmatpush1.msra.mxu0 0.0
    %2935 = vmatprep.subr.mxu0 0.0
    %2936 = vmatpush1.msra.mxu0 0.0
    %2937 = vmatprep.subr.mxu0 0.0
    %2938 = vmatpush1.msra.mxu0 0.0
    %2939 = vmatprep.subr.mxu0 0.0
    %2940 = vmatpush1.msra.mxu0 0.0
    %2941 = vmatprep.subr.mxu0 0.0
    %2942 = vmatpush1.msra.mxu0 0.0
    %2943 = vmatprep.subr.mxu0 0.0
    %2944 = vmatpush1.msra.mxu0 0.0
    %2945 = vmatprep.subr.mxu0 0.0
    %2946 = vmatpush1.msra.mxu0 0.0
    %2947 = vmatprep.subr.mxu0 0.0
    %2948 = vmatpush1.msra.mxu0 0.0
    %2949 = vmatprep.subr.mxu0 0.0
    %2950 = vmatpush1.msra.mxu0 0.0
    %2951 = vmatprep.subr.mxu0 0.0
    %2952 = vmatpush1.msra.mxu0 0.0
    %2953 = vmatprep.subr.mxu0 0.0
    %2954 = vmatpush1.msra.mxu0 %v2925
    %2955 = vmatprep.subr.mxu0 0.0
    %2956 = vmatpush1.msra.mxu0 %v2924
    %2957 = vmatprep.subr.mxu0 0.0
    %2958 = vmatpush1.msra.mxu0 %v2923
    %2959 = vmatprep.subr.mxu0 0.0
    %2960 = vmatpush1.msra.mxu0 %v2922
    %2961 = vmatprep.subr.mxu0 0.0
    %2962 = vmatpush2.msra.mxu0 0.0
    %2963 = vmatprep.subr.mxu0 0.0
    %2964 = vmatpush2.msra.mxu0 0.0
    %2965 = vmatprep.subr.mxu0 0.0
    %2966 = vmatpush2.msra.mxu0 0.0
    %2967 = vmatprep.subr.mxu0 0.0
    %2968 = vmatpush2.msra.mxu0 0.0
    %2969 = vmatprep.subr.mxu0 0.0
    %2970 = vmatpush2.msra.mxu0 0.0
    %2971 = vmatprep.subr.mxu0 0.0
    %2972 = vmatpush2.msra.mxu0 0.0
    %2973 = vmatprep.subr.mxu0 0.0
    %2974 = vmatpush2.msra.mxu0 0.0
    %2975 = vmatprep.subr.mxu0 0.0
    %2976 = vmatpush2.msra.mxu0 0.0
    %2977 = vmatprep.subr.mxu0 0.0
    %2978 = vmatpush2.msra.mxu0 0.0
    %2979 = vmatprep.subr.mxu0 0.0
    %2980 = vmatpush2.msra.mxu0 0.0
    %2981 = vmatprep.subr.mxu0 0.0
    %2982 = vmatpush2.msra.mxu0 0.0
    %2983 = vmatprep.subr.mxu0 0.0
    %2984 = vmatpush2.msra.mxu0 0.0
    %2985 = vmatprep.subr.mxu0 0.0
    %2986 = vmatpush2.msra.mxu0 0.0
    %2987 = vmatprep.subr.mxu0 0.0
    %2988 = vmatpush2.msra.mxu0 0.0
    %2989 = vmatprep.subr.mxu0 0.0
    %2990 = vmatpush2.msra.mxu0 0.0
    %2991 = vmatprep.subr.mxu0 0.0
    %2992 = vmatpush2.msra.mxu0 0.0
    %2993 = vmatprep.mubr.f32.mxu0 0.0
    %2994 = vmatmul.mubr.f32.gmra.mxu0 %v2927
    %v2995 = vpop.f32.mrf.mxu0
    %v2996 = vadd.f32 %v498, %v2995
    %v2997 = vpop.f32.mrf.mxu0
    %2998 = vdwg.mxu0
    %v2999 = vmax.f32 %v2996, 0.0
    %v3000 = vld [vmem:[#allocation16] sm:$0xff]
    %v3001 = vld [vmem:[#allocation16 + $0x8] sm:$0xff]
    %v3002 = vld [vmem:[#allocation16 + $0x10] sm:$0xff]
    %v3003 = vld [vmem:[#allocation16 + $0x18] sm:$0xff]
    %v3005 = vsel %vm520, %v2999, 0
    %3007 = vmatprep.subr.mxu0 0.0
    %3008 = vmatpush1.msra.mxu0 0.0
    %3009 = vmatprep.subr.mxu0 0.0
    %3010 = vmatpush1.msra.mxu0 0.0
    %3011 = vmatprep.subr.mxu0 0.0
    %3012 = vmatpush1.msra.mxu0 0.0
    %3013 = vmatprep.subr.mxu0 0.0
    %3014 = vmatpush1.msra.mxu0 0.0
    %3015 = vmatprep.subr.mxu0 0.0
    %3016 = vmatpush1.msra.mxu0 0.0
    %3017 = vmatprep.subr.mxu0 0.0
    %3018 = vmatpush1.msra.mxu0 0.0
    %3019 = vmatprep.subr.mxu0 0.0
    %3020 = vmatpush1.msra.mxu0 0.0
    %3021 = vmatprep.subr.mxu0 0.0
    %3022 = vmatpush1.msra.mxu0 0.0
    %3023 = vmatprep.subr.mxu0 0.0
    %3024 = vmatpush1.msra.mxu0 0.0
    %3025 = vmatprep.subr.mxu0 0.0
    %3026 = vmatpush1.msra.mxu0 0.0
    %3027 = vmatprep.subr.mxu0 0.0
    %3028 = vmatpush1.msra.mxu0 0.0
    %3029 = vmatprep.subr.mxu0 0.0
    %3030 = vmatpush1.msra.mxu0 0.0
    %3031 = vmatprep.subr.mxu0 0.0
    %3032 = vmatpush1.msra.mxu0 %v3003
    %3033 = vmatprep.subr.mxu0 0.0
    %3034 = vmatpush1.msra.mxu0 %v3002
    %3035 = vmatprep.subr.mxu0 0.0
    %3036 = vmatpush1.msra.mxu0 %v3001
    %3037 = vmatprep.subr.mxu0 0.0
    %3038 = vmatpush1.msra.mxu0 %v3000
    %3039 = vmatprep.subr.mxu0 0.0
    %3040 = vmatpush2.msra.mxu0 0.0
    %3041 = vmatprep.subr.mxu0 0.0
    %3042 = vmatpush2.msra.mxu0 0.0
    %3043 = vmatprep.subr.mxu0 0.0
    %3044 = vmatpush2.msra.mxu0 0.0
    %3045 = vmatprep.subr.mxu0 0.0
    %3046 = vmatpush2.msra.mxu0 0.0
    %3047 = vmatprep.subr.mxu0 0.0
    %3048 = vmatpush2.msra.mxu0 0.0
    %3049 = vmatprep.subr.mxu0 0.0
    %3050 = vmatpush2.msra.mxu0 0.0
    %3051 = vmatprep.subr.mxu0 0.0
    %3052 = vmatpush2.msra.mxu0 0.0
    %3053 = vmatprep.subr.mxu0 0.0
    %3054 = vmatpush2.msra.mxu0 0.0
    %3055 = vmatprep.subr.mxu0 0.0
    %3056 = vmatpush2.msra.mxu0 0.0
    %3057 = vmatprep.subr.mxu0 0.0
    %3058 = vmatpush2.msra.mxu0 0.0
    %3059 = vmatprep.subr.mxu0 0.0
    %3060 = vmatpush2.msra.mxu0 0.0
    %3061 = vmatprep.subr.mxu0 0.0
    %3062 = vmatpush2.msra.mxu0 0.0
    %3063 = vmatprep.subr.mxu0 0.0
    %3064 = vmatpush2.msra.mxu0 0.0
    %3065 = vmatprep.subr.mxu0 0.0
    %3066 = vmatpush2.msra.mxu0 0.0
    %3067 = vmatprep.subr.mxu0 0.0
    %3068 = vmatpush2.msra.mxu0 0.0
    %3069 = vmatprep.subr.mxu0 0.0
    %3070 = vmatpush2.msra.mxu0 0.0
    %3071 = vmatprep.mubr.f32.mxu0 0.0
    %3072 = vmatmul.mubr.f32.gmra.mxu0 %v3005
    %v3073 = vpop.f32.mrf.mxu0
    %v3074 = vadd.f32 %v505, %v3073
    %v3075 = vpop.f32.mrf.mxu0
    %3076 = vdwg.mxu0
    %v3077 = vmax.f32 %v3074, 0.0
    %v3078 = vld [vmem:[%s20] sm:$0xff]
    %v3079 = vld [vmem:[%s20 + $0x8] sm:$0xff]
    %v3080 = vld [vmem:[%s20 + $0x10] sm:$0xff]
    %v3081 = vld [vmem:[%s20 + $0x18] sm:$0xff]
    %v3083 = vsel %vm520, %v3077, 0
    %3085 = vmatprep.subr.mxu0 0.0
    %3086 = vmatpush1.msra.mxu0 0.0
    %3087 = vmatprep.subr.mxu0 0.0
    %3088 = vmatpush1.msra.mxu0 0.0
    %3089 = vmatprep.subr.mxu0 0.0
    %3090 = vmatpush1.msra.mxu0 0.0
    %3091 = vmatprep.subr.mxu0 0.0
    %3092 = vmatpush1.msra.mxu0 0.0
    %3093 = vmatprep.subr.mxu0 0.0
    %3094 = vmatpush1.msra.mxu0 0.0
    %3095 = vmatprep.subr.mxu0 0.0
    %3096 = vmatpush1.msra.mxu0 0.0
    %3097 = vmatprep.subr.mxu0 0.0
    %3098 = vmatpush1.msra.mxu0 0.0
    %3099 = vmatprep.subr.mxu0 0.0
    %3100 = vmatpush1.msra.mxu0 0.0
    %3101 = vmatprep.subr.mxu0 0.0
    %3102 = vmatpush1.msra.mxu0 0.0
    %3103 = vmatprep.subr.mxu0 0.0
    %3104 = vmatpush1.msra.mxu0 0.0
    %3105 = vmatprep.subr.mxu0 0.0
    %3106 = vmatpush1.msra.mxu0 0.0
    %3107 = vmatprep.subr.mxu0 0.0
    %3108 = vmatpush1.msra.mxu0 0.0
    %3109 = vmatprep.subr.mxu0 0.0
    %3110 = vmatpush1.msra.mxu0 %v3081
    %3111 = vmatprep.subr.mxu0 0.0
    %3112 = vmatpush1.msra.mxu0 %v3080
    %3113 = vmatprep.subr.mxu0 0.0
    %3114 = vmatpush1.msra.mxu0 %v3079
    %3115 = vmatprep.subr.mxu0 0.0
    %3116 = vmatpush1.msra.mxu0 %v3078
    %3117 = vmatprep.subr.mxu0 0.0
    %3118 = vmatpush2.msra.mxu0 0.0
    %3119 = vmatprep.subr.mxu0 0.0
    %3120 = vmatpush2.msra.mxu0 0.0
    %3121 = vmatprep.subr.mxu0 0.0
    %3122 = vmatpush2.msra.mxu0 0.0
    %3123 = vmatprep.subr.mxu0 0.0
    %3124 = vmatpush2.msra.mxu0 0.0
    %3125 = vmatprep.subr.mxu0 0.0
    %3126 = vmatpush2.msra.mxu0 0.0
    %3127 = vmatprep.subr.mxu0 0.0
    %3128 = vmatpush2.msra.mxu0 0.0
    %3129 = vmatprep.subr.mxu0 0.0
    %3130 = vmatpush2.msra.mxu0 0.0
    %3131 = vmatprep.subr.mxu0 0.0
    %3132 = vmatpush2.msra.mxu0 0.0
    %3133 = vmatprep.subr.mxu0 0.0
    %3134 = vmatpush2.msra.mxu0 0.0
    %3135 = vmatprep.subr.mxu0 0.0
    %3136 = vmatpush2.msra.mxu0 0.0
    %3137 = vmatprep.subr.mxu0 0.0
    %3138 = vmatpush2.msra.mxu0 0.0
    %3139 = vmatprep.subr.mxu0 0.0
    %3140 = vmatpush2.msra.mxu0 0.0
    %3141 = vmatprep.subr.mxu0 0.0
    %3142 = vmatpush2.msra.mxu0 0.0
    %3143 = vmatprep.subr.mxu0 0.0
    %3144 = vmatpush2.msra.mxu0 0.0
    %3145 = vmatprep.subr.mxu0 0.0
    %3146 = vmatpush2.msra.mxu0 0.0
    %3147 = vmatprep.subr.mxu0 0.0
    %3148 = vmatpush2.msra.mxu0 0.0
    %3149 = vmatprep.mubr.f32.mxu0 0.0
    %3150 = vmatmul.mubr.f32.gmra.mxu0 %v3083
    %v3151 = vpop.f32.mrf.mxu0
    %v3152 = vadd.f32 %v512, %v3151
    %v3153 = vpop.f32.mrf.mxu0
    %3154 = vdwg.mxu0
    %v3155 = vrot.slane %v2459, 4
    %v3157 = vmul.f32 %v3152, %v3155
    %v3160 = vunpack.c.l.s4 1966171168
    %v3161 = vunpack.c.0.s8 %v3160
    %v3162 = vlaneseq
    %v3163 = vshrl.u32 %v3162, 7
    %v3164 = vsub.s32 %v3161, %v3163
    %v3165 = vrot.slane %v3157, %v3164
    %v3166 = vcombine.high %v3165, %v3165
    %v3168 = vunpack.c.l.s4 1966171168
    %v3169 = vunpack.c.0.s8 %v3168
    %v3170 = vlaneseq
    %v3171 = vshrl.u32 %v3170, 7
    %v3172 = vsub.s32 %v3169, %v3171
    %v3173 = vrot.slane %v3165, %v3172
    %v3175 = vunpack.c.l.s4 1966171168
    %v3176 = vunpack.c.0.s8 %v3175
    %v3177 = vlaneseq
    %v3178 = vshrl.u32 %v3177, 7
    %v3179 = vsub.s32 %v3176, %v3178
    %v3180 = vrot.slane %v3166, %v3179
    %v3181 = vcombine.high %v3173, %v3173
    %v3182 = vcombine.high %v3180, %v3180
    %3187 = vst.msk [vmem:[%s22 + $0x3] sm:$0x1] %vm1098, %v3173
    %3188 = vst.msk [vmem:[%s22 + $0xb] sm:$0x1] %vm1098, %v3180
    %3189 = vst.msk [vmem:[%s22 + $0x13] sm:$0x1] %vm1098, %v3181
    %3190 = vst.msk [vmem:[%s22 + $0x1b] sm:$0x1] %vm1098, %v3182
    %v3191 = vmul.f32 %v2761, %v3155
    %v3194 = vunpack.c.l.s4 1966171168
    %v3195 = vunpack.c.0.s8 %v3194
    %v3196 = vlaneseq
    %v3197 = vshrl.u32 %v3196, 7
    %v3198 = vsub.s32 %v3195, %v3197
    %v3199 = vrot.slane %v3191, %v3198
    %v3200 = vcombine.high %v3199, %v3199
    %v3202 = vunpack.c.l.s4 1966171168
    %v3203 = vunpack.c.0.s8 %v3202
    %v3204 = vlaneseq
    %v3205 = vshrl.u32 %v3204, 7
    %v3206 = vsub.s32 %v3203, %v3205
    %v3207 = vrot.slane %v3199, %v3206
    %v3209 = vunpack.c.l.s4 1966171168
    %v3210 = vunpack.c.0.s8 %v3209
    %v3211 = vlaneseq
    %v3212 = vshrl.u32 %v3211, 7
    %v3213 = vsub.s32 %v3210, %v3212
    %v3214 = vrot.slane %v3200, %v3213
    %v3215 = vcombine.high %v3207, %v3207
    %v3216 = vcombine.high %v3214, %v3214
    %3221 = vst.msk [vmem:[%s23 + $0x3] sm:$0x1] %vm1133, %v3207
    %3222 = vst.msk [vmem:[%s23 + $0xb] sm:$0x1] %vm1133, %v3214
    %3223 = vst.msk [vmem:[%s23 + $0x13] sm:$0x1] %vm1133, %v3215
    %3224 = vst.msk [vmem:[%s23 + $0x1b] sm:$0x1] %vm1133, %v3216
    %v3225 = vld [vmem:[%s8] sm:$0xff]
    %v3227 = vsel %vm229, %v3152, 0
    %3229 = vmatprep.subr.mxu0 0.0
    %3230 = vmatpush1.msra.mxu0 0.0
    %3231 = vmatprep.subr.mxu0 0.0
    %3232 = vmatpush1.msra.mxu0 0.0
    %3233 = vmatprep.subr.mxu0 0.0
    %3234 = vmatpush1.msra.mxu0 0.0
    %3235 = vmatprep.subr.mxu0 0.0
    %3236 = vmatpush1.msra.mxu0 0.0
    %3237 = vmatprep.subr.mxu0 0.0
    %3238 = vmatpush1.msra.mxu0 0.0
    %3239 = vmatprep.subr.mxu0 0.0
    %3240 = vmatpush1.msra.mxu0 0.0
    %3241 = vmatprep.subr.mxu0 0.0
    %3242 = vmatpush1.msra.mxu0 0.0
    %3243 = vmatprep.subr.mxu0 0.0
    %3244 = vmatpush1.msra.mxu0 0.0
    %3245 = vmatprep.subr.mxu0 0.0
    %3246 = vmatpush1.msra.mxu0 0.0
    %3247 = vmatprep.subr.mxu0 0.0
    %3248 = vmatpush1.msra.mxu0 0.0
    %3249 = vmatprep.subr.mxu0 0.0
    %3250 = vmatpush1.msra.mxu0 0.0
    %3251 = vmatprep.subr.mxu0 0.0
    %3252 = vmatpush1.msra.mxu0 0.0
    %3253 = vmatprep.subr.mxu0 0.0
    %3254 = vmatpush1.msra.mxu0 0.0
    %3255 = vmatprep.subr.mxu0 0.0
    %3256 = vmatpush1.msra.mxu0 0.0
    %3257 = vmatprep.subr.mxu0 0.0
    %3258 = vmatpush1.msra.mxu0 0.0
    %3259 = vmatprep.subr.mxu0 0.0
    %3260 = vmatpush1.msra.mxu0 %v3225
    %3261 = vmatprep.subr.mxu0 0.0
    %3262 = vmatpush2.msra.mxu0 0.0
    %3263 = vmatprep.subr.mxu0 0.0
    %3264 = vmatpush2.msra.mxu0 0.0
    %3265 = vmatprep.subr.mxu0 0.0
    %3266 = vmatpush2.msra.mxu0 0.0
    %3267 = vmatprep.subr.mxu0 0.0
    %3268 = vmatpush2.msra.mxu0 0.0
    %3269 = vmatprep.subr.mxu0 0.0
    %3270 = vmatpush2.msra.mxu0 0.0
    %3271 = vmatprep.subr.mxu0 0.0
    %3272 = vmatpush2.msra.mxu0 0.0
    %3273 = vmatprep.subr.mxu0 0.0
    %3274 = vmatpush2.msra.mxu0 0.0
    %3275 = vmatprep.subr.mxu0 0.0
    %3276 = vmatpush2.msra.mxu0 0.0
    %3277 = vmatprep.subr.mxu0 0.0
    %3278 = vmatpush2.msra.mxu0 0.0
    %3279 = vmatprep.subr.mxu0 0.0
    %3280 = vmatpush2.msra.mxu0 0.0
    %3281 = vmatprep.subr.mxu0 0.0
    %3282 = vmatpush2.msra.mxu0 0.0
    %3283 = vmatprep.subr.mxu0 0.0
    %3284 = vmatpush2.msra.mxu0 0.0
    %3285 = vmatprep.subr.mxu0 0.0
    %3286 = vmatpush2.msra.mxu0 0.0
    %3287 = vmatprep.subr.mxu0 0.0
    %3288 = vmatpush2.msra.mxu0 0.0
    %3289 = vmatprep.subr.mxu0 0.0
    %3290 = vmatpush2.msra.mxu0 0.0
    %3291 = vmatprep.subr.mxu0 0.0
    %3292 = vmatpush2.msra.mxu0 0.0
    %3293 = vmatprep.mubr.f32.mxu0 0.0
    %3294 = vmatmul.mubr.f32.gmra.mxu0 %v3227
    %v3295 = vpop.f32.mrf.mxu0
    %v3296 = vadd.f32 0.0, %v3295
    %v3297 = vpop.f32.mrf.mxu0
    %3298 = vdwg.mxu0
    %v3299 = vadd.f32 %v316, %v3296
    %v3300 = vmax.f32 %v3299, 0.0
    %v3301 = vld [vmem:[%s9] sm:$0xff]
    %v3302 = vld [vmem:[%s9 + $0x8] sm:$0xff]
    %v3303 = vld [vmem:[%s9 + $0x10] sm:$0xff]
    %v3304 = vld [vmem:[%s9 + $0x18] sm:$0xff]
    %v3306 = vsel %vm520, %v3300, 0
    %3308 = vmatprep.subr.mxu0 0.0
    %3309 = vmatpush1.msra.mxu0 0.0
    %3310 = vmatprep.subr.mxu0 0.0
    %3311 = vmatpush1.msra.mxu0 0.0
    %3312 = vmatprep.subr.mxu0 0.0
    %3313 = vmatpush1.msra.mxu0 0.0
    %3314 = vmatprep.subr.mxu0 0.0
    %3315 = vmatpush1.msra.mxu0 0.0
    %3316 = vmatprep.subr.mxu0 0.0
    %3317 = vmatpush1.msra.mxu0 0.0
    %3318 = vmatprep.subr.mxu0 0.0
    %3319 = vmatpush1.msra.mxu0 0.0
    %3320 = vmatprep.subr.mxu0 0.0
    %3321 = vmatpush1.msra.mxu0 0.0
    %3322 = vmatprep.subr.mxu0 0.0
    %3323 = vmatpush1.msra.mxu0 0.0
    %3324 = vmatprep.subr.mxu0 0.0
    %3325 = vmatpush1.msra.mxu0 0.0
    %3326 = vmatprep.subr.mxu0 0.0
    %3327 = vmatpush1.msra.mxu0 0.0
    %3328 = vmatprep.subr.mxu0 0.0
    %3329 = vmatpush1.msra.mxu0 0.0
    %3330 = vmatprep.subr.mxu0 0.0
    %3331 = vmatpush1.msra.mxu0 0.0
    %3332 = vmatprep.subr.mxu0 0.0
    %3333 = vmatpush1.msra.mxu0 %v3304
    %3334 = vmatprep.subr.mxu0 0.0
    %3335 = vmatpush1.msra.mxu0 %v3303
    %3336 = vmatprep.subr.mxu0 0.0
    %3337 = vmatpush1.msra.mxu0 %v3302
    %3338 = vmatprep.subr.mxu0 0.0
    %3339 = vmatpush1.msra.mxu0 %v3301
    %3340 = vmatprep.subr.mxu0 0.0
    %3341 = vmatpush2.msra.mxu0 0.0
    %3342 = vmatprep.subr.mxu0 0.0
    %3343 = vmatpush2.msra.mxu0 0.0
    %3344 = vmatprep.subr.mxu0 0.0
    %3345 = vmatpush2.msra.mxu0 0.0
    %3346 = vmatprep.subr.mxu0 0.0
    %3347 = vmatpush2.msra.mxu0 0.0
    %3348 = vmatprep.subr.mxu0 0.0
    %3349 = vmatpush2.msra.mxu0 0.0
    %3350 = vmatprep.subr.mxu0 0.0
    %3351 = vmatpush2.msra.mxu0 0.0
    %3352 = vmatprep.subr.mxu0 0.0
    %3353 = vmatpush2.msra.mxu0 0.0
    %3354 = vmatprep.subr.mxu0 0.0
    %3355 = vmatpush2.msra.mxu0 0.0
    %3356 = vmatprep.subr.mxu0 0.0
    %3357 = vmatpush2.msra.mxu0 0.0
    %3358 = vmatprep.subr.mxu0 0.0
    %3359 = vmatpush2.msra.mxu0 0.0
    %3360 = vmatprep.subr.mxu0 0.0
    %3361 = vmatpush2.msra.mxu0 0.0
    %3362 = vmatprep.subr.mxu0 0.0
    %3363 = vmatpush2.msra.mxu0 0.0
    %3364 = vmatprep.subr.mxu0 0.0
    %3365 = vmatpush2.msra.mxu0 0.0
    %3366 = vmatprep.subr.mxu0 0.0
    %3367 = vmatpush2.msra.mxu0 0.0
    %3368 = vmatprep.subr.mxu0 0.0
    %3369 = vmatpush2.msra.mxu0 0.0
    %3370 = vmatprep.subr.mxu0 0.0
    %3371 = vmatpush2.msra.mxu0 0.0
    %3372 = vmatprep.mubr.f32.mxu0 0.0
    %3373 = vmatmul.mubr.f32.gmra.mxu0 %v3306
    %v3374 = vpop.f32.mrf.mxu0
    %v3375 = vadd.f32 %v477, %v3374
    %v3376 = vpop.f32.mrf.mxu0
    %3377 = vdwg.mxu0
    %v3378 = vmax.f32 %v3375, 0.0
    %v3379 = vld [vmem:[%s11] sm:$0xff]
    %v3380 = vld [vmem:[%s11 + $0x8] sm:$0xff]
    %v3381 = vld [vmem:[%s11 + $0x10] sm:$0xff]
    %v3382 = vld [vmem:[%s11 + $0x18] sm:$0xff]
    %v3384 = vsel %vm520, %v3378, 0
    %3386 = vmatprep.subr.mxu0 0.0
    %3387 = vmatpush1.msra.mxu0 0.0
    %3388 = vmatprep.subr.mxu0 0.0
    %3389 = vmatpush1.msra.mxu0 0.0
    %3390 = vmatprep.subr.mxu0 0.0
    %3391 = vmatpush1.msra.mxu0 0.0
    %3392 = vmatprep.subr.mxu0 0.0
    %3393 = vmatpush1.msra.mxu0 0.0
    %3394 = vmatprep.subr.mxu0 0.0
    %3395 = vmatpush1.msra.mxu0 0.0
    %3396 = vmatprep.subr.mxu0 0.0
    %3397 = vmatpush1.msra.mxu0 0.0
    %3398 = vmatprep.subr.mxu0 0.0
    %3399 = vmatpush1.msra.mxu0 0.0
    %3400 = vmatprep.subr.mxu0 0.0
    %3401 = vmatpush1.msra.mxu0 0.0
    %3402 = vmatprep.subr.mxu0 0.0
    %3403 = vmatpush1.msra.mxu0 0.0
    %3404 = vmatprep.subr.mxu0 0.0
    %3405 = vmatpush1.msra.mxu0 0.0
    %3406 = vmatprep.subr.mxu0 0.0
    %3407 = vmatpush1.msra.mxu0 0.0
    %3408 = vmatprep.subr.mxu0 0.0
    %3409 = vmatpush1.msra.mxu0 0.0
    %3410 = vmatprep.subr.mxu0 0.0
    %3411 = vmatpush1.msra.mxu0 %v3382
    %3412 = vmatprep.subr.mxu0 0.0
    %3413 = vmatpush1.msra.mxu0 %v3381
    %3414 = vmatprep.subr.mxu0 0.0
    %3415 = vmatpush1.msra.mxu0 %v3380
    %3416 = vmatprep.subr.mxu0 0.0
    %3417 = vmatpush1.msra.mxu0 %v3379
    %3418 = vmatprep.subr.mxu0 0.0
    %3419 = vmatpush2.msra.mxu0 0.0
    %3420 = vmatprep.subr.mxu0 0.0
    %3421 = vmatpush2.msra.mxu0 0.0
    %3422 = vmatprep.subr.mxu0 0.0
    %3423 = vmatpush2.msra.mxu0 0.0
    %3424 = vmatprep.subr.mxu0 0.0
    %3425 = vmatpush2.msra.mxu0 0.0
    %3426 = vmatprep.subr.mxu0 0.0
    %3427 = vmatpush2.msra.mxu0 0.0
    %3428 = vmatprep.subr.mxu0 0.0
    %3429 = vmatpush2.msra.mxu0 0.0
    %3430 = vmatprep.subr.mxu0 0.0
    %3431 = vmatpush2.msra.mxu0 0.0
    %3432 = vmatprep.subr.mxu0 0.0
    %3433 = vmatpush2.msra.mxu0 0.0
    %3434 = vmatprep.subr.mxu0 0.0
    %3435 = vmatpush2.msra.mxu0 0.0
    %3436 = vmatprep.subr.mxu0 0.0
    %3437 = vmatpush2.msra.mxu0 0.0
    %3438 = vmatprep.subr.mxu0 0.0
    %3439 = vmatpush2.msra.mxu0 0.0
    %3440 = vmatprep.subr.mxu0 0.0
    %3441 = vmatpush2.msra.mxu0 0.0
    %3442 = vmatprep.subr.mxu0 0.0
    %3443 = vmatpush2.msra.mxu0 0.0
    %3444 = vmatprep.subr.mxu0 0.0
    %3445 = vmatpush2.msra.mxu0 0.0
    %3446 = vmatprep.subr.mxu0 0.0
    %3447 = vmatpush2.msra.mxu0 0.0
    %3448 = vmatprep.subr.mxu0 0.0
    %3449 = vmatpush2.msra.mxu0 0.0
    %3450 = vmatprep.mubr.f32.mxu0 0.0
    %3451 = vmatmul.mubr.f32.gmra.mxu0 %v3384
    %v3452 = vpop.f32.mrf.mxu0
    %v3453 = vadd.f32 %v484, %v3452
    %v3454 = vpop.f32.mrf.mxu0
    %3455 = vdwg.mxu0
    %v3456 = vmax.f32 %v3453, 0.0
    %v3457 = vld [vmem:[%s13] sm:$0xff]
    %v3458 = vld [vmem:[%s13 + $0x8] sm:$0xff]
    %v3459 = vld [vmem:[%s13 + $0x10] sm:$0xff]
    %v3460 = vld [vmem:[%s13 + $0x18] sm:$0xff]
    %v3461 = vld [vmem:[%s14] sm:$0xff]
    %v3462 = vld [vmem:[%s14 + $0x8] sm:$0xff]
    %v3463 = vld [vmem:[%s14 + $0x10] sm:$0xff]
    %v3464 = vld [vmem:[%s14 + $0x18] sm:$0xff]
    %v3466 = vsel %vm520, %v2920, 0
    %3468 = vmatprep.subr.mxu0 0.0
    %3469 = vmatpush1.msra.mxu0 0.0
    %3470 = vmatprep.subr.mxu0 0.0
    %3471 = vmatpush1.msra.mxu0 0.0
    %3472 = vmatprep.subr.mxu0 0.0
    %3473 = vmatpush1.msra.mxu0 0.0
    %3474 = vmatprep.subr.mxu0 0.0
    %3475 = vmatpush1.msra.mxu0 0.0
    %3476 = vmatprep.subr.mxu0 0.0
    %3477 = vmatpush1.msra.mxu0 0.0
    %3478 = vmatprep.subr.mxu0 0.0
    %3479 = vmatpush1.msra.mxu0 0.0
    %3480 = vmatprep.subr.mxu0 0.0
    %3481 = vmatpush1.msra.mxu0 0.0
    %3482 = vmatprep.subr.mxu0 0.0
    %3483 = vmatpush1.msra.mxu0 0.0
    %3484 = vmatprep.subr.mxu0 0.0
    %3485 = vmatpush1.msra.mxu0 0.0
    %3486 = vmatprep.subr.mxu0 0.0
    %3487 = vmatpush1.msra.mxu0 0.0
    %3488 = vmatprep.subr.mxu0 0.0
    %3489 = vmatpush1.msra.mxu0 0.0
    %3490 = vmatprep.subr.mxu0 0.0
    %3491 = vmatpush1.msra.mxu0 0.0
    %3492 = vmatprep.subr.mxu0 0.0
    %3493 = vmatpush1.msra.mxu0 %v3464
    %3494 = vmatprep.subr.mxu0 0.0
    %3495 = vmatpush1.msra.mxu0 %v3463
    %3496 = vmatprep.subr.mxu0 0.0
    %3497 = vmatpush1.msra.mxu0 %v3462
    %3498 = vmatprep.subr.mxu0 0.0
    %3499 = vmatpush1.msra.mxu0 %v3461
    %3500 = vmatprep.subr.mxu0 0.0
    %3501 = vmatpush2.msra.mxu0 0.0
    %3502 = vmatprep.subr.mxu0 0.0
    %3503 = vmatpush2.msra.mxu0 0.0
    %3504 = vmatprep.subr.mxu0 0.0
    %3505 = vmatpush2.msra.mxu0 0.0
    %3506 = vmatprep.subr.mxu0 0.0
    %3507 = vmatpush2.msra.mxu0 0.0
    %3508 = vmatprep.subr.mxu0 0.0
    %3509 = vmatpush2.msra.mxu0 0.0
    %3510 = vmatprep.subr.mxu0 0.0
    %3511 = vmatpush2.msra.mxu0 0.0
    %3512 = vmatprep.subr.mxu0 0.0
    %3513 = vmatpush2.msra.mxu0 0.0
    %3514 = vmatprep.subr.mxu0 0.0
    %3515 = vmatpush2.msra.mxu0 0.0
    %3516 = vmatprep.subr.mxu0 0.0
    %3517 = vmatpush2.msra.mxu0 0.0
    %3518 = vmatprep.subr.mxu0 0.0
    %3519 = vmatpush2.msra.mxu0 0.0
    %3520 = vmatprep.subr.mxu0 0.0
    %3521 = vmatpush2.msra.mxu0 0.0
    %3522 = vmatprep.subr.mxu0 0.0
    %3523 = vmatpush2.msra.mxu0 0.0
    %3524 = vmatprep.subr.mxu0 0.0
    %3525 = vmatpush2.msra.mxu0 0.0
    %3526 = vmatprep.subr.mxu0 0.0
    %3527 = vmatpush2.msra.mxu0 0.0
    %3528 = vmatprep.subr.mxu0 0.0
    %3529 = vmatpush2.msra.mxu0 0.0
    %3530 = vmatprep.subr.mxu0 0.0
    %3531 = vmatpush2.msra.mxu0 0.0
    %3532 = vmatprep.mubr.f32.mxu0 0.0
    %3533 = vmatmul.mubr.f32.gmra.mxu0 %v3466
    %v3534 = vpop.f32.mrf.mxu0
    %v3535 = vadd.f32 0.0, %v3534
    %v3536 = vpop.f32.mrf.mxu0
    %3537 = vdwg.mxu0
    %v3539 = vsel %vm520, %v3456, 0
    %3541 = vmatprep.subr.mxu0 0.0
    %3542 = vmatpush1.msra.mxu0 0.0
    %3543 = vmatprep.subr.mxu0 0.0
    %3544 = vmatpush1.msra.mxu0 0.0
    %3545 = vmatprep.subr.mxu0 0.0
    %3546 = vmatpush1.msra.mxu0 0.0
    %3547 = vmatprep.subr.mxu0 0.0
    %3548 = vmatpush1.msra.mxu0 0.0
    %3549 = vmatprep.subr.mxu0 0.0
    %3550 = vmatpush1.msra.mxu0 0.0
    %3551 = vmatprep.subr.mxu0 0.0
    %3552 = vmatpush1.msra.mxu0 0.0
    %3553 = vmatprep.subr.mxu0 0.0
    %3554 = vmatpush1.msra.mxu0 0.0
    %3555 = vmatprep.subr.mxu0 0.0
    %3556 = vmatpush1.msra.mxu0 0.0
    %3557 = vmatprep.subr.mxu0 0.0
    %3558 = vmatpush1.msra.mxu0 0.0
    %3559 = vmatprep.subr.mxu0 0.0
    %3560 = vmatpush1.msra.mxu0 0.0
    %3561 = vmatprep.subr.mxu0 0.0
    %3562 = vmatpush1.msra.mxu0 0.0
    %3563 = vmatprep.subr.mxu0 0.0
    %3564 = vmatpush1.msra.mxu0 0.0
    %3565 = vmatprep.subr.mxu0 0.0
    %3566 = vmatpush1.msra.mxu0 %v3460
    %3567 = vmatprep.subr.mxu0 0.0
    %3568 = vmatpush1.msra.mxu0 %v3459
    %3569 = vmatprep.subr.mxu0 0.0
    %3570 = vmatpush1.msra.mxu0 %v3458
    %3571 = vmatprep.subr.mxu0 0.0
    %3572 = vmatpush1.msra.mxu0 %v3457
    %3573 = vmatprep.subr.mxu0 0.0
    %3574 = vmatpush2.msra.mxu0 0.0
    %3575 = vmatprep.subr.mxu0 0.0
    %3576 = vmatpush2.msra.mxu0 0.0
    %3577 = vmatprep.subr.mxu0 0.0
    %3578 = vmatpush2.msra.mxu0 0.0
    %3579 = vmatprep.subr.mxu0 0.0
    %3580 = vmatpush2.msra.mxu0 0.0
    %3581 = vmatprep.subr.mxu0 0.0
    %3582 = vmatpush2.msra.mxu0 0.0
    %3583 = vmatprep.subr.mxu0 0.0
    %3584 = vmatpush2.msra.mxu0 0.0
    %3585 = vmatprep.subr.mxu0 0.0
    %3586 = vmatpush2.msra.mxu0 0.0
    %3587 = vmatprep.subr.mxu0 0.0
    %3588 = vmatpush2.msra.mxu0 0.0
    %3589 = vmatprep.subr.mxu0 0.0
    %3590 = vmatpush2.msra.mxu0 0.0
    %3591 = vmatprep.subr.mxu0 0.0
    %3592 = vmatpush2.msra.mxu0 0.0
    %3593 = vmatprep.subr.mxu0 0.0
    %3594 = vmatpush2.msra.mxu0 0.0
    %3595 = vmatprep.subr.mxu0 0.0
    %3596 = vmatpush2.msra.mxu0 0.0
    %3597 = vmatprep.subr.mxu0 0.0
    %3598 = vmatpush2.msra.mxu0 0.0
    %3599 = vmatprep.subr.mxu0 0.0
    %3600 = vmatpush2.msra.mxu0 0.0
    %3601 = vmatprep.subr.mxu0 0.0
    %3602 = vmatpush2.msra.mxu0 0.0
    %3603 = vmatprep.subr.mxu0 0.0
    %3604 = vmatpush2.msra.mxu0 0.0
    %3605 = vmatprep.mubr.f32.mxu0 0.0
    %3606 = vmatmul.mubr.f32.gmra.mxu0 %v3539
    %v3607 = vpop.f32.mrf.mxu0
    %v3608 = vadd.f32 %v3535, %v3607
    %v3609 = vpop.f32.mrf.mxu0
    %3610 = vdwg.mxu0
    %v3611 = vadd.f32 %v3608, %v491
    %v3612 = vtanh.pop %v3611
    %v3613 = vmax.f32 %v3612, 0.0
    %v3614 = vld [vmem:[#allocation13] sm:$0xff]
    %v3615 = vld [vmem:[#allocation13 + $0x8] sm:$0xff]
    %v3616 = vld [vmem:[#allocation13 + $0x10] sm:$0xff]
    %v3617 = vld [vmem:[#allocation13 + $0x18] sm:$0xff]
    %v3619 = vsel %vm520, %v3613, 0
    %3621 = vmatprep.subr.mxu0 0.0
    %3622 = vmatpush1.msra.mxu0 0.0
    %3623 = vmatprep.subr.mxu0 0.0
    %3624 = vmatpush1.msra.mxu0 0.0
    %3625 = vmatprep.subr.mxu0 0.0
    %3626 = vmatpush1.msra.mxu0 0.0
    %3627 = vmatprep.subr.mxu0 0.0
    %3628 = vmatpush1.msra.mxu0 0.0
    %3629 = vmatprep.subr.mxu0 0.0
    %3630 = vmatpush1.msra.mxu0 0.0
    %3631 = vmatprep.subr.mxu0 0.0
    %3632 = vmatpush1.msra.mxu0 0.0
    %3633 = vmatprep.subr.mxu0 0.0
    %3634 = vmatpush1.msra.mxu0 0.0
    %3635 = vmatprep.subr.mxu0 0.0
    %3636 = vmatpush1.msra.mxu0 0.0
    %3637 = vmatprep.subr.mxu0 0.0
    %3638 = vmatpush1.msra.mxu0 0.0
    %3639 = vmatprep.subr.mxu0 0.0
    %3640 = vmatpush1.msra.mxu0 0.0
    %3641 = vmatprep.subr.mxu0 0.0
    %3642 = vmatpush1.msra.mxu0 0.0
    %3643 = vmatprep.subr.mxu0 0.0
    %3644 = vmatpush1.msra.mxu0 0.0
    %3645 = vmatprep.subr.mxu0 0.0
    %3646 = vmatpush1.msra.mxu0 %v3617
    %3647 = vmatprep.subr.mxu0 0.0
    %3648 = vmatpush1.msra.mxu0 %v3616
    %3649 = vmatprep.subr.mxu0 0.0
    %3650 = vmatpush1.msra.mxu0 %v3615
    %3651 = vmatprep.subr.mxu0 0.0
    %3652 = vmatpush1.msra.mxu0 %v3614
    %3653 = vmatprep.subr.mxu0 0.0
    %3654 = vmatpush2.msra.mxu0 0.0
    %3655 = vmatprep.subr.mxu0 0.0
    %3656 = vmatpush2.msra.mxu0 0.0
    %3657 = vmatprep.subr.mxu0 0.0
    %3658 = vmatpush2.msra.mxu0 0.0
    %3659 = vmatprep.subr.mxu0 0.0
    %3660 = vmatpush2.msra.mxu0 0.0
    %3661 = vmatprep.subr.mxu0 0.0
    %3662 = vmatpush2.msra.mxu0 0.0
    %3663 = vmatprep.subr.mxu0 0.0
    %3664 = vmatpush2.msra.mxu0 0.0
    %3665 = vmatprep.subr.mxu0 0.0
    %3666 = vmatpush2.msra.mxu0 0.0
    %3667 = vmatprep.subr.mxu0 0.0
    %3668 = vmatpush2.msra.mxu0 0.0
    %3669 = vmatprep.subr.mxu0 0.0
    %3670 = vmatpush2.msra.mxu0 0.0
    %3671 = vmatprep.subr.mxu0 0.0
    %3672 = vmatpush2.msra.mxu0 0.0
    %3673 = vmatprep.subr.mxu0 0.0
    %3674 = vmatpush2.msra.mxu0 0.0
    %3675 = vmatprep.subr.mxu0 0.0
    %3676 = vmatpush2.msra.mxu0 0.0
    %3677 = vmatprep.subr.mxu0 0.0
    %3678 = vmatpush2.msra.mxu0 0.0
    %3679 = vmatprep.subr.mxu0 0.0
    %3680 = vmatpush2.msra.mxu0 0.0
    %3681 = vmatprep.subr.mxu0 0.0
    %3682 = vmatpush2.msra.mxu0 0.0
    %3683 = vmatprep.subr.mxu0 0.0
    %3684 = vmatpush2.msra.mxu0 0.0
    %3685 = vmatprep.mubr.f32.mxu0 0.0
    %3686 = vmatmul.mubr.f32.gmra.mxu0 %v3619
    %v3687 = vpop.f32.mrf.mxu0
    %v3688 = vadd.f32 %v498, %v3687
    %v3689 = vpop.f32.mrf.mxu0
    %3690 = vdwg.mxu0
    %v3691 = vmax.f32 %v3688, 0.0
    %v3692 = vld [vmem:[#allocation16] sm:$0xff]
    %v3693 = vld [vmem:[#allocation16 + $0x8] sm:$0xff]
    %v3694 = vld [vmem:[#allocation16 + $0x10] sm:$0xff]
    %v3695 = vld [vmem:[#allocation16 + $0x18] sm:$0xff]
    %v3697 = vsel %vm520, %v3691, 0
    %3699 = vmatprep.subr.mxu0 0.0
    %3700 = vmatpush1.msra.mxu0 0.0
    %3701 = vmatprep.subr.mxu0 0.0
    %3702 = vmatpush1.msra.mxu0 0.0
    %3703 = vmatprep.subr.mxu0 0.0
    %3704 = vmatpush1.msra.mxu0 0.0
    %3705 = vmatprep.subr.mxu0 0.0
    %3706 = vmatpush1.msra.mxu0 0.0
    %3707 = vmatprep.subr.mxu0 0.0
    %3708 = vmatpush1.msra.mxu0 0.0
    %3709 = vmatprep.subr.mxu0 0.0
    %3710 = vmatpush1.msra.mxu0 0.0
    %3711 = vmatprep.subr.mxu0 0.0
    %3712 = vmatpush1.msra.mxu0 0.0
    %3713 = vmatprep.subr.mxu0 0.0
    %3714 = vmatpush1.msra.mxu0 0.0
    %3715 = vmatprep.subr.mxu0 0.0
    %3716 = vmatpush1.msra.mxu0 0.0
    %3717 = vmatprep.subr.mxu0 0.0
    %3718 = vmatpush1.msra.mxu0 0.0
    %3719 = vmatprep.subr.mxu0 0.0
    %3720 = vmatpush1.msra.mxu0 0.0
    %3721 = vmatprep.subr.mxu0 0.0
    %3722 = vmatpush1.msra.mxu0 0.0
    %3723 = vmatprep.subr.mxu0 0.0
    %3724 = vmatpush1.msra.mxu0 %v3695
    %3725 = vmatprep.subr.mxu0 0.0
    %3726 = vmatpush1.msra.mxu0 %v3694
    %3727 = vmatprep.subr.mxu0 0.0
    %3728 = vmatpush1.msra.mxu0 %v3693
    %3729 = vmatprep.subr.mxu0 0.0
    %3730 = vmatpush1.msra.mxu0 %v3692
    %3731 = vmatprep.subr.mxu0 0.0
    %3732 = vmatpush2.msra.mxu0 0.0
    %3733 = vmatprep.subr.mxu0 0.0
    %3734 = vmatpush2.msra.mxu0 0.0
    %3735 = vmatprep.subr.mxu0 0.0
    %3736 = vmatpush2.msra.mxu0 0.0
    %3737 = vmatprep.subr.mxu0 0.0
    %3738 = vmatpush2.msra.mxu0 0.0
    %3739 = vmatprep.subr.mxu0 0.0
    %3740 = vmatpush2.msra.mxu0 0.0
    %3741 = vmatprep.subr.mxu0 0.0
    %3742 = vmatpush2.msra.mxu0 0.0
    %3743 = vmatprep.subr.mxu0 0.0
    %3744 = vmatpush2.msra.mxu0 0.0
    %3745 = vmatprep.subr.mxu0 0.0
    %3746 = vmatpush2.msra.mxu0 0.0
    %3747 = vmatprep.subr.mxu0 0.0
    %3748 = vmatpush2.msra.mxu0 0.0
    %3749 = vmatprep.subr.mxu0 0.0
    %3750 = vmatpush2.msra.mxu0 0.0
    %3751 = vmatprep.subr.mxu0 0.0
    %3752 = vmatpush2.msra.mxu0 0.0
    %3753 = vmatprep.subr.mxu0 0.0
    %3754 = vmatpush2.msra.mxu0 0.0
    %3755 = vmatprep.subr.mxu0 0.0
    %3756 = vmatpush2.msra.mxu0 0.0
    %3757 = vmatprep.subr.mxu0 0.0
    %3758 = vmatpush2.msra.mxu0 0.0
    %3759 = vmatprep.subr.mxu0 0.0
    %3760 = vmatpush2.msra.mxu0 0.0
    %3761 = vmatprep.subr.mxu0 0.0
    %3762 = vmatpush2.msra.mxu0 0.0
    %3763 = vmatprep.mubr.f32.mxu0 0.0
    %3764 = vmatmul.mubr.f32.gmra.mxu0 %v3697
    %v3765 = vpop.f32.mrf.mxu0
    %v3766 = vadd.f32 %v505, %v3765
    %v3767 = vpop.f32.mrf.mxu0
    %3768 = vdwg.mxu0
    %v3769 = vmax.f32 %v3766, 0.0
    %v3770 = vld [vmem:[%s20] sm:$0xff]
    %v3771 = vld [vmem:[%s20 + $0x8] sm:$0xff]
    %v3772 = vld [vmem:[%s20 + $0x10] sm:$0xff]
    %v3773 = vld [vmem:[%s20 + $0x18] sm:$0xff]
    %v3775 = vsel %vm520, %v3769, 0
    %3777 = vmatprep.subr.mxu0 0.0
    %3778 = vmatpush1.msra.mxu0 0.0
    %3779 = vmatprep.subr.mxu0 0.0
    %3780 = vmatpush1.msra.mxu0 0.0
    %3781 = vmatprep.subr.mxu0 0.0
    %3782 = vmatpush1.msra.mxu0 0.0
    %3783 = vmatprep.subr.mxu0 0.0
    %3784 = vmatpush1.msra.mxu0 0.0
    %3785 = vmatprep.subr.mxu0 0.0
    %3786 = vmatpush1.msra.mxu0 0.0
    %3787 = vmatprep.subr.mxu0 0.0
    %3788 = vmatpush1.msra.mxu0 0.0
    %3789 = vmatprep.subr.mxu0 0.0
    %3790 = vmatpush1.msra.mxu0 0.0
    %3791 = vmatprep.subr.mxu0 0.0
    %3792 = vmatpush1.msra.mxu0 0.0
    %3793 = vmatprep.subr.mxu0 0.0
    %3794 = vmatpush1.msra.mxu0 0.0
    %3795 = vmatprep.subr.mxu0 0.0
    %3796 = vmatpush1.msra.mxu0 0.0
    %3797 = vmatprep.subr.mxu0 0.0
    %3798 = vmatpush1.msra.mxu0 0.0
    %3799 = vmatprep.subr.mxu0 0.0
    %3800 = vmatpush1.msra.mxu0 0.0
    %3801 = vmatprep.subr.mxu0 0.0
    %3802 = vmatpush1.msra.mxu0 %v3773
    %3803 = vmatprep.subr.mxu0 0.0
    %3804 = vmatpush1.msra.mxu0 %v3772
    %3805 = vmatprep.subr.mxu0 0.0
    %3806 = vmatpush1.msra.mxu0 %v3771
    %3807 = vmatprep.subr.mxu0 0.0
    %3808 = vmatpush1.msra.mxu0 %v3770
    %3809 = vmatprep.subr.mxu0 0.0
    %3810 = vmatpush2.msra.mxu0 0.0
    %3811 = vmatprep.subr.mxu0 0.0
    %3812 = vmatpush2.msra.mxu0 0.0
    %3813 = vmatprep.subr.mxu0 0.0
    %3814 = vmatpush2.msra.mxu0 0.0
    %3815 = vmatprep.subr.mxu0 0.0
    %3816 = vmatpush2.msra.mxu0 0.0
    %3817 = vmatprep.subr.mxu0 0.0
    %3818 = vmatpush2.msra.mxu0 0.0
    %3819 = vmatprep.subr.mxu0 0.0
    %3820 = vmatpush2.msra.mxu0 0.0
    %3821 = vmatprep.subr.mxu0 0.0
    %3822 = vmatpush2.msra.mxu0 0.0
    %3823 = vmatprep.subr.mxu0 0.0
    %3824 = vmatpush2.msra.mxu0 0.0
    %3825 = vmatprep.subr.mxu0 0.0
    %3826 = vmatpush2.msra.mxu0 0.0
    %3827 = vmatprep.subr.mxu0 0.0
    %3828 = vmatpush2.msra.mxu0 0.0
    %3829 = vmatprep.subr.mxu0 0.0
    %3830 = vmatpush2.msra.mxu0 0.0
    %3831 = vmatprep.subr.mxu0 0.0
    %3832 = vmatpush2.msra.mxu0 0.0
    %3833 = vmatprep.subr.mxu0 0.0
    %3834 = vmatpush2.msra.mxu0 0.0
    %3835 = vmatprep.subr.mxu0 0.0
    %3836 = vmatpush2.msra.mxu0 0.0
    %3837 = vmatprep.subr.mxu0 0.0
    %3838 = vmatpush2.msra.mxu0 0.0
    %3839 = vmatprep.subr.mxu0 0.0
    %3840 = vmatpush2.msra.mxu0 0.0
    %3841 = vmatprep.mubr.f32.mxu0 0.0
    %3842 = vmatmul.mubr.f32.gmra.mxu0 %v3775
    %v3843 = vpop.f32.mrf.mxu0
    %v3844 = vadd.f32 %v512, %v3843
    %v3845 = vpop.f32.mrf.mxu0
    %3846 = vdwg.mxu0
    %3848 = vset.pattern.permute.xlu0 0
    %3849 = vperm.xlu0 %3848, %v471
    %v3850 = vpop.permute.xlu0 %3849
    %v3852 = vmul.f32 %v3844, %v3850
    %v3855 = vunpack.c.l.s4 1966171168
    %v3856 = vunpack.c.0.s8 %v3855
    %v3857 = vlaneseq
    %v3858 = vshrl.u32 %v3857, 7
    %v3859 = vsub.s32 %v3856, %v3858
    %v3860 = vrot.slane %v3852, %v3859
    %v3861 = vcombine.high %v3860, %v3860
    %v3863 = vunpack.c.l.s4 1966171168
    %v3864 = vunpack.c.0.s8 %v3863
    %v3865 = vlaneseq
    %v3866 = vshrl.u32 %v3865, 7
    %v3867 = vsub.s32 %v3864, %v3866
    %v3868 = vrot.slane %v3860, %v3867
    %v3870 = vunpack.c.l.s4 1966171168
    %v3871 = vunpack.c.0.s8 %v3870
    %v3872 = vlaneseq
    %v3873 = vshrl.u32 %v3872, 7
    %v3874 = vsub.s32 %v3871, %v3873
    %v3875 = vrot.slane %v3861, %v3874
    %v3876 = vcombine.high %v3868, %v3868
    %v3877 = vcombine.high %v3875, %v3875
    %3882 = vst.msk [vmem:[%s22 + $0x4] sm:$0x1] %vm1098, %v3868
    %3883 = vst.msk [vmem:[%s22 + $0xc] sm:$0x1] %vm1098, %v3875
    %3884 = vst.msk [vmem:[%s22 + $0x14] sm:$0x1] %vm1098, %v3876
    %3885 = vst.msk [vmem:[%s22 + $0x1c] sm:$0x1] %vm1098, %v3877
    %v3886 = vmul.f32 %v3453, %v3850
    %v3889 = vunpack.c.l.s4 1966171168
    %v3890 = vunpack.c.0.s8 %v3889
    %v3891 = vlaneseq
    %v3892 = vshrl.u32 %v3891, 7
    %v3893 = vsub.s32 %v3890, %v3892
    %v3894 = vrot.slane %v3886, %v3893
    %v3895 = vcombine.high %v3894, %v3894
    %v3897 = vunpack.c.l.s4 1966171168
    %v3898 = vunpack.c.0.s8 %v3897
    %v3899 = vlaneseq
    %v3900 = vshrl.u32 %v3899, 7
    %v3901 = vsub.s32 %v3898, %v3900
    %v3902 = vrot.slane %v3894, %v3901
    %v3904 = vunpack.c.l.s4 1966171168
    %v3905 = vunpack.c.0.s8 %v3904
    %v3906 = vlaneseq
    %v3907 = vshrl.u32 %v3906, 7
    %v3908 = vsub.s32 %v3905, %v3907
    %v3909 = vrot.slane %v3895, %v3908
    %v3910 = vcombine.high %v3902, %v3902
    %v3911 = vcombine.high %v3909, %v3909
    %3916 = vst.msk [vmem:[%s23 + $0x4] sm:$0x1] %vm1133, %v3902
    %3917 = vst.msk [vmem:[%s23 + $0xc] sm:$0x1] %vm1133, %v3909
    %3918 = vst.msk [vmem:[%s23 + $0x14] sm:$0x1] %vm1133, %v3910
    %3919 = vst.msk [vmem:[%s23 + $0x1c] sm:$0x1] %vm1133, %v3911
    %v3920 = vld [vmem:[%s8] sm:$0xff]
    %v3922 = vsel %vm229, %v3844, 0
    %3924 = vmatprep.subr.mxu0 0.0
    %3925 = vmatpush1.msra.mxu0 0.0
    %3926 = vmatprep.subr.mxu0 0.0
    %3927 = vmatpush1.msra.mxu0 0.0
    %3928 = vmatprep.subr.mxu0 0.0
    %3929 = vmatpush1.msra.mxu0 0.0
    %3930 = vmatprep.subr.mxu0 0.0
    %3931 = vmatpush1.msra.mxu0 0.0
    %3932 = vmatprep.subr.mxu0 0.0
    %3933 = vmatpush1.msra.mxu0 0.0
    %3934 = vmatprep.subr.mxu0 0.0
    %3935 = vmatpush1.msra.mxu0 0.0
    %3936 = vmatprep.subr.mxu0 0.0
    %3937 = vmatpush1.msra.mxu0 0.0
    %3938 = vmatprep.subr.mxu0 0.0
    %3939 = vmatpush1.msra.mxu0 0.0
    %3940 = vmatprep.subr.mxu0 0.0
    %3941 = vmatpush1.msra.mxu0 0.0
    %3942 = vmatprep.subr.mxu0 0.0
    %3943 = vmatpush1.msra.mxu0 0.0
    %3944 = vmatprep.subr.mxu0 0.0
    %3945 = vmatpush1.msra.mxu0 0.0
    %3946 = vmatprep.subr.mxu0 0.0
    %3947 = vmatpush1.msra.mxu0 0.0
    %3948 = vmatprep.subr.mxu0 0.0
    %3949 = vmatpush1.msra.mxu0 0.0
    %3950 = vmatprep.subr.mxu0 0.0
    %3951 = vmatpush1.msra.mxu0 0.0
    %3952 = vmatprep.subr.mxu0 0.0
    %3953 = vmatpush1.msra.mxu0 0.0
    %3954 = vmatprep.subr.mxu0 0.0
    %3955 = vmatpush1.msra.mxu0 %v3920
    %3956 = vmatprep.subr.mxu0 0.0
    %3957 = vmatpush2.msra.mxu0 0.0
    %3958 = vmatprep.subr.mxu0 0.0
    %3959 = vmatpush2.msra.mxu0 0.0
    %3960 = vmatprep.subr.mxu0 0.0
    %3961 = vmatpush2.msra.mxu0 0.0
    %3962 = vmatprep.subr.mxu0 0.0
    %3963 = vmatpush2.msra.mxu0 0.0
    %3964 = vmatprep.subr.mxu0 0.0
    %3965 = vmatpush2.msra.mxu0 0.0
    %3966 = vmatprep.subr.mxu0 0.0
    %3967 = vmatpush2.msra.mxu0 0.0
    %3968 = vmatprep.subr.mxu0 0.0
    %3969 = vmatpush2.msra.mxu0 0.0
    %3970 = vmatprep.subr.mxu0 0.0
    %3971 = vmatpush2.msra.mxu0 0.0
    %3972 = vmatprep.subr.mxu0 0.0
    %3973 = vmatpush2.msra.mxu0 0.0
    %3974 = vmatprep.subr.mxu0 0.0
    %3975 = vmatpush2.msra.mxu0 0.0
    %3976 = vmatprep.subr.mxu0 0.0
    %3977 = vmatpush2.msra.mxu0 0.0
    %3978 = vmatprep.subr.mxu0 0.0
    %3979 = vmatpush2.msra.mxu0 0.0
    %3980 = vmatprep.subr.mxu0 0.0
    %3981 = vmatpush2.msra.mxu0 0.0
    %3982 = vmatprep.subr.mxu0 0.0
    %3983 = vmatpush2.msra.mxu0 0.0
    %3984 = vmatprep.subr.mxu0 0.0
    %3985 = vmatpush2.msra.mxu0 0.0
    %3986 = vmatprep.subr.mxu0 0.0
    %3987 = vmatpush2.msra.mxu0 0.0
    %3988 = vmatprep.mubr.f32.mxu0 0.0
    %3989 = vmatmul.mubr.f32.gmra.mxu0 %v3922
    %v3990 = vpop.f32.mrf.mxu0
    %v3991 = vadd.f32 0.0, %v3990
    %v3992 = vpop.f32.mrf.mxu0
    %3993 = vdwg.mxu0
    %v3995 = vrot.slane %v3991, 4
    %v3997 = vadd.f32 %v316, %v3995
    %v3998 = vmax.f32 %v3997, 0.0
    %v3999 = vld [vmem:[%s9] sm:$0xff]
    %v4000 = vld [vmem:[%s9 + $0x8] sm:$0xff]
    %v4001 = vld [vmem:[%s9 + $0x10] sm:$0xff]
    %v4002 = vld [vmem:[%s9 + $0x18] sm:$0xff]
    %v4004 = vrot.slane %v3998, 4
    %v4005 = vsel %vm520, %v4004, 0
    %4007 = vmatprep.subr.mxu0 0.0
    %4008 = vmatpush1.msra.mxu0 0.0
    %4009 = vmatprep.subr.mxu0 0.0
    %4010 = vmatpush1.msra.mxu0 0.0
    %4011 = vmatprep.subr.mxu0 0.0
    %4012 = vmatpush1.msra.mxu0 0.0
    %4013 = vmatprep.subr.mxu0 0.0
    %4014 = vmatpush1.msra.mxu0 0.0
    %4015 = vmatprep.subr.mxu0 0.0
    %4016 = vmatpush1.msra.mxu0 0.0
    %4017 = vmatprep.subr.mxu0 0.0
    %4018 = vmatpush1.msra.mxu0 0.0
    %4019 = vmatprep.subr.mxu0 0.0
    %4020 = vmatpush1.msra.mxu0 0.0
    %4021 = vmatprep.subr.mxu0 0.0
    %4022 = vmatpush1.msra.mxu0 0.0
    %4023 = vmatprep.subr.mxu0 0.0
    %4024 = vmatpush1.msra.mxu0 0.0
    %4025 = vmatprep.subr.mxu0 0.0
    %4026 = vmatpush1.msra.mxu0 0.0
    %4027 = vmatprep.subr.mxu0 0.0
    %4028 = vmatpush1.msra.mxu0 0.0
    %4029 = vmatprep.subr.mxu0 0.0
    %4030 = vmatpush1.msra.mxu0 0.0
    %4031 = vmatprep.subr.mxu0 0.0
    %4032 = vmatpush1.msra.mxu0 %v4002
    %4033 = vmatprep.subr.mxu0 0.0
    %4034 = vmatpush1.msra.mxu0 %v4001
    %4035 = vmatprep.subr.mxu0 0.0
    %4036 = vmatpush1.msra.mxu0 %v4000
    %4037 = vmatprep.subr.mxu0 0.0
    %4038 = vmatpush1.msra.mxu0 %v3999
    %4039 = vmatprep.subr.mxu0 0.0
    %4040 = vmatpush2.msra.mxu0 0.0
    %4041 = vmatprep.subr.mxu0 0.0
    %4042 = vmatpush2.msra.mxu0 0.0
    %4043 = vmatprep.subr.mxu0 0.0
    %4044 = vmatpush2.msra.mxu0 0.0
    %4045 = vmatprep.subr.mxu0 0.0
    %4046 = vmatpush2.msra.mxu0 0.0
    %4047 = vmatprep.subr.mxu0 0.0
    %4048 = vmatpush2.msra.mxu0 0.0
    %4049 = vmatprep.subr.mxu0 0.0
    %4050 = vmatpush2.msra.mxu0 0.0
    %4051 = vmatprep.subr.mxu0 0.0
    %4052 = vmatpush2.msra.mxu0 0.0
    %4053 = vmatprep.subr.mxu0 0.0
    %4054 = vmatpush2.msra.mxu0 0.0
    %4055 = vmatprep.subr.mxu0 0.0
    %4056 = vmatpush2.msra.mxu0 0.0
    %4057 = vmatprep.subr.mxu0 0.0
    %4058 = vmatpush2.msra.mxu0 0.0
    %4059 = vmatprep.subr.mxu0 0.0
    %4060 = vmatpush2.msra.mxu0 0.0
    %4061 = vmatprep.subr.mxu0 0.0
    %4062 = vmatpush2.msra.mxu0 0.0
    %4063 = vmatprep.subr.mxu0 0.0
    %4064 = vmatpush2.msra.mxu0 0.0
    %4065 = vmatprep.subr.mxu0 0.0
    %4066 = vmatpush2.msra.mxu0 0.0
    %4067 = vmatprep.subr.mxu0 0.0
    %4068 = vmatpush2.msra.mxu0 0.0
    %4069 = vmatprep.subr.mxu0 0.0
    %4070 = vmatpush2.msra.mxu0 0.0
    %4071 = vmatprep.mubr.f32.mxu0 0.0
    %4072 = vmatmul.mubr.f32.gmra.mxu0 %v4005
    %v4073 = vpop.f32.mrf.mxu0
    %v4074 = vadd.f32 %v477, %v4073
    %v4075 = vpop.f32.mrf.mxu0
    %4076 = vdwg.mxu0
    %v4077 = vmax.f32 %v4074, 0.0
    %v4078 = vld [vmem:[%s11] sm:$0xff]
    %v4079 = vld [vmem:[%s11 + $0x8] sm:$0xff]
    %v4080 = vld [vmem:[%s11 + $0x10] sm:$0xff]
    %v4081 = vld [vmem:[%s11 + $0x18] sm:$0xff]
    %v4083 = vsel %vm520, %v4077, 0
    %4085 = vmatprep.subr.mxu0 0.0
    %4086 = vmatpush1.msra.mxu0 0.0
    %4087 = vmatprep.subr.mxu0 0.0
    %4088 = vmatpush1.msra.mxu0 0.0
    %4089 = vmatprep.subr.mxu0 0.0
    %4090 = vmatpush1.msra.mxu0 0.0
    %4091 = vmatprep.subr.mxu0 0.0
    %4092 = vmatpush1.msra.mxu0 0.0
    %4093 = vmatprep.subr.mxu0 0.0
    %4094 = vmatpush1.msra.mxu0 0.0
    %4095 = vmatprep.subr.mxu0 0.0
    %4096 = vmatpush1.msra.mxu0 0.0
    %4097 = vmatprep.subr.mxu0 0.0
    %4098 = vmatpush1.msra.mxu0 0.0
    %4099 = vmatprep.subr.mxu0 0.0
    %4100 = vmatpush1.msra.mxu0 0.0
    %4101 = vmatprep.subr.mxu0 0.0
    %4102 = vmatpush1.msra.mxu0 0.0
    %4103 = vmatprep.subr.mxu0 0.0
    %4104 = vmatpush1.msra.mxu0 0.0
    %4105 = vmatprep.subr.mxu0 0.0
    %4106 = vmatpush1.msra.mxu0 0.0
    %4107 = vmatprep.subr.mxu0 0.0
    %4108 = vmatpush1.msra.mxu0 0.0
    %4109 = vmatprep.subr.mxu0 0.0
    %4110 = vmatpush1.msra.mxu0 %v4081
    %4111 = vmatprep.subr.mxu0 0.0
    %4112 = vmatpush1.msra.mxu0 %v4080
    %4113 = vmatprep.subr.mxu0 0.0
    %4114 = vmatpush1.msra.mxu0 %v4079
    %4115 = vmatprep.subr.mxu0 0.0
    %4116 = vmatpush1.msra.mxu0 %v4078
    %4117 = vmatprep.subr.mxu0 0.0
    %4118 = vmatpush2.msra.mxu0 0.0
    %4119 = vmatprep.subr.mxu0 0.0
    %4120 = vmatpush2.msra.mxu0 0.0
    %4121 = vmatprep.subr.mxu0 0.0
    %4122 = vmatpush2.msra.mxu0 0.0
    %4123 = vmatprep.subr.mxu0 0.0
    %4124 = vmatpush2.msra.mxu0 0.0
    %4125 = vmatprep.subr.mxu0 0.0
    %4126 = vmatpush2.msra.mxu0 0.0
    %4127 = vmatprep.subr.mxu0 0.0
    %4128 = vmatpush2.msra.mxu0 0.0
    %4129 = vmatprep.subr.mxu0 0.0
    %4130 = vmatpush2.msra.mxu0 0.0
    %4131 = vmatprep.subr.mxu0 0.0
    %4132 = vmatpush2.msra.mxu0 0.0
    %4133 = vmatprep.subr.mxu0 0.0
    %4134 = vmatpush2.msra.mxu0 0.0
    %4135 = vmatprep.subr.mxu0 0.0
    %4136 = vmatpush2.msra.mxu0 0.0
    %4137 = vmatprep.subr.mxu0 0.0
    %4138 = vmatpush2.msra.mxu0 0.0
    %4139 = vmatprep.subr.mxu0 0.0
    %4140 = vmatpush2.msra.mxu0 0.0
    %4141 = vmatprep.subr.mxu0 0.0
    %4142 = vmatpush2.msra.mxu0 0.0
    %4143 = vmatprep.subr.mxu0 0.0
    %4144 = vmatpush2.msra.mxu0 0.0
    %4145 = vmatprep.subr.mxu0 0.0
    %4146 = vmatpush2.msra.mxu0 0.0
    %4147 = vmatprep.subr.mxu0 0.0
    %4148 = vmatpush2.msra.mxu0 0.0
    %4149 = vmatprep.mubr.f32.mxu0 0.0
    %4150 = vmatmul.mubr.f32.gmra.mxu0 %v4083
    %v4151 = vpop.f32.mrf.mxu0
    %v4152 = vadd.f32 %v484, %v4151
    %v4153 = vpop.f32.mrf.mxu0
    %4154 = vdwg.mxu0
    %v4155 = vmax.f32 %v4152, 0.0
    %v4156 = vld [vmem:[%s13] sm:$0xff]
    %v4157 = vld [vmem:[%s13 + $0x8] sm:$0xff]
    %v4158 = vld [vmem:[%s13 + $0x10] sm:$0xff]
    %v4159 = vld [vmem:[%s13 + $0x18] sm:$0xff]
    %v4160 = vld [vmem:[%s14] sm:$0xff]
    %v4161 = vld [vmem:[%s14 + $0x8] sm:$0xff]
    %v4162 = vld [vmem:[%s14 + $0x10] sm:$0xff]
    %v4163 = vld [vmem:[%s14 + $0x18] sm:$0xff]
    %v4165 = vsel %vm520, %v3612, 0
    %4167 = vmatprep.subr.mxu0 0.0
    %4168 = vmatpush1.msra.mxu0 0.0
    %4169 = vmatprep.subr.mxu0 0.0
    %4170 = vmatpush1.msra.mxu0 0.0
    %4171 = vmatprep.subr.mxu0 0.0
    %4172 = vmatpush1.msra.mxu0 0.0
    %4173 = vmatprep.subr.mxu0 0.0
    %4174 = vmatpush1.msra.mxu0 0.0
    %4175 = vmatprep.subr.mxu0 0.0
    %4176 = vmatpush1.msra.mxu0 0.0
    %4177 = vmatprep.subr.mxu0 0.0
    %4178 = vmatpush1.msra.mxu0 0.0
    %4179 = vmatprep.subr.mxu0 0.0
    %4180 = vmatpush1.msra.mxu0 0.0
    %4181 = vmatprep.subr.mxu0 0.0
    %4182 = vmatpush1.msra.mxu0 0.0
    %4183 = vmatprep.subr.mxu0 0.0
    %4184 = vmatpush1.msra.mxu0 0.0
    %4185 = vmatprep.subr.mxu0 0.0
    %4186 = vmatpush1.msra.mxu0 0.0
    %4187 = vmatprep.subr.mxu0 0.0
    %4188 = vmatpush1.msra.mxu0 0.0
    %4189 = vmatprep.subr.mxu0 0.0
    %4190 = vmatpush1.msra.mxu0 0.0
    %4191 = vmatprep.subr.mxu0 0.0
    %4192 = vmatpush1.msra.mxu0 %v4163
    %4193 = vmatprep.subr.mxu0 0.0
    %4194 = vmatpush1.msra.mxu0 %v4162
    %4195 = vmatprep.subr.mxu0 0.0
    %4196 = vmatpush1.msra.mxu0 %v4161
    %4197 = vmatprep.subr.mxu0 0.0
    %4198 = vmatpush1.msra.mxu0 %v4160
    %4199 = vmatprep.subr.mxu0 0.0
    %4200 = vmatpush2.msra.mxu0 0.0
    %4201 = vmatprep.subr.mxu0 0.0
    %4202 = vmatpush2.msra.mxu0 0.0
    %4203 = vmatprep.subr.mxu0 0.0
    %4204 = vmatpush2.msra.mxu0 0.0
    %4205 = vmatprep.subr.mxu0 0.0
    %4206 = vmatpush2.msra.mxu0 0.0
    %4207 = vmatprep.subr.mxu0 0.0
    %4208 = vmatpush2.msra.mxu0 0.0
    %4209 = vmatprep.subr.mxu0 0.0
    %4210 = vmatpush2.msra.mxu0 0.0
    %4211 = vmatprep.subr.mxu0 0.0
    %4212 = vmatpush2.msra.mxu0 0.0
    %4213 = vmatprep.subr.mxu0 0.0
    %4214 = vmatpush2.msra.mxu0 0.0
    %4215 = vmatprep.subr.mxu0 0.0
    %4216 = vmatpush2.msra.mxu0 0.0
    %4217 = vmatprep.subr.mxu0 0.0
    %4218 = vmatpush2.msra.mxu0 0.0
    %4219 = vmatprep.subr.mxu0 0.0
    %4220 = vmatpush2.msra.mxu0 0.0
    %4221 = vmatprep.subr.mxu0 0.0
    %4222 = vmatpush2.msra.mxu0 0.0
    %4223 = vmatprep.subr.mxu0 0.0
    %4224 = vmatpush2.msra.mxu0 0.0
    %4225 = vmatprep.subr.mxu0 0.0
    %4226 = vmatpush2.msra.mxu0 0.0
    %4227 = vmatprep.subr.mxu0 0.0
    %4228 = vmatpush2.msra.mxu0 0.0
    %4229 = vmatprep.subr.mxu0 0.0
    %4230 = vmatpush2.msra.mxu0 0.0
    %4231 = vmatprep.mubr.f32.mxu0 0.0
    %4232 = vmatmul.mubr.f32.gmra.mxu0 %v4165
    %v4233 = vpop.f32.mrf.mxu0
    %v4234 = vadd.f32 0.0, %v4233
    %v4235 = vpop.f32.mrf.mxu0
    %4236 = vdwg.mxu0
    %v4238 = vsel %vm520, %v4155, 0
    %4240 = vmatprep.subr.mxu0 0.0
    %4241 = vmatpush1.msra.mxu0 0.0
    %4242 = vmatprep.subr.mxu0 0.0
    %4243 = vmatpush1.msra.mxu0 0.0
    %4244 = vmatprep.subr.mxu0 0.0
    %4245 = vmatpush1.msra.mxu0 0.0
    %4246 = vmatprep.subr.mxu0 0.0
    %4247 = vmatpush1.msra.mxu0 0.0
    %4248 = vmatprep.subr.mxu0 0.0
    %4249 = vmatpush1.msra.mxu0 0.0
    %4250 = vmatprep.subr.mxu0 0.0
    %4251 = vmatpush1.msra.mxu0 0.0
    %4252 = vmatprep.subr.mxu0 0.0
    %4253 = vmatpush1.msra.mxu0 0.0
    %4254 = vmatprep.subr.mxu0 0.0
    %4255 = vmatpush1.msra.mxu0 0.0
    %4256 = vmatprep.subr.mxu0 0.0
    %4257 = vmatpush1.msra.mxu0 0.0
    %4258 = vmatprep.subr.mxu0 0.0
    %4259 = vmatpush1.msra.mxu0 0.0
    %4260 = vmatprep.subr.mxu0 0.0
    %4261 = vmatpush1.msra.mxu0 0.0
    %4262 = vmatprep.subr.mxu0 0.0
    %4263 = vmatpush1.msra.mxu0 0.0
    %4264 = vmatprep.subr.mxu0 0.0
    %4265 = vmatpush1.msra.mxu0 %v4159
    %4266 = vmatprep.subr.mxu0 0.0
    %4267 = vmatpush1.msra.mxu0 %v4158
    %4268 = vmatprep.subr.mxu0 0.0
    %4269 = vmatpush1.msra.mxu0 %v4157
    %4270 = vmatprep.subr.mxu0 0.0
    %4271 = vmatpush1.msra.mxu0 %v4156
    %4272 = vmatprep.subr.mxu0 0.0
    %4273 = vmatpush2.msra.mxu0 0.0
    %4274 = vmatprep.subr.mxu0 0.0
    %4275 = vmatpush2.msra.mxu0 0.0
    %4276 = vmatprep.subr.mxu0 0.0
    %4277 = vmatpush2.msra.mxu0 0.0
    %4278 = vmatprep.subr.mxu0 0.0
    %4279 = vmatpush2.msra.mxu0 0.0
    %4280 = vmatprep.subr.mxu0 0.0
    %4281 = vmatpush2.msra.mxu0 0.0
    %4282 = vmatprep.subr.mxu0 0.0
    %4283 = vmatpush2.msra.mxu0 0.0
    %4284 = vmatprep.subr.mxu0 0.0
    %4285 = vmatpush2.msra.mxu0 0.0
    %4286 = vmatprep.subr.mxu0 0.0
    %4287 = vmatpush2.msra.mxu0 0.0
    %4288 = vmatprep.subr.mxu0 0.0
    %4289 = vmatpush2.msra.mxu0 0.0
    %4290 = vmatprep.subr.mxu0 0.0
    %4291 = vmatpush2.msra.mxu0 0.0
    %4292 = vmatprep.subr.mxu0 0.0
    %4293 = vmatpush2.msra.mxu0 0.0
    %4294 = vmatprep.subr.mxu0 0.0
    %4295 = vmatpush2.msra.mxu0 0.0
    %4296 = vmatprep.subr.mxu0 0.0
    %4297 = vmatpush2.msra.mxu0 0.0
    %4298 = vmatprep.subr.mxu0 0.0
    %4299 = vmatpush2.msra.mxu0 0.0
    %4300 = vmatprep.subr.mxu0 0.0
    %4301 = vmatpush2.msra.mxu0 0.0
    %4302 = vmatprep.subr.mxu0 0.0
    %4303 = vmatpush2.msra.mxu0 0.0
    %4304 = vmatprep.mubr.f32.mxu0 0.0
    %4305 = vmatmul.mubr.f32.gmra.mxu0 %v4238
    %v4306 = vpop.f32.mrf.mxu0
    %v4307 = vadd.f32 %v4234, %v4306
    %v4308 = vpop.f32.mrf.mxu0
    %4309 = vdwg.mxu0
    %v4310 = vadd.f32 %v4307, %v491
    %v4311 = vtanh.pop %v4310
    %v4312 = vmax.f32 %v4311, 0.0
    %v4313 = vld [vmem:[#allocation13] sm:$0xff]
    %v4314 = vld [vmem:[#allocation13 + $0x8] sm:$0xff]
    %v4315 = vld [vmem:[#allocation13 + $0x10] sm:$0xff]
    %v4316 = vld [vmem:[#allocation13 + $0x18] sm:$0xff]
    %v4318 = vsel %vm520, %v4312, 0
    %4320 = vmatprep.subr.mxu0 0.0
    %4321 = vmatpush1.msra.mxu0 0.0
    %4322 = vmatprep.subr.mxu0 0.0
    %4323 = vmatpush1.msra.mxu0 0.0
    %4324 = vmatprep.subr.mxu0 0.0
    %4325 = vmatpush1.msra.mxu0 0.0
    %4326 = vmatprep.subr.mxu0 0.0
    %4327 = vmatpush1.msra.mxu0 0.0
    %4328 = vmatprep.subr.mxu0 0.0
    %4329 = vmatpush1.msra.mxu0 0.0
    %4330 = vmatprep.subr.mxu0 0.0
    %4331 = vmatpush1.msra.mxu0 0.0
    %4332 = vmatprep.subr.mxu0 0.0
    %4333 = vmatpush1.msra.mxu0 0.0
    %4334 = vmatprep.subr.mxu0 0.0
    %4335 = vmatpush1.msra.mxu0 0.0
    %4336 = vmatprep.subr.mxu0 0.0
    %4337 = vmatpush1.msra.mxu0 0.0
    %4338 = vmatprep.subr.mxu0 0.0
    %4339 = vmatpush1.msra.mxu0 0.0
    %4340 = vmatprep.subr.mxu0 0.0
    %4341 = vmatpush1.msra.mxu0 0.0
    %4342 = vmatprep.subr.mxu0 0.0
    %4343 = vmatpush1.msra.mxu0 0.0
    %4344 = vmatprep.subr.mxu0 0.0
    %4345 = vmatpush1.msra.mxu0 %v4316
    %4346 = vmatprep.subr.mxu0 0.0
    %4347 = vmatpush1.msra.mxu0 %v4315
    %4348 = vmatprep.subr.mxu0 0.0
    %4349 = vmatpush1.msra.mxu0 %v4314
    %4350 = vmatprep.subr.mxu0 0.0
    %4351 = vmatpush1.msra.mxu0 %v4313
    %4352 = vmatprep.subr.mxu0 0.0
    %4353 = vmatpush2.msra.mxu0 0.0
    %4354 = vmatprep.subr.mxu0 0.0
    %4355 = vmatpush2.msra.mxu0 0.0
    %4356 = vmatprep.subr.mxu0 0.0
    %4357 = vmatpush2.msra.mxu0 0.0
    %4358 = vmatprep.subr.mxu0 0.0
    %4359 = vmatpush2.msra.mxu0 0.0
    %4360 = vmatprep.subr.mxu0 0.0
    %4361 = vmatpush2.msra.mxu0 0.0
    %4362 = vmatprep.subr.mxu0 0.0
    %4363 = vmatpush2.msra.mxu0 0.0
    %4364 = vmatprep.subr.mxu0 0.0
    %4365 = vmatpush2.msra.mxu0 0.0
    %4366 = vmatprep.subr.mxu0 0.0
    %4367 = vmatpush2.msra.mxu0 0.0
    %4368 = vmatprep.subr.mxu0 0.0
    %4369 = vmatpush2.msra.mxu0 0.0
    %4370 = vmatprep.subr.mxu0 0.0
    %4371 = vmatpush2.msra.mxu0 0.0
    %4372 = vmatprep.subr.mxu0 0.0
    %4373 = vmatpush2.msra.mxu0 0.0
    %4374 = vmatprep.subr.mxu0 0.0
    %4375 = vmatpush2.msra.mxu0 0.0
    %4376 = vmatprep.subr.mxu0 0.0
    %4377 = vmatpush2.msra.mxu0 0.0
    %4378 = vmatprep.subr.mxu0 0.0
    %4379 = vmatpush2.msra.mxu0 0.0
    %4380 = vmatprep.subr.mxu0 0.0
    %4381 = vmatpush2.msra.mxu0 0.0
    %4382 = vmatprep.subr.mxu0 0.0
    %4383 = vmatpush2.msra.mxu0 0.0
    %4384 = vmatprep.mubr.f32.mxu0 0.0
    %4385 = vmatmul.mubr.f32.gmra.mxu0 %v4318
    %v4386 = vpop.f32.mrf.mxu0
    %v4387 = vadd.f32 %v498, %v4386
    %v4388 = vpop.f32.mrf.mxu0
    %4389 = vdwg.mxu0
    %v4390 = vmax.f32 %v4387, 0.0
    %v4391 = vld [vmem:[#allocation16] sm:$0xff]
    %v4392 = vld [vmem:[#allocation16 + $0x8] sm:$0xff]
    %v4393 = vld [vmem:[#allocation16 + $0x10] sm:$0xff]
    %v4394 = vld [vmem:[#allocation16 + $0x18] sm:$0xff]
    %v4396 = vsel %vm520, %v4390, 0
    %4398 = vmatprep.subr.mxu0 0.0
    %4399 = vmatpush1.msra.mxu0 0.0
    %4400 = vmatprep.subr.mxu0 0.0
    %4401 = vmatpush1.msra.mxu0 0.0
    %4402 = vmatprep.subr.mxu0 0.0
    %4403 = vmatpush1.msra.mxu0 0.0
    %4404 = vmatprep.subr.mxu0 0.0
    %4405 = vmatpush1.msra.mxu0 0.0
    %4406 = vmatprep.subr.mxu0 0.0
    %4407 = vmatpush1.msra.mxu0 0.0
    %4408 = vmatprep.subr.mxu0 0.0
    %4409 = vmatpush1.msra.mxu0 0.0
    %4410 = vmatprep.subr.mxu0 0.0
    %4411 = vmatpush1.msra.mxu0 0.0
    %4412 = vmatprep.subr.mxu0 0.0
    %4413 = vmatpush1.msra.mxu0 0.0
    %4414 = vmatprep.subr.mxu0 0.0
    %4415 = vmatpush1.msra.mxu0 0.0
    %4416 = vmatprep.subr.mxu0 0.0
    %4417 = vmatpush1.msra.mxu0 0.0
    %4418 = vmatprep.subr.mxu0 0.0
    %4419 = vmatpush1.msra.mxu0 0.0
    %4420 = vmatprep.subr.mxu0 0.0
    %4421 = vmatpush1.msra.mxu0 0.0
    %4422 = vmatprep.subr.mxu0 0.0
    %4423 = vmatpush1.msra.mxu0 %v4394
    %4424 = vmatprep.subr.mxu0 0.0
    %4425 = vmatpush1.msra.mxu0 %v4393
    %4426 = vmatprep.subr.mxu0 0.0
    %4427 = vmatpush1.msra.mxu0 %v4392
    %4428 = vmatprep.subr.mxu0 0.0
    %4429 = vmatpush1.msra.mxu0 %v4391
    %4430 = vmatprep.subr.mxu0 0.0
    %4431 = vmatpush2.msra.mxu0 0.0
    %4432 = vmatprep.subr.mxu0 0.0
    %4433 = vmatpush2.msra.mxu0 0.0
    %4434 = vmatprep.subr.mxu0 0.0
    %4435 = vmatpush2.msra.mxu0 0.0
    %4436 = vmatprep.subr.mxu0 0.0
    %4437 = vmatpush2.msra.mxu0 0.0
    %4438 = vmatprep.subr.mxu0 0.0
    %4439 = vmatpush2.msra.mxu0 0.0
    %4440 = vmatprep.subr.mxu0 0.0
    %4441 = vmatpush2.msra.mxu0 0.0
    %4442 = vmatprep.subr.mxu0 0.0
    %4443 = vmatpush2.msra.mxu0 0.0
    %4444 = vmatprep.subr.mxu0 0.0
    %4445 = vmatpush2.msra.mxu0 0.0
    %4446 = vmatprep.subr.mxu0 0.0
    %4447 = vmatpush2.msra.mxu0 0.0
    %4448 = vmatprep.subr.mxu0 0.0
    %4449 = vmatpush2.msra.mxu0 0.0
    %4450 = vmatprep.subr.mxu0 0.0
    %4451 = vmatpush2.msra.mxu0 0.0
    %4452 = vmatprep.subr.mxu0 0.0
    %4453 = vmatpush2.msra.mxu0 0.0
    %4454 = vmatprep.subr.mxu0 0.0
    %4455 = vmatpush2.msra.mxu0 0.0
    %4456 = vmatprep.subr.mxu0 0.0
    %4457 = vmatpush2.msra.mxu0 0.0
    %4458 = vmatprep.subr.mxu0 0.0
    %4459 = vmatpush2.msra.mxu0 0.0
    %4460 = vmatprep.subr.mxu0 0.0
    %4461 = vmatpush2.msra.mxu0 0.0
    %4462 = vmatprep.mubr.f32.mxu0 0.0
    %4463 = vmatmul.mubr.f32.gmra.mxu0 %v4396
    %v4464 = vpop.f32.mrf.mxu0
    %v4465 = vadd.f32 %v505, %v4464
    %v4466 = vpop.f32.mrf.mxu0
    %4467 = vdwg.mxu0
    %v4468 = vmax.f32 %v4465, 0.0
    %v4469 = vld [vmem:[%s20] sm:$0xff]
    %v4470 = vld [vmem:[%s20 + $0x8] sm:$0xff]
    %v4471 = vld [vmem:[%s20 + $0x10] sm:$0xff]
    %v4472 = vld [vmem:[%s20 + $0x18] sm:$0xff]
    %v4474 = vsel %vm520, %v4468, 0
    %4476 = vmatprep.subr.mxu0 0.0
    %4477 = vmatpush1.msra.mxu0 0.0
    %4478 = vmatprep.subr.mxu0 0.0
    %4479 = vmatpush1.msra.mxu0 0.0
    %4480 = vmatprep.subr.mxu0 0.0
    %4481 = vmatpush1.msra.mxu0 0.0
    %4482 = vmatprep.subr.mxu0 0.0
    %4483 = vmatpush1.msra.mxu0 0.0
    %4484 = vmatprep.subr.mxu0 0.0
    %4485 = vmatpush1.msra.mxu0 0.0
    %4486 = vmatprep.subr.mxu0 0.0
    %4487 = vmatpush1.msra.mxu0 0.0
    %4488 = vmatprep.subr.mxu0 0.0
    %4489 = vmatpush1.msra.mxu0 0.0
    %4490 = vmatprep.subr.mxu0 0.0
    %4491 = vmatpush1.msra.mxu0 0.0
    %4492 = vmatprep.subr.mxu0 0.0
    %4493 = vmatpush1.msra.mxu0 0.0
    %4494 = vmatprep.subr.mxu0 0.0
    %4495 = vmatpush1.msra.mxu0 0.0
    %4496 = vmatprep.subr.mxu0 0.0
    %4497 = vmatpush1.msra.mxu0 0.0
    %4498 = vmatprep.subr.mxu0 0.0
    %4499 = vmatpush1.msra.mxu0 0.0
    %4500 = vmatprep.subr.mxu0 0.0
    %4501 = vmatpush1.msra.mxu0 %v4472
    %4502 = vmatprep.subr.mxu0 0.0
    %4503 = vmatpush1.msra.mxu0 %v4471
    %4504 = vmatprep.subr.mxu0 0.0
    %4505 = vmatpush1.msra.mxu0 %v4470
    %4506 = vmatprep.subr.mxu0 0.0
    %4507 = vmatpush1.msra.mxu0 %v4469
    %4508 = vmatprep.subr.mxu0 0.0
    %4509 = vmatpush2.msra.mxu0 0.0
    %4510 = vmatprep.subr.mxu0 0.0
    %4511 = vmatpush2.msra.mxu0 0.0
    %4512 = vmatprep.subr.mxu0 0.0
    %4513 = vmatpush2.msra.mxu0 0.0
    %4514 = vmatprep.subr.mxu0 0.0
    %4515 = vmatpush2.msra.mxu0 0.0
    %4516 = vmatprep.subr.mxu0 0.0
    %4517 = vmatpush2.msra.mxu0 0.0
    %4518 = vmatprep.subr.mxu0 0.0
    %4519 = vmatpush2.msra.mxu0 0.0
    %4520 = vmatprep.subr.mxu0 0.0
    %4521 = vmatpush2.msra.mxu0 0.0
    %4522 = vmatprep.subr.mxu0 0.0
    %4523 = vmatpush2.msra.mxu0 0.0
    %4524 = vmatprep.subr.mxu0 0.0
    %4525 = vmatpush2.msra.mxu0 0.0
    %4526 = vmatprep.subr.mxu0 0.0
    %4527 = vmatpush2.msra.mxu0 0.0
    %4528 = vmatprep.subr.mxu0 0.0
    %4529 = vmatpush2.msra.mxu0 0.0
    %4530 = vmatprep.subr.mxu0 0.0
    %4531 = vmatpush2.msra.mxu0 0.0
    %4532 = vmatprep.subr.mxu0 0.0
    %4533 = vmatpush2.msra.mxu0 0.0
    %4534 = vmatprep.subr.mxu0 0.0
    %4535 = vmatpush2.msra.mxu0 0.0
    %4536 = vmatprep.subr.mxu0 0.0
    %4537 = vmatpush2.msra.mxu0 0.0
    %4538 = vmatprep.subr.mxu0 0.0
    %4539 = vmatpush2.msra.mxu0 0.0
    %4540 = vmatprep.mubr.f32.mxu0 0.0
    %4541 = vmatmul.mubr.f32.gmra.mxu0 %v4474
    %v4542 = vpop.f32.mrf.mxu0
    %v4543 = vadd.f32 %v512, %v4542
    %v4544 = vpop.f32.mrf.mxu0
    %4545 = vdwg.mxu0
    %v4546 = vrot.slane %v3850, 4
    %v4548 = vmul.f32 %v4543, %v4546
    %v4551 = vunpack.c.l.s4 1966171168
    %v4552 = vunpack.c.0.s8 %v4551
    %v4553 = vlaneseq
    %v4554 = vshrl.u32 %v4553, 7
    %v4555 = vsub.s32 %v4552, %v4554
    %v4556 = vrot.slane %v4548, %v4555
    %v4557 = vcombine.high %v4556, %v4556
    %v4559 = vunpack.c.l.s4 1966171168
    %v4560 = vunpack.c.0.s8 %v4559
    %v4561 = vlaneseq
    %v4562 = vshrl.u32 %v4561, 7
    %v4563 = vsub.s32 %v4560, %v4562
    %v4564 = vrot.slane %v4556, %v4563
    %v4566 = vunpack.c.l.s4 1966171168
    %v4567 = vunpack.c.0.s8 %v4566
    %v4568 = vlaneseq
    %v4569 = vshrl.u32 %v4568, 7
    %v4570 = vsub.s32 %v4567, %v4569
    %v4571 = vrot.slane %v4557, %v4570
    %v4572 = vcombine.high %v4564, %v4564
    %v4573 = vcombine.high %v4571, %v4571
    %4578 = vst.msk [vmem:[%s22 + $0x5] sm:$0x1] %vm1098, %v4564
    %4579 = vst.msk [vmem:[%s22 + $0xd] sm:$0x1] %vm1098, %v4571
    %4580 = vst.msk [vmem:[%s22 + $0x15] sm:$0x1] %vm1098, %v4572
    %4581 = vst.msk [vmem:[%s22 + $0x1d] sm:$0x1] %vm1098, %v4573
    %v4582 = vmul.f32 %v4152, %v4546
    %v4585 = vunpack.c.l.s4 1966171168
    %v4586 = vunpack.c.0.s8 %v4585
    %v4587 = vlaneseq
    %v4588 = vshrl.u32 %v4587, 7
    %v4589 = vsub.s32 %v4586, %v4588
    %v4590 = vrot.slane %v4582, %v4589
    %v4591 = vcombine.high %v4590, %v4590
    %v4593 = vunpack.c.l.s4 1966171168
    %v4594 = vunpack.c.0.s8 %v4593
    %v4595 = vlaneseq
    %v4596 = vshrl.u32 %v4595, 7
    %v4597 = vsub.s32 %v4594, %v4596
    %v4598 = vrot.slane %v4590, %v4597
    %v4600 = vunpack.c.l.s4 1966171168
    %v4601 = vunpack.c.0.s8 %v4600
    %v4602 = vlaneseq
    %v4603 = vshrl.u32 %v4602, 7
    %v4604 = vsub.s32 %v4601, %v4603
    %v4605 = vrot.slane %v4591, %v4604
    %v4606 = vcombine.high %v4598, %v4598
    %v4607 = vcombine.high %v4605, %v4605
    %4612 = vst.msk [vmem:[%s23 + $0x5] sm:$0x1] %vm1133, %v4598
    %4613 = vst.msk [vmem:[%s23 + $0xd] sm:$0x1] %vm1133, %v4605
    %4614 = vst.msk [vmem:[%s23 + $0x15] sm:$0x1] %vm1133, %v4606
    %4615 = vst.msk [vmem:[%s23 + $0x1d] sm:$0x1] %vm1133, %v4607
    // Predicated region
    $region138: #{my_rnn_skip_forward.1} parent=1 // pred_check
      _
    $region139: #{my_rnn_skip_forward.1} parent=1 // pred_check_branch
      %4617 = sbr.rel (0) target = $region141
    $region140: #{my_rnn_skip_forward.1} parent=1 // pred_region
      _
    $region141: #{my_rnn_skip_forward.1} parent=1 // pred_fallthru
      _
    // Predicated region
    $region142: #{my_rnn_skip_forward.1} parent=1 // pred_check
      _
    $region143: #{my_rnn_skip_forward.1} parent=1 // pred_check_branch
      %4619 = sbr.rel (0) target = $region145
    $region144: #{my_rnn_skip_forward.1} parent=1 // pred_region
      _
    $region145: #{my_rnn_skip_forward.1} parent=1 // pred_fallthru
      _
    // Predicated region
    $region146: #{my_rnn_skip_forward.1} parent=1 // pred_check
      _
    $region147: #{my_rnn_skip_forward.1} parent=1 // pred_check_branch
      %4621 = sbr.rel (0) target = $region149
    $region148: #{my_rnn_skip_forward.1} parent=1 // pred_region
      _
    $region149: #{my_rnn_skip_forward.1} parent=1 // pred_fallthru
      _
    // Predicated region
    $region150: #{my_rnn_skip_forward.1} parent=1 // pred_check
      _
    $region151: #{my_rnn_skip_forward.1} parent=1 // pred_check_branch
      %4623 = sbr.rel (0) target = $region153
    $region152: #{my_rnn_skip_forward.1} parent=1 // pred_region
      _
    $region153: #{my_rnn_skip_forward.1} parent=1 // pred_fallthru
      _
    %4624 = vsyncpa [#allocation3], 1
    %4625 = vsyncpa [#allocation5], 1
    %4626 = vsyncpa [#allocation8], 1
    %4627 = vsyncpa [#allocation11], 1
    %4628 = vsyncpa [#allocation14], 1
    %4629 = vsyncpa [#allocation17], 1
    %4630 = vsyncpa [#allocation20], 1

</llo_original>
